<compile_context>
chip_gen: v7x
topology: tpu7x:2x2x1
jax: 0.10.0
libtpu: 0.0.40
codegen_flags: <defaults>
</compile_context>

<pallas_src>
import functools
import math

import jax
import jax.numpy as jnp
import numpy as np
from jax.experimental import pallas as pl
from jax.experimental.pallas import tpu as pltpu


def _round_up(x, m):
    return ((x + m - 1) // m) * m


# ----------------------------------------------------------------------------
# Fused Bottleneck kernel (one batch element per grid step)
# ----------------------------------------------------------------------------
def _bottleneck_kernel(x_ref, w1_ref, b1_ref, w2_ref, b2_ref, w3_ref, b3_ref,
                       o_ref, pad_ref, *, H, W, width, pad_top):
    HW = H * W

    x = x_ref[...]                                   # (HW, Cin) f32 (residual)
    xb = x.astype(jnp.bfloat16)

    # ---- conv1 (1x1) + bn1 (folded) + relu ---------------------------------
    h1 = jnp.dot(xb, w1_ref[...], preferred_element_type=jnp.float32)
    h1 = jnp.maximum(h1 + b1_ref[...], 0.0)          # (HW, width) f32

    # ---- conv2 (3x3, stride 1, pad 1) + bn2 (folded) + relu ----------------
    # Flat, zero-margined copy of h1 in VMEM: tap (ky, kx) becomes a
    # contiguous HW-row window at row offset ky*W + kx.  Vertical
    # out-of-bounds reads land in the zero margins; horizontal out-of-bounds
    # (which the flat layout wraps across image rows) is fixed with a mask.
    pad_ref[...] = jnp.zeros_like(pad_ref)
    pad_ref[pl.ds(pad_top, HW), :] = h1

    ow = jax.lax.broadcasted_iota(jnp.int32, (HW, width), 0) % W
    not_left = ow != 0                               # valid rows for kx = -1
    not_right = ow != (W - 1)                        # valid rows for kx = +1

    acc = jnp.zeros((HW, width), jnp.float32)
    for t in range(9):                               # unrolled 3x3 taps
        oy = t // 3 - 1
        ox = t % 3 - 1
        start = pad_top + oy * W + ox
        win = pad_ref[pl.ds(start, HW), :]           # (HW, width) f32
        if ox == -1:
            win = jnp.where(not_left, win, 0.0)
        elif ox == 1:
            win = jnp.where(not_right, win, 0.0)
        acc = acc + jnp.dot(win.astype(jnp.bfloat16), w2_ref[t],
                            preferred_element_type=jnp.float32)
    h2 = jnp.maximum(acc + b2_ref[...], 0.0)         # (HW, width) f32

    # ---- conv3 (1x1) + bn3 (folded) + residual + relu ----------------------
    out = jnp.dot(h2.astype(jnp.bfloat16), w3_ref[...],
                  preferred_element_type=jnp.float32)
    out = out + b3_ref[...] + x                      # identity residual (f32)
    o_ref[...] = jnp.maximum(out, 0.0).astype(o_ref.dtype)


# ----------------------------------------------------------------------------
# Wrapper
# ----------------------------------------------------------------------------
def bottleneck_forward(x_nchw, params):
    """x_nchw: (B, Cin, H, W) f32 -> (B, 4*planes, H, W) f32."""
    w1, b1 = params["w1"], params["b1"]
    w2, b2 = params["w2"], params["b2"]
    w3, b3 = params["w3"], params["b3"]

    B, Cin, H, W = x_nchw.shape
    width = w1.shape[1]
    Cout = w3.shape[1]
    assert Cin == Cout, "identity residual requires inplanes == 4*planes"
    HW = H * W

    pad_top = _round_up(W + 1, 8)                    # aligned top margin
    pad_rows = pad_top + HW + _round_up(W + 1, 8)    # + bottom margin

    # NCHW -> NHWC -> flat (B, H*W, Cin); channels on the 128-lane axis.
    x = jnp.transpose(x_nchw, (0, 2, 3, 1)).reshape(B, HW, Cin)
    x = x.astype(jnp.float32)

    kernel = functools.partial(_bottleneck_kernel, H=H, W=W, width=width,
                               pad_top=pad_top)

    out = pl.pallas_call(
        kernel,
        out_shape=jax.ShapeDtypeStruct((B, HW, Cout), jnp.float32),
        grid=(B,),
        in_specs=[
            pl.BlockSpec((None, HW, Cin), lambda b: (b, 0, 0)),   # x
            pl.BlockSpec((Cin, width), lambda b: (0, 0)),         # w1 (bf16)
            pl.BlockSpec((1, width), lambda b: (0, 0)),           # b1
            pl.BlockSpec((9, width, width), lambda b: (0, 0, 0)),  # w2 taps
            pl.BlockSpec((1, width), lambda b: (0, 0)),           # b2
            pl.BlockSpec((width, Cout), lambda b: (0, 0)),         # w3
            pl.BlockSpec((1, Cout), lambda b: (0, 0)),             # b3
        ],
        out_specs=pl.BlockSpec((None, HW, Cout), lambda b: (b, 0, 0)),
        scratch_shapes=[pltpu.VMEM((pad_rows, width), jnp.float32)],
        compiler_params=pltpu.CompilerParams(
            dimension_semantics=("parallel",)),
    )(x, w1, b1, w2, b2, w3, b3)

    out = out.reshape(B, H, W, Cout)
    return jnp.transpose(out, (0, 3, 1, 2))          # back to NCHW


# ----------------------------------------------------------------------------
# Parameters: raw (PyTorch-layout) init + one-time BN-folded / bf16 prep
# ----------------------------------------------------------------------------
def init_bottleneck_params(key, inplanes, planes, base_width=64, groups=1):
    width = int(planes * (base_width / 64.0)) * groups
    expansion = 4
    k1, k2, k3 = jax.random.split(key, 3)

    def kaiming(k, co, ci, kh, kw):                  # fan_out kaiming-normal
        std = math.sqrt(2.0 / (co * kh * kw))
        return std * jax.random.normal(k, (co, ci, kh, kw), jnp.float32)

    def bn(c):                                       # gamma, beta, mean, var
        return (jnp.ones((c,), jnp.float32), jnp.zeros((c,), jnp.float32),
                jnp.zeros((c,), jnp.float32), jnp.ones((c,), jnp.float32))

    return {
        "conv1": kaiming(k1, width, inplanes, 1, 1), "bn1": bn(width),
        "conv2": kaiming(k2, width, width, 3, 3),    "bn2": bn(width),
        "conv3": kaiming(k3, planes * expansion, width, 1, 1),
        "bn3": bn(planes * expansion),
    }


def prepare_params(raw, eps=1e-5):
    """Fold BN scale into bf16 matmul weights; keep only the f32 bias add."""
    def fold(w, bn_params, squeeze_taps):
        gamma, beta, mean, var = bn_params
        scale = gamma * jax.lax.rsqrt(var + eps)
        bias = beta - mean * scale
        co, ci, kh, kw = w.shape
        wm = jnp.transpose(w, (2, 3, 1, 0)).reshape(kh * kw, ci, co)
        wm = (wm * scale[None, None, :]).astype(jnp.bfloat16)
        if squeeze_taps:
            wm = wm.reshape(ci, co)
        return wm, bias.reshape(1, co).astype(jnp.float32)

    w1, b1 = fold(raw["conv1"], raw["bn1"], True)
    w2, b2 = fold(raw["conv2"], raw["bn2"], False)   # (9, Cin, Cout)
    w3, b3 = fold(raw["conv3"], raw["bn3"], True)
    return {"w1": w1, "b1": b1, "w2": w2, "b2": b2, "w3": w3, "b3": b3}


# ----------------------------------------------------------------------------
# Pure-JAX reference (true module semantics, f32 throughout)
# ----------------------------------------------------------------------------
def bottleneck_reference(x_nchw, raw, eps=1e-5):
    def conv(x, w, stride, padding):
        return jax.lax.conv_general_dilated(
            x, w, (stride, stride),
            ((padding, padding), (padding, padding)),
            dimension_numbers=("NCHW", "OIHW", "NCHW"))

    def bn(x, p):
        gamma, beta, mean, var = p
        scale = gamma * jax.lax.rsqrt(var + eps)
        bias = beta - mean * scale
        return x * scale[None, :, None, None] + bias[None, :, None, None]

    out = jax.nn.relu(bn(conv(x_nchw, raw["conv1"], 1, 0), raw["bn1"]))
    out = jax.nn.relu(bn(conv(out, raw["conv2"], 1, 1), raw["bn2"]))
    out = bn(conv(out, raw["conv3"], 1, 0), raw["bn3"])
    return jax.nn.relu(out + x_nchw)


# ----------------------------------------------------------------------------
if __name__ == "__main__":
    key = jax.random.PRNGKey(0)
    pkey, xkey = jax.random.split(key)

    # Small shapes: identity residual requires inplanes == 4*planes, stride=1.
    B, H, W = 2, 16, 16
    inplanes, planes = 128, 32                       # width = 32, Cout = 128

    raw = init_bottleneck_params(pkey, inplanes, planes)
    params = prepare_params(raw)
    x = jax.random.normal(xkey, (B, inplanes, H, W), jnp.float32)

    fwd = jax.jit(bottleneck_forward)
    out = fwd(x, params)
    jax.block_until_ready(out)

    assert out.shape == (B, 4 * planes, H, W) and out.dtype == jnp.float32
    assert bool(jnp.all(jnp.isfinite(out)))

    # Correctness check against an independent f32 reference (bf16 MXU inputs
    # => loose-but-structural tolerance).
    ref = bottleneck_reference(x, raw)
    np.testing.assert_allclose(np.asarray(out), np.asarray(ref),
                               rtol=1e-1, atol=1e-1)

    print("KERNEL_OK")
</pallas_src>

<mosaic_0001>
module attributes {stable_mosaic.version = 11 : i64} {
  func.func @_bottleneck_kernel(%arg0: i32, %arg1: memref<1x256x128xf32, #tpu.memory_space<vmem>>, %arg2: memref<128x32xbf16, #tpu.memory_space<vmem>>, %arg3: memref<1x32xf32, #tpu.memory_space<vmem>>, %arg4: memref<9x32x32xbf16, #tpu.memory_space<vmem>>, %arg5: memref<1x32xf32, #tpu.memory_space<vmem>>, %arg6: memref<32x128xbf16, #tpu.memory_space<vmem>>, %arg7: memref<1x128xf32, #tpu.memory_space<vmem>>, %arg8: memref<1x256x128xf32, #tpu.memory_space<vmem>>, %arg9: memref<304x32xf32, #tpu.memory_space<vmem>>) attributes {dimension_semantics = [#tpu.dimension_semantics<parallel>], iteration_bounds = array<i64: 2>, scalar_prefetch = 0 : i64, scratch_operands = 1 : i64, tpu.core_type = #tpu.core_type<tc>, window_params = [{transform_indices = @transform_0, window_bounds = array<i64: 1, 256, 128>}, {pipeline_mode = #tpu.pipeline_mode<synchronous>, transform_indices = @transform_1, window_bounds = array<i64: 128, 32>}, {pipeline_mode = #tpu.pipeline_mode<synchronous>, transform_indices = @transform_2, window_bounds = array<i64: 1, 32>}, {pipeline_mode = #tpu.pipeline_mode<synchronous>, transform_indices = @transform_3, window_bounds = array<i64: 9, 32, 32>}, {pipeline_mode = #tpu.pipeline_mode<synchronous>, transform_indices = @transform_4, window_bounds = array<i64: 1, 32>}, {pipeline_mode = #tpu.pipeline_mode<synchronous>, transform_indices = @transform_5, window_bounds = array<i64: 32, 128>}, {pipeline_mode = #tpu.pipeline_mode<synchronous>, transform_indices = @transform_6, window_bounds = array<i64: 1, 128>}, {transform_indices = @transform_7, window_bounds = array<i64: 1, 256, 128>}]} {
    %c0 = arith.constant 0 : index
    %c0_0 = arith.constant 0 : index
    %c0_1 = arith.constant 0 : index
    %0 = vector.load %arg1[%c0, %c0_0, %c0_1] : memref<1x256x128xf32, #tpu.memory_space<vmem>>, vector<1x256x128xf32>
    %1 = vector.shape_cast %0 : vector<1x256x128xf32> to vector<256x128xf32>
    %2 = arith.truncf %1 : vector<256x128xf32> to vector<256x128xbf16>
    %c0_2 = arith.constant 0 : index
    %c0_3 = arith.constant 0 : index
    %3 = vector.load %arg2[%c0_2, %c0_3] : memref<128x32xbf16, #tpu.memory_space<vmem>>, vector<128x32xbf16>
    %cst = arith.constant dense<0.000000e+00> : vector<256x32xf32>
    %4 = tpu.matmul %2, %3, %cst {dimension_numbers = #tpu.dot_dimension_numbers<[1], [0], [0], [1], [0, 0, 1, 1], [], []>} : vector<256x128xbf16>, vector<128x32xbf16>, vector<256x32xf32> -> vector<256x32xf32>
    %c0_4 = arith.constant 0 : index
    %c0_5 = arith.constant 0 : index
    %5 = vector.load %arg3[%c0_4, %c0_5] : memref<1x32xf32, #tpu.memory_space<vmem>>, vector<1x32xf32>
    %6 = vector.broadcast %5 : vector<1x32xf32> to vector<256x32xf32>
    %7 = arith.addf %4, %6 : vector<256x32xf32>
    %cst_6 = arith.constant 0.000000e+00 : f32
    %8 = vector.broadcast %cst_6 : f32 to vector<256x32xf32>
    %9 = arith.maximumf %7, %8 : vector<256x32xf32>
    %cst_7 = arith.constant 0.000000e+00 : f32
    %10 = vector.broadcast %cst_7 : f32 to vector<304x32xf32>
    %c0_8 = arith.constant 0 : index
    %c0_9 = arith.constant 0 : index
    %11 = vector.load %arg9[%c0_8, %c0_9] : memref<304x32xf32, #tpu.memory_space<vmem>>, vector<304x32xf32>
    tpu.vector_store %arg9[%c0_8, %c0_9], %10 {strides = array<i32>} : memref<304x32xf32, #tpu.memory_space<vmem>>, vector<304x32xf32>,
    %c24 = arith.constant 24 : index
    %c0_10 = arith.constant 0 : index
    %12 = vector.load %arg9[%c24, %c0_10] : memref<304x32xf32, #tpu.memory_space<vmem>>, vector<256x32xf32>
    tpu.vector_store %arg9[%c24, %c0_10], %9 {strides = array<i32>} : memref<304x32xf32, #tpu.memory_space<vmem>>, vector<256x32xf32>,
    %13 = tpu.iota {dimensions = array<i32: 0>} : vector<256x32xi32>
    %c16_i32 = arith.constant 16 : i32
    %c0_i32 = arith.constant 0 : i32
    %14 = arith.cmpi eq, %c16_i32, %c0_i32 : i32
    %c1_i32 = arith.constant 1 : i32
    %15 = arith.select %14, %c1_i32, %c16_i32 : i32
    %16 = vector.broadcast %15 : i32 to vector<256x32xi32>
    %17 = arith.remsi %13, %16 : vector<256x32xi32>
    %c0_i32_11 = arith.constant 0 : i32
    %18 = vector.broadcast %c0_i32_11 : i32 to vector<256x32xi32>
    %19 = arith.cmpi ne, %17, %18 : vector<256x32xi32>
    %c0_i32_12 = arith.constant 0 : i32
    %20 = vector.broadcast %c0_i32_12 : i32 to vector<256x32xi32>
    %21 = arith.cmpi slt, %17, %20 : vector<256x32xi32>
    %c0_i32_13 = arith.constant 0 : i32
    %22 = arith.cmpi slt, %15, %c0_i32_13 : i32
    %23 = vector.broadcast %22 : i1 to vector<256x32xi1>
    %24 = vector.broadcast %23 : vector<256x32xi1> to vector<256x32xi1>
    %25 = arith.xori %21, %24 : vector<256x32xi1>
    %26 = arith.andi %25, %19 : vector<256x32xi1>
    %27 = vector.broadcast %15 : i32 to vector<256x32xi32>
    %28 = arith.addi %17, %27 : vector<256x32xi32>
    %29 = arith.select %26, %28, %17 : vector<256x32xi1>, vector<256x32xi32>
    %c0_i32_14 = arith.constant 0 : i32
    %30 = vector.broadcast %c0_i32_14 : i32 to vector<256x32xi32>
    %31 = arith.cmpi ne, %29, %30 : vector<256x32xi32>
    %c15_i32 = arith.constant 15 : i32
    %32 = vector.broadcast %c15_i32 : i32 to vector<256x32xi32>
    %33 = arith.cmpi ne, %29, %32 : vector<256x32xi32>
    %cst_15 = arith.constant 0.000000e+00 : f32
    %34 = vector.broadcast %cst_15 : f32 to vector<256x32xf32>
    %c7 = arith.constant 7 : index
    %c0_16 = arith.constant 0 : index
    %35 = vector.load %arg9[%c7, %c0_16] : memref<304x32xf32, #tpu.memory_space<vmem>>, vector<256x32xf32>
    %cst_17 = arith.constant 0.000000e+00 : f32
    %36 = vector.broadcast %cst_17 : f32 to vector<256x32xf32>
    %37 = arith.select %31, %35, %36 : vector<256x32xi1>, vector<256x32xf32>
    %38 = arith.truncf %37 : vector<256x32xf32> to vector<256x32xbf16>
    %c0_18 = arith.constant 0 : index
    %c0_19 = arith.constant 0 : index
    %c0_20 = arith.constant 0 : index
    %39 = vector.load %arg4[%c0_18, %c0_19, %c0_20] : memref<9x32x32xbf16, #tpu.memory_space<vmem>>, vector<1x32x32xbf16>
    %40 = vector.shape_cast %39 : vector<1x32x32xbf16> to vector<32x32xbf16>
    %cst_21 = arith.constant dense<0.000000e+00> : vector<256x32xf32>
    %41 = tpu.matmul %38, %40, %cst_21 {dimension_numbers = #tpu.dot_dimension_numbers<[1], [0], [0], [1], [0, 0, 1, 1], [], []>} : vector<256x32xbf16>, vector<32x32xbf16>, vector<256x32xf32> -> vector<256x32xf32>
    %42 = arith.addf %34, %41 : vector<256x32xf32>
    %c8 = arith.constant 8 : index
    %c0_22 = arith.constant 0 : index
    %43 = vector.load %arg9[%c8, %c0_22] : memref<304x32xf32, #tpu.memory_space<vmem>>, vector<256x32xf32>
    %44 = arith.truncf %43 : vector<256x32xf32> to vector<256x32xbf16>
    %c1 = arith.constant 1 : index
    %c0_23 = arith.constant 0 : index
    %c0_24 = arith.constant 0 : index
    %45 = vector.load %arg4[%c1, %c0_23, %c0_24] : memref<9x32x32xbf16, #tpu.memory_space<vmem>>, vector<1x32x32xbf16>
    %46 = vector.shape_cast %45 : vector<1x32x32xbf16> to vector<32x32xbf16>
    %cst_25 = arith.constant dense<0.000000e+00> : vector<256x32xf32>
    %47 = tpu.matmul %44, %46, %cst_25 {dimension_numbers = #tpu.dot_dimension_numbers<[1], [0], [0], [1], [0, 0, 1, 1], [], []>} : vector<256x32xbf16>, vector<32x32xbf16>, vector<256x32xf32> -> vector<256x32xf32>
    %48 = arith.addf %42, %47 : vector<256x32xf32>
    %c9 = arith.constant 9 : index
    %c0_26 = arith.constant 0 : index
    %49 = vector.load %arg9[%c9, %c0_26] : memref<304x32xf32, #tpu.memory_space<vmem>>, vector<256x32xf32>
    %cst_27 = arith.constant 0.000000e+00 : f32
    %50 = vector.broadcast %cst_27 : f32 to vector<256x32xf32>
    %51 = arith.select %33, %49, %50 : vector<256x32xi1>, vector<256x32xf32>
    %52 = arith.truncf %51 : vector<256x32xf32> to vector<256x32xbf16>
    %c2 = arith.constant 2 : index
    %c0_28 = arith.constant 0 : index
    %c0_29 = arith.constant 0 : index
    %53 = vector.load %arg4[%c2, %c0_28, %c0_29] : memref<9x32x32xbf16, #tpu.memory_space<vmem>>, vector<1x32x32xbf16>
    %54 = vector.shape_cast %53 : vector<1x32x32xbf16> to vector<32x32xbf16>
    %cst_30 = arith.constant dense<0.000000e+00> : vector<256x32xf32>
    %55 = tpu.matmul %52, %54, %cst_30 {dimension_numbers = #tpu.dot_dimension_numbers<[1], [0], [0], [1], [0, 0, 1, 1], [], []>} : vector<256x32xbf16>, vector<32x32xbf16>, vector<256x32xf32> -> vector<256x32xf32>
    %56 = arith.addf %48, %55 : vector<256x32xf32>
    %c23 = arith.constant 23 : index
    %c0_31 = arith.constant 0 : index
    %57 = vector.load %arg9[%c23, %c0_31] : memref<304x32xf32, #tpu.memory_space<vmem>>, vector<256x32xf32>
    %cst_32 = arith.constant 0.000000e+00 : f32
    %58 = vector.broadcast %cst_32 : f32 to vector<256x32xf32>
    %59 = arith.select %31, %57, %58 : vector<256x32xi1>, vector<256x32xf32>
    %60 = arith.truncf %59 : vector<256x32xf32> to vector<256x32xbf16>
    %c3 = arith.constant 3 : index
    %c0_33 = arith.constant 0 : index
    %c0_34 = arith.constant 0 : index
    %61 = vector.load %arg4[%c3, %c0_33, %c0_34] : memref<9x32x32xbf16, #tpu.memory_space<vmem>>, vector<1x32x32xbf16>
    %62 = vector.shape_cast %61 : vector<1x32x32xbf16> to vector<32x32xbf16>
    %cst_35 = arith.constant dense<0.000000e+00> : vector<256x32xf32>
    %63 = tpu.matmul %60, %62, %cst_35 {dimension_numbers = #tpu.dot_dimension_numbers<[1], [0], [0], [1], [0, 0, 1, 1], [], []>} : vector<256x32xbf16>, vector<32x32xbf16>, vector<256x32xf32> -> vector<256x32xf32>
    %64 = arith.addf %56, %63 : vector<256x32xf32>
    %c24_36 = arith.constant 24 : index
    %c0_37 = arith.constant 0 : index
    %65 = vector.load %arg9[%c24_36, %c0_37] : memref<304x32xf32, #tpu.memory_space<vmem>>, vector<256x32xf32>
    %66 = arith.truncf %65 : vector<256x32xf32> to vector<256x32xbf16>
    %c4 = arith.constant 4 : index
    %c0_38 = arith.constant 0 : index
    %c0_39 = arith.constant 0 : index
    %67 = vector.load %arg4[%c4, %c0_38, %c0_39] : memref<9x32x32xbf16, #tpu.memory_space<vmem>>, vector<1x32x32xbf16>
    %68 = vector.shape_cast %67 : vector<1x32x32xbf16> to vector<32x32xbf16>
    %cst_40 = arith.constant dense<0.000000e+00> : vector<256x32xf32>
    %69 = tpu.matmul %66, %68, %cst_40 {dimension_numbers = #tpu.dot_dimension_numbers<[1], [0], [0], [1], [0, 0, 1, 1], [], []>} : vector<256x32xbf16>, vector<32x32xbf16>, vector<256x32xf32> -> vector<256x32xf32>
    %70 = arith.addf %64, %69 : vector<256x32xf32>
    %c25 = arith.constant 25 : index
    %c0_41 = arith.constant 0 : index
    %71 = vector.load %arg9[%c25, %c0_41] : memref<304x32xf32, #tpu.memory_space<vmem>>, vector<256x32xf32>
    %cst_42 = arith.constant 0.000000e+00 : f32
    %72 = vector.broadcast %cst_42 : f32 to vector<256x32xf32>
    %73 = arith.select %33, %71, %72 : vector<256x32xi1>, vector<256x32xf32>
    %74 = arith.truncf %73 : vector<256x32xf32> to vector<256x32xbf16>
    %c5 = arith.constant 5 : index
    %c0_43 = arith.constant 0 : index
    %c0_44 = arith.constant 0 : index
    %75 = vector.load %arg4[%c5, %c0_43, %c0_44] : memref<9x32x32xbf16, #tpu.memory_space<vmem>>, vector<1x32x32xbf16>
    %76 = vector.shape_cast %75 : vector<1x32x32xbf16> to vector<32x32xbf16>
    %cst_45 = arith.constant dense<0.000000e+00> : vector<256x32xf32>
    %77 = tpu.matmul %74, %76, %cst_45 {dimension_numbers = #tpu.dot_dimension_numbers<[1], [0], [0], [1], [0, 0, 1, 1], [], []>} : vector<256x32xbf16>, vector<32x32xbf16>, vector<256x32xf32> -> vector<256x32xf32>
    %78 = arith.addf %70, %77 : vector<256x32xf32>
    %c39 = arith.constant 39 : index
    %c0_46 = arith.constant 0 : index
    %79 = vector.load %arg9[%c39, %c0_46] : memref<304x32xf32, #tpu.memory_space<vmem>>, vector<256x32xf32>
    %cst_47 = arith.constant 0.000000e+00 : f32
    %80 = vector.broadcast %cst_47 : f32 to vector<256x32xf32>
    %81 = arith.select %31, %79, %80 : vector<256x32xi1>, vector<256x32xf32>
    %82 = arith.truncf %81 : vector<256x32xf32> to vector<256x32xbf16>
    %c6 = arith.constant 6 : index
    %c0_48 = arith.constant 0 : index
    %c0_49 = arith.constant 0 : index
    %83 = vector.load %arg4[%c6, %c0_48, %c0_49] : memref<9x32x32xbf16, #tpu.memory_space<vmem>>, vector<1x32x32xbf16>
    %84 = vector.shape_cast %83 : vector<1x32x32xbf16> to vector<32x32xbf16>
    %cst_50 = arith.constant dense<0.000000e+00> : vector<256x32xf32>
    %85 = tpu.matmul %82, %84, %cst_50 {dimension_numbers = #tpu.dot_dimension_numbers<[1], [0], [0], [1], [0, 0, 1, 1], [], []>} : vector<256x32xbf16>, vector<32x32xbf16>, vector<256x32xf32> -> vector<256x32xf32>
    %86 = arith.addf %78, %85 : vector<256x32xf32>
    %c40 = arith.constant 40 : index
    %c0_51 = arith.constant 0 : index
    %87 = vector.load %arg9[%c40, %c0_51] : memref<304x32xf32, #tpu.memory_space<vmem>>, vector<256x32xf32>
    %88 = arith.truncf %87 : vector<256x32xf32> to vector<256x32xbf16>
    %c7_52 = arith.constant 7 : index
    %c0_53 = arith.constant 0 : index
    %c0_54 = arith.constant 0 : index
    %89 = vector.load %arg4[%c7_52, %c0_53, %c0_54] : memref<9x32x32xbf16, #tpu.memory_space<vmem>>, vector<1x32x32xbf16>
    %90 = vector.shape_cast %89 : vector<1x32x32xbf16> to vector<32x32xbf16>
    %cst_55 = arith.constant dense<0.000000e+00> : vector<256x32xf32>
    %91 = tpu.matmul %88, %90, %cst_55 {dimension_numbers = #tpu.dot_dimension_numbers<[1], [0], [0], [1], [0, 0, 1, 1], [], []>} : vector<256x32xbf16>, vector<32x32xbf16>, vector<256x32xf32> -> vector<256x32xf32>
    %92 = arith.addf %86, %91 : vector<256x32xf32>
    %c41 = arith.constant 41 : index
    %c0_56 = arith.constant 0 : index
    %93 = vector.load %arg9[%c41, %c0_56] : memref<304x32xf32, #tpu.memory_space<vmem>>, vector<256x32xf32>
    %cst_57 = arith.constant 0.000000e+00 : f32
    %94 = vector.broadcast %cst_57 : f32 to vector<256x32xf32>
    %95 = arith.select %33, %93, %94 : vector<256x32xi1>, vector<256x32xf32>
    %96 = arith.truncf %95 : vector<256x32xf32> to vector<256x32xbf16>
    %c8_58 = arith.constant 8 : index
    %c0_59 = arith.constant 0 : index
    %c0_60 = arith.constant 0 : index
    %97 = vector.load %arg4[%c8_58, %c0_59, %c0_60] : memref<9x32x32xbf16, #tpu.memory_space<vmem>>, vector<1x32x32xbf16>
    %98 = vector.shape_cast %97 : vector<1x32x32xbf16> to vector<32x32xbf16>
    %cst_61 = arith.constant dense<0.000000e+00> : vector<256x32xf32>
    %99 = tpu.matmul %96, %98, %cst_61 {dimension_numbers = #tpu.dot_dimension_numbers<[1], [0], [0], [1], [0, 0, 1, 1], [], []>} : vector<256x32xbf16>, vector<32x32xbf16>, vector<256x32xf32> -> vector<256x32xf32>
    %100 = arith.addf %92, %99 : vector<256x32xf32>
    %c0_62 = arith.constant 0 : index
    %c0_63 = arith.constant 0 : index
    %101 = vector.load %arg5[%c0_62, %c0_63] : memref<1x32xf32, #tpu.memory_space<vmem>>, vector<1x32xf32>
    %102 = vector.broadcast %101 : vector<1x32xf32> to vector<256x32xf32>
    %103 = arith.addf %100, %102 : vector<256x32xf32>
    %cst_64 = arith.constant 0.000000e+00 : f32
    %104 = vector.broadcast %cst_64 : f32 to vector<256x32xf32>
    %105 = arith.maximumf %103, %104 : vector<256x32xf32>
    %106 = arith.truncf %105 : vector<256x32xf32> to vector<256x32xbf16>
    %c0_65 = arith.constant 0 : index
    %c0_66 = arith.constant 0 : index
    %107 = vector.load %arg6[%c0_65, %c0_66] : memref<32x128xbf16, #tpu.memory_space<vmem>>, vector<32x128xbf16>
    %cst_67 = arith.constant dense<0.000000e+00> : vector<256x128xf32>
    %108 = tpu.matmul %106, %107, %cst_67 {dimension_numbers = #tpu.dot_dimension_numbers<[1], [0], [0], [1], [0, 0, 1, 1], [], []>} : vector<256x32xbf16>, vector<32x128xbf16>, vector<256x128xf32> -> vector<256x128xf32>
    %c0_68 = arith.constant 0 : index
    %c0_69 = arith.constant 0 : index
    %109 = vector.load %arg7[%c0_68, %c0_69] : memref<1x128xf32, #tpu.memory_space<vmem>>, vector<1x128xf32>
    %110 = vector.broadcast %109 : vector<1x128xf32> to vector<256x128xf32>
    %111 = arith.addf %108, %110 : vector<256x128xf32>
    %112 = arith.addf %111, %1 : vector<256x128xf32>
    %cst_70 = arith.constant 0.000000e+00 : f32
    %113 = vector.broadcast %cst_70 : f32 to vector<256x128xf32>
    %114 = arith.maximumf %112, %113 : vector<256x128xf32>
    %c0_71 = arith.constant 0 : index
    %c0_72 = arith.constant 0 : index
    %c0_73 = arith.constant 0 : index
    %115 = vector.load %arg8[%c0_71, %c0_72, %c0_73] : memref<1x256x128xf32, #tpu.memory_space<vmem>>, vector<1x256x128xf32>
    %116 = vector.shape_cast %115 : vector<1x256x128xf32> to vector<256x128xf32>
    %117 = vector.shape_cast %114 : vector<256x128xf32> to vector<1x256x128xf32>
    tpu.vector_store %arg8[%c0_71, %c0_72, %c0_73], %117 {strides = array<i32>} : memref<1x256x128xf32, #tpu.memory_space<vmem>>, vector<1x256x128xf32>,
    return
  }
  func.func @transform_0(%arg0: i32) -> (i32, i32, i32) {
    %c0_i32 = arith.constant 0 : i32
    %c0_i32_0 = arith.constant 0 : i32
    %c0_i32_1 = arith.constant 0 : i32
    return %arg0, %c0_i32, %c0_i32_0 : i32, i32, i32
  }
  func.func @transform_1(%arg0: i32) -> (i32, i32) {
    %c0_i32 = arith.constant 0 : i32
    %c0_i32_0 = arith.constant 0 : i32
    %c0_i32_1 = arith.constant 0 : i32
    return %c0_i32, %c0_i32_0 : i32, i32
  }
  func.func @transform_2(%arg0: i32) -> (i32, i32) {
    %c0_i32 = arith.constant 0 : i32
    %c0_i32_0 = arith.constant 0 : i32
    %c0_i32_1 = arith.constant 0 : i32
    return %c0_i32, %c0_i32_0 : i32, i32
  }
  func.func @transform_3(%arg0: i32) -> (i32, i32, i32) {
    %c0_i32 = arith.constant 0 : i32
    %c0_i32_0 = arith.constant 0 : i32
    %c0_i32_1 = arith.constant 0 : i32
    %c0_i32_2 = arith.constant 0 : i32
    return %c0_i32, %c0_i32_0, %c0_i32_1 : i32, i32, i32
  }
  func.func @transform_4(%arg0: i32) -> (i32, i32) {
    %c0_i32 = arith.constant 0 : i32
    %c0_i32_0 = arith.constant 0 : i32
    %c0_i32_1 = arith.constant 0 : i32
    return %c0_i32, %c0_i32_0 : i32, i32
  }
  func.func @transform_5(%arg0: i32) -> (i32, i32) {
    %c0_i32 = arith.constant 0 : i32
    %c0_i32_0 = arith.constant 0 : i32
    %c0_i32_1 = arith.constant 0 : i32
    return %c0_i32, %c0_i32_0 : i32, i32
  }
  func.func @transform_6(%arg0: i32) -> (i32, i32) {
    %c0_i32 = arith.constant 0 : i32
    %c0_i32_0 = arith.constant 0 : i32
    %c0_i32_1 = arith.constant 0 : i32
    return %c0_i32, %c0_i32_0 : i32, i32
  }
  func.func @transform_7(%arg0: i32) -> (i32, i32, i32) {
    %c0_i32 = arith.constant 0 : i32
    %c0_i32_0 = arith.constant 0 : i32
    %c0_i32_1 = arith.constant 0 : i32
    return %arg0, %c0_i32, %c0_i32_0 : i32, i32, i32
  }
}

</mosaic_0001>

<llo_original>
// kernel: bottleneck_forward.1
$region0: #{bottleneck_forward.1}
  #allocation0 [shape = 'u32[]', space=smem, size = 0x4, offset = 0x4, fixed_abs, tag = 'smem constant byte address 0x4 - core index']
  #allocation1 [shape = 'u32[144,128]{1,0:T(1,128)}', space=vmem, size = 0x12000, scoped, tag = 'internal scratch']
  #allocation2 [shape = 'f32[304,32]{1,0:T(8,128)}', space=vmem, size = 0x26000, scoped, tag = 'scratch operand']
  %s0 = inlined_call_operand.hbm [shape: f32[2,256,128], index: 0, kind: input, shape index: {}]
  %s1 = inlined_call_operand.vmem [shape: bf16[128,32], index: 1, kind: input, shape index: {}]
  %s2 = inlined_call_operand.vmem [shape: f32[1,32], index: 2, kind: input, shape index: {}]
  %s3 = inlined_call_operand.hbm [shape: bf16[9,32,32], index: 3, kind: input, shape index: {}]
  %s4 = inlined_call_operand.vmem [shape: f32[1,32], index: 4, kind: input, shape index: {}]
  %s5 = inlined_call_operand.vmem [shape: bf16[32,128], index: 5, kind: input, shape index: {}]
  %s6 = inlined_call_operand.vmem [shape: f32[1,128], index: 6, kind: input, shape index: {}]
  %s7 = inlined_call_operand.hbm [shape: f32[2,256,128], index: 7, kind: output, shape index: {}]
  %s8 = sld [smem:[#allocation0]]
  $region69: #{bottleneck_forward.1} parent=0
    _
  %s10 = ssub.s32 1, %s8
  %s11 = scalar_select 0, %s10, %s8
  $region1: #{bottleneck_forward.1} parent=0
    #allocation3 [shape = 'u8[262144]{0}', space=vmem, size = 0x40000, scoped, tag = 'input window, operand 0']
    #allocation4 [shape = 's32[2]{0}', space=sflag, size = 0x8, scoped, tag = 'scoped memory for bottleneck_forward.1']
    #allocation5 [shape = 's32[2]{0}', space=sflag, size = 0x8, scoped, tag = 'scoped memory for bottleneck_forward.1']
    #allocation6 [shape = 'u8[73728]{0}', space=vmem, size = 0x12000, scoped, tag = 'input window, operand 3, single buffered']
    #allocation7 [shape = 's32[1]{0}', space=sflag, size = 0x4, scoped, tag = 'scoped memory for bottleneck_forward.1']
    #allocation8 [shape = 'u8[262144]{0}', space=vmem, size = 0x40000, scoped, tag = 'output window, operand 0']
    %12 = vsyncpa [#allocation4], 0
    %s13 = scalar_lea.sflag [#allocation4], 1
    %14 = vsyncpa %s13, 0
    %15 = vsyncpa [#allocation7], 0
    %16 = vsyncpa [#allocation5], 0
    %s17 = scalar_lea.sflag [#allocation5], 1
    %18 = vsyncpa %s17, 0
    loop: start=0, step=1, limit=4
    $region2: #{bottleneck_forward.1} parent=1 // loop_pre_header
      _
    $region3: #{bottleneck_forward.1} parent=1 // loop_header
      %s20 = sphi 0, %s24
      %p21 = scmp.ge.s32.totalorder %s20, 4
      %s30 = sphi 0, %s32
      %s33 = sphi 0, %s30
      %s34 = sphi 0, %s33
      %s50 = sphi 0, %s34
      %s54 = sphi 0, %s54
      %s56 = sphi 0, %s54
      %s57 = sphi 0, %s56
      %s71 = sphi 0, %s57
      %s75 = sphi 0, %s75
      %s77 = sphi 0, %s75
      %s78 = sphi 0, %s77
      %s92 = sphi 0, %s78
      %s96 = sphi 0, %s96
      %s98 = sphi 0, %s96
      %s99 = sphi 0, %s98
      %s113 = sphi 0, %s99
      %s117 = sphi 0, %s117
      %s119 = sphi 0, %s117
      %s120 = sphi 0, %s119
      %s134 = sphi 0, %s120
      %s138 = sphi 0, %s138
      %s140 = sphi 0, %s138
      %s141 = sphi 0, %s140
      %s155 = sphi 0, %s141
      %s159 = sphi 0, %s159
      %s161 = sphi 0, %s159
      %s162 = sphi 0, %s161
      %s176 = sphi 0, %s162
      %s182 = sphi 0, %s184
      %s185 = sphi 0, %s182
      %s186 = sphi 0, %s185
      %s202 = sphi 0, %s186
    $region4: #{bottleneck_forward.1} parent=1 // loop_header_branch
      %23 = sbr.rel (%p21) target = $region8
    $region5: #{bottleneck_forward.1} parent=1 // loop_body
      %s25 = ssub.s32 %s20, 1
      %s26 = ssub.s32 %s20, 2
      %s27 = sadd.s32 %s20, 1
      %s28 = ssub.s32 %s20, %s27
      %p29 = scmp.eq.s32.totalorder %s28, 0
      %s31 = sadd.s32 %s30, 1
      %s32 = scalar_select %p29, %s30, %s31
      %p35 = pneg %p29
      %p36 = scmp.eq.s32.totalorder %s20, 1
      %p37 = por %p35, %p36
      %p38 = scmp.ne.s32.totalorder %s30, %s33
      %p39 = scmp.eq.s32.totalorder %s20, 0
      %p40 = por %p38, %p39
      %p41 = scmp.ne.s32.totalorder %s30, %s33
      %p42 = scmp.eq.s32.totalorder %s25, 1
      %p43 = por %p41, %p42
      %p44 = scmp.ne.s32.totalorder %s33, %s34
      %p45 = scmp.eq.s32.totalorder %s25, 0
      %p46 = por %p44, %p45
      %p47 = scmp.ne.s32.totalorder %s33, %s34
      %p48 = scmp.eq.s32.totalorder %s26, 1
      %p49 = por %p47, %p48
      %p51 = scmp.ne.s32.totalorder %s34, %s50
      %p52 = scmp.eq.s32.totalorder %s26, 0
      %p53 = por %p51, %p52
      %s55 = sadd.s32 %s54, 1
      %p58 = scmp.eq.s32.totalorder %s20, 1
      %p59 = scmp.ne.s32.totalorder %s54, %s56
      %p60 = scmp.eq.s32.totalorder %s20, 0
      %p61 = por %p59, %p60
      %p62 = scmp.ne.s32.totalorder %s54, %s56
      %p63 = scmp.eq.s32.totalorder %s25, 1
      %p64 = por %p62, %p63
      %p65 = scmp.ne.s32.totalorder %s56, %s57
      %p66 = scmp.eq.s32.totalorder %s25, 0
      %p67 = por %p65, %p66
      %p68 = scmp.ne.s32.totalorder %s56, %s57
      %p69 = scmp.eq.s32.totalorder %s26, 1
      %p70 = por %p68, %p69
      %p72 = scmp.ne.s32.totalorder %s57, %s71
      %p73 = scmp.eq.s32.totalorder %s26, 0
      %p74 = por %p72, %p73
      %s76 = sadd.s32 %s75, 1
      %p79 = scmp.eq.s32.totalorder %s20, 1
      %p80 = scmp.ne.s32.totalorder %s75, %s77
      %p81 = scmp.eq.s32.totalorder %s20, 0
      %p82 = por %p80, %p81
      %p83 = scmp.ne.s32.totalorder %s75, %s77
      %p84 = scmp.eq.s32.totalorder %s25, 1
      %p85 = por %p83, %p84
      %p86 = scmp.ne.s32.totalorder %s77, %s78
      %p87 = scmp.eq.s32.totalorder %s25, 0
      %p88 = por %p86, %p87
      %p89 = scmp.ne.s32.totalorder %s77, %s78
      %p90 = scmp.eq.s32.totalorder %s26, 1
      %p91 = por %p89, %p90
      %p93 = scmp.ne.s32.totalorder %s78, %s92
      %p94 = scmp.eq.s32.totalorder %s26, 0
      %p95 = por %p93, %p94
      %s97 = sadd.s32 %s96, 1
      %p100 = scmp.eq.s32.totalorder %s20, 1
      %p101 = scmp.ne.s32.totalorder %s96, %s98
      %p102 = scmp.eq.s32.totalorder %s20, 0
      %p103 = por %p101, %p102
      %p104 = scmp.ne.s32.totalorder %s96, %s98
      %p105 = scmp.eq.s32.totalorder %s25, 1
      %p106 = por %p104, %p105
      %p107 = scmp.ne.s32.totalorder %s98, %s99
      %p108 = scmp.eq.s32.totalorder %s25, 0
      %p109 = por %p107, %p108
      %p110 = scmp.ne.s32.totalorder %s98, %s99
      %p111 = scmp.eq.s32.totalorder %s26, 1
      %p112 = por %p110, %p111
      %p114 = scmp.ne.s32.totalorder %s99, %s113
      %p115 = scmp.eq.s32.totalorder %s26, 0
      %p116 = por %p114, %p115
      %s118 = sadd.s32 %s117, 1
      %p121 = scmp.eq.s32.totalorder %s20, 1
      %p122 = scmp.ne.s32.totalorder %s117, %s119
      %p123 = scmp.eq.s32.totalorder %s20, 0
      %p124 = por %p122, %p123
      %p125 = scmp.ne.s32.totalorder %s117, %s119
      %p126 = scmp.eq.s32.totalorder %s25, 1
      %p127 = por %p125, %p126
      %p128 = scmp.ne.s32.totalorder %s119, %s120
      %p129 = scmp.eq.s32.totalorder %s25, 0
      %p130 = por %p128, %p129
      %p131 = scmp.ne.s32.totalorder %s119, %s120
      %p132 = scmp.eq.s32.totalorder %s26, 1
      %p133 = por %p131, %p132
      %p135 = scmp.ne.s32.totalorder %s120, %s134
      %p136 = scmp.eq.s32.totalorder %s26, 0
      %p137 = por %p135, %p136
      %s139 = sadd.s32 %s138, 1
      %p142 = scmp.eq.s32.totalorder %s20, 1
      %p143 = scmp.ne.s32.totalorder %s138, %s140
      %p144 = scmp.eq.s32.totalorder %s20, 0
      %p145 = por %p143, %p144
      %p146 = scmp.ne.s32.totalorder %s138, %s140
      %p147 = scmp.eq.s32.totalorder %s25, 1
      %p148 = por %p146, %p147
      %p149 = scmp.ne.s32.totalorder %s140, %s141
      %p150 = scmp.eq.s32.totalorder %s25, 0
      %p151 = por %p149, %p150
      %p152 = scmp.ne.s32.totalorder %s140, %s141
      %p153 = scmp.eq.s32.totalorder %s26, 1
      %p154 = por %p152, %p153
      %p156 = scmp.ne.s32.totalorder %s141, %s155
      %p157 = scmp.eq.s32.totalorder %s26, 0
      %p158 = por %p156, %p157
      %s160 = sadd.s32 %s159, 1
      %p163 = scmp.eq.s32.totalorder %s20, 1
      %p164 = scmp.ne.s32.totalorder %s159, %s161
      %p165 = scmp.eq.s32.totalorder %s20, 0
      %p166 = por %p164, %p165
      %p167 = scmp.ne.s32.totalorder %s159, %s161
      %p168 = scmp.eq.s32.totalorder %s25, 1
      %p169 = por %p167, %p168
      %p170 = scmp.ne.s32.totalorder %s161, %s162
      %p171 = scmp.eq.s32.totalorder %s25, 0
      %p172 = por %p170, %p171
      %p173 = scmp.ne.s32.totalorder %s161, %s162
      %p174 = scmp.eq.s32.totalorder %s26, 1
      %p175 = por %p173, %p174
      %p177 = scmp.ne.s32.totalorder %s162, %s176
      %p178 = scmp.eq.s32.totalorder %s26, 0
      %p179 = por %p177, %p178
      %s180 = ssub.s32 %s20, %s27
      %p181 = scmp.eq.s32.totalorder %s180, 0
      %s183 = sadd.s32 %s182, 1
      %s184 = scalar_select %p181, %s182, %s183
      %p187 = pneg %p181
      %p188 = scmp.eq.s32.totalorder %s20, 1
      %p189 = por %p187, %p188
      %p190 = scmp.ne.s32.totalorder %s182, %s185
      %p191 = scmp.eq.s32.totalorder %s20, 0
      %p192 = por %p190, %p191
      %p193 = scmp.ne.s32.totalorder %s182, %s185
      %p194 = scmp.eq.s32.totalorder %s25, 1
      %p195 = por %p193, %p194
      %p196 = scmp.ne.s32.totalorder %s185, %s186
      %p197 = scmp.eq.s32.totalorder %s25, 0
      %p198 = por %p196, %p197
      %p199 = scmp.ne.s32.totalorder %s185, %s186
      %p200 = scmp.eq.s32.totalorder %s26, 1
      %p201 = por %p199, %p200
      %p203 = scmp.ne.s32.totalorder %s186, %s202
      %p204 = scmp.eq.s32.totalorder %s26, 0
      %p205 = por %p203, %p204
      %p206 = scmp.le.s32.totalorder 1, %s20
      %p207 = scmp.lt.s32.totalorder %s20, 3
      %p208 = pnand %p206, %p207
      %p209 = pneg %p208
      // Predicated region
      $region9: #{bottleneck_forward.1} parent=5 // pred_check
        _
      $region10: #{bottleneck_forward.1} parent=5 // pred_check_branch
        %211 = sbr.rel (%p208) target = $region12
      $region11: #{bottleneck_forward.1} parent=5 // pred_region
        %s212 = ssub.s32 %s20, 1
        // Predicated region
        $region13: #{bottleneck_forward.1} parent=11 // pred_check
          %p213 = pneg %p67
        $region14: #{bottleneck_forward.1} parent=11 // pred_check_branch
          %215 = sbr.rel (%p213) target = $region16
        $region15: #{bottleneck_forward.1} parent=11 // pred_region
          _
        $region16: #{bottleneck_forward.1} parent=11 // pred_fallthru
          _
        // Predicated region
        $region17: #{bottleneck_forward.1} parent=11 // pred_check
          %p216 = pneg %p88
        $region18: #{bottleneck_forward.1} parent=11 // pred_check_branch
          %218 = sbr.rel (%p216) target = $region20
        $region19: #{bottleneck_forward.1} parent=11 // pred_region
          _
        $region20: #{bottleneck_forward.1} parent=11 // pred_fallthru
          _
        // Predicated region
        $region21: #{bottleneck_forward.1} parent=11 // pred_check
          %p219 = pneg %p109
        $region22: #{bottleneck_forward.1} parent=11 // pred_check_branch
          %221 = sbr.rel (%p219) target = $region24
        $region23: #{bottleneck_forward.1} parent=11 // pred_region
          %s223 = ssub.s32 2304, 2304
          %224 = vsyncadd [#allocation7], %s223
          %s225 = sshll.u32 [#allocation6], 4
          %s226 = int_to_ptr.vmem [resolvable:$true] %s225
          %231 = dma.hbm_to_vmem [thread:$0]  %s3, 2304, %s226, [#allocation7], 64, 64, 4
        $region24: #{bottleneck_forward.1} parent=11 // pred_fallthru
          _
        // Predicated region
        $region25: #{bottleneck_forward.1} parent=11 // pred_check
          %p232 = pneg %p130
        $region26: #{bottleneck_forward.1} parent=11 // pred_check_branch
          %234 = sbr.rel (%p232) target = $region28
        $region27: #{bottleneck_forward.1} parent=11 // pred_region
          _
        $region28: #{bottleneck_forward.1} parent=11 // pred_fallthru
          _
        // Predicated region
        $region29: #{bottleneck_forward.1} parent=11 // pred_check
          %p235 = pneg %p151
        $region30: #{bottleneck_forward.1} parent=11 // pred_check_branch
          %237 = sbr.rel (%p235) target = $region32
        $region31: #{bottleneck_forward.1} parent=11 // pred_region
          _
        $region32: #{bottleneck_forward.1} parent=11 // pred_fallthru
          _
        // Predicated region
        $region33: #{bottleneck_forward.1} parent=11 // pred_check
          %p238 = pneg %p172
        $region34: #{bottleneck_forward.1} parent=11 // pred_check_branch
          %240 = sbr.rel (%p238) target = $region36
        $region35: #{bottleneck_forward.1} parent=11 // pred_region
          _
        $region36: #{bottleneck_forward.1} parent=11 // pred_fallthru
          _
      $region12: #{bottleneck_forward.1} parent=5 // pred_fallthru
        _
      %p241 = scmp.lt.s32.totalorder %s20, 2
      // Predicated region
      $region37: #{bottleneck_forward.1} parent=5 // pred_check
        %p242 = pneg %p241
      $region38: #{bottleneck_forward.1} parent=5 // pred_check_branch
        %244 = sbr.rel (%p242) target = $region40
      $region39: #{bottleneck_forward.1} parent=5 // pred_region
        // Predicated region
        $region41: #{bottleneck_forward.1} parent=39 // pred_check
          %p245 = pneg %p40
        $region42: #{bottleneck_forward.1} parent=39 // pred_check_branch
          %247 = sbr.rel (%p245) target = $region44
        $region43: #{bottleneck_forward.1} parent=39 // pred_region
          %s248 = sand.u32 %s30, 1
          %s249 = scalar_lea.sflag [#allocation4], %s248
          %s250 = sand.u32 %s30, 1
          %s251 = smul.addr %s250, 256
          %s252 = scalar_lea.vmem [#allocation3], %s251
          %s254 = ssub.s32 4096, 4096
          %255 = vsyncadd %s249, %s254
          %s256 = smul.addr %s20, 32
          %s257 = smul.addr %s256, 128
          %s258 = scalar_lea.hbm %s0, %s257
          %s259 = sshll.u32 %s252, 4
          %s260 = int_to_ptr.vmem [resolvable:$true] %s259
          %265 = dma.hbm_to_vmem [thread:$0]  %s258, 4096, %s260, %s249, 128, 128, 8
        $region44: #{bottleneck_forward.1} parent=39 // pred_fallthru
          _
      $region40: #{bottleneck_forward.1} parent=5 // pred_fallthru
        _
      %p266 = scmp.le.s32.totalorder 1, %s20
      %p267 = scmp.lt.s32.totalorder %s20, 3
      %p268 = pnand %p266, %p267
      %p269 = pneg %p268
      // Predicated region
      $region45: #{bottleneck_forward.1} parent=5 // pred_check
        _
      $region46: #{bottleneck_forward.1} parent=5 // pred_check_branch
        %271 = sbr.rel (%p268) target = $region48
      $region47: #{bottleneck_forward.1} parent=5 // pred_region
        %s272 = ssub.s32 %s20, 1
        %s273 = sand.u32 %s33, 1
        %s274 = scalar_lea.sflag [#allocation4], %s273
        %s275 = sand.u32 %s33, 1
        %s276 = smul.addr %s275, 256
        %s277 = scalar_lea.vmem [#allocation3], %s276
        // Predicated region
        $region49: #{bottleneck_forward.1} parent=47 // pred_check
          %p278 = pneg %p46
        $region50: #{bottleneck_forward.1} parent=47 // pred_check_branch
          %280 = sbr.rel (%p278) target = $region52
        $region51: #{bottleneck_forward.1} parent=47 // pred_region
          %281 = dma.done %s274, 4096
        $region52: #{bottleneck_forward.1} parent=47 // pred_fallthru
          _
        // Predicated region
        $region53: #{bottleneck_forward.1} parent=47 // pred_check
          %p282 = pneg %p109
        $region54: #{bottleneck_forward.1} parent=47 // pred_check_branch
          %284 = sbr.rel (%p282) target = $region56
        $region55: #{bottleneck_forward.1} parent=47 // pred_region
          %285 = dma.done [#allocation7], 2304
        $region56: #{bottleneck_forward.1} parent=47 // pred_fallthru
          _
        %s286 = sand.u32 %s33, 1
        %s287 = scalar_lea.sflag [#allocation4], %s286
        %s288 = sand.u32 %s33, 1
        %s289 = smul.addr %s288, 256
        %s290 = scalar_lea.vmem [#allocation3], %s289
        %p291 = pneg %p46
        %p292 = pneg %p43
        %p293 = pneg %p67
        %p294 = pneg %p64
        %p295 = pneg %p88
        %p296 = pneg %p85
        %p297 = pneg %p109
        %p298 = pneg %p106
        %p299 = pneg %p130
        %p300 = pneg %p127
        %p301 = pneg %p151
        %p302 = pneg %p148
        %p303 = pneg %p172
        %p304 = pneg %p169
        %p305 = pneg %p198
        %p306 = pneg %p195
        %s307 = sand.u32 %s185, 1
        %s308 = scalar_lea.sflag [#allocation5], %s307
        %s309 = sand.u32 %s185, 1
        %s310 = smul.addr %s309, 256
        %s311 = scalar_lea.vmem [#allocation8], %s310
        %v313 = vld [vmem:[%s277] sm:$0xff]
        %v314 = vld [vmem:[%s277 + $0x8] sm:$0xff]
        %v315 = vld [vmem:[%s277 + $0x10] sm:$0xff]
        %v316 = vld [vmem:[%s277 + $0x18] sm:$0xff]
        %v317 = vld [vmem:[%s277 + $0x20] sm:$0xff]
        %v318 = vld [vmem:[%s277 + $0x28] sm:$0xff]
        %v319 = vld [vmem:[%s277 + $0x30] sm:$0xff]
        %v320 = vld [vmem:[%s277 + $0x38] sm:$0xff]
        %v321 = vld [vmem:[%s277 + $0x40] sm:$0xff]
        %v322 = vld [vmem:[%s277 + $0x48] sm:$0xff]
        %v323 = vld [vmem:[%s277 + $0x50] sm:$0xff]
        %v324 = vld [vmem:[%s277 + $0x58] sm:$0xff]
        %v325 = vld [vmem:[%s277 + $0x60] sm:$0xff]
        %v326 = vld [vmem:[%s277 + $0x68] sm:$0xff]
        %v327 = vld [vmem:[%s277 + $0x70] sm:$0xff]
        %v328 = vld [vmem:[%s277 + $0x78] sm:$0xff]
        %v329 = vld [vmem:[%s277 + $0x80] sm:$0xff]
        %v330 = vld [vmem:[%s277 + $0x88] sm:$0xff]
        %v331 = vld [vmem:[%s277 + $0x90] sm:$0xff]
        %v332 = vld [vmem:[%s277 + $0x98] sm:$0xff]
        %v333 = vld [vmem:[%s277 + $0xa0] sm:$0xff]
        %v334 = vld [vmem:[%s277 + $0xa8] sm:$0xff]
        %v335 = vld [vmem:[%s277 + $0xb0] sm:$0xff]
        %v336 = vld [vmem:[%s277 + $0xb8] sm:$0xff]
        %v337 = vld [vmem:[%s277 + $0xc0] sm:$0xff]
        %v338 = vld [vmem:[%s277 + $0xc8] sm:$0xff]
        %v339 = vld [vmem:[%s277 + $0xd0] sm:$0xff]
        %v340 = vld [vmem:[%s277 + $0xd8] sm:$0xff]
        %v341 = vld [vmem:[%s277 + $0xe0] sm:$0xff]
        %v342 = vld [vmem:[%s277 + $0xe8] sm:$0xff]
        %v343 = vld [vmem:[%s277 + $0xf0] sm:$0xff]
        %v344 = vld [vmem:[%s277 + $0xf8] sm:$0xff]
        %v345 = vpack.c.bf16 %v314, %v313
        %v346 = vpack.c.bf16 %v316, %v315
        %v347 = vpack.c.bf16 %v318, %v317
        %v348 = vpack.c.bf16 %v320, %v319
        %v349 = vpack.c.bf16 %v322, %v321
        %v350 = vpack.c.bf16 %v324, %v323
        %v351 = vpack.c.bf16 %v326, %v325
        %v352 = vpack.c.bf16 %v328, %v327
        %v353 = vpack.c.bf16 %v330, %v329
        %v354 = vpack.c.bf16 %v332, %v331
        %v355 = vpack.c.bf16 %v334, %v333
        %v356 = vpack.c.bf16 %v336, %v335
        %v357 = vpack.c.bf16 %v338, %v337
        %v358 = vpack.c.bf16 %v340, %v339
        %v359 = vpack.c.bf16 %v342, %v341
        %v360 = vpack.c.bf16 %v344, %v343
        %v361 = vld [vmem:[%s1] sm:$0xf]
        %v362 = vld [vmem:[%s1 + $0x4] sm:$0xf]
        %v363 = vld [vmem:[%s1 + $0x8] sm:$0xf]
        %v364 = vld [vmem:[%s1 + $0xc] sm:$0xf]
        %v365 = vld [vmem:[%s1 + $0x10] sm:$0xf]
        %v366 = vld [vmem:[%s1 + $0x14] sm:$0xf]
        %v367 = vld [vmem:[%s1 + $0x18] sm:$0xf]
        %v368 = vld [vmem:[%s1 + $0x1c] sm:$0xf]
        %v369 = vld [vmem:[%s1 + $0x20] sm:$0xf]
        %v370 = vld [vmem:[%s1 + $0x24] sm:$0xf]
        %v371 = vld [vmem:[%s1 + $0x28] sm:$0xf]
        %v372 = vld [vmem:[%s1 + $0x2c] sm:$0xf]
        %v373 = vld [vmem:[%s1 + $0x30] sm:$0xf]
        %v374 = vld [vmem:[%s1 + $0x34] sm:$0xf]
        %v375 = vld [vmem:[%s1 + $0x38] sm:$0xf]
        %v376 = vld [vmem:[%s1 + $0x3c] sm:$0xf]
        %v377 = vld [vmem:[%s2] sm:$0x1]
        %v379 = vlaneseq
        %v380 = vshrl.u32 %v379, 7
        %v381 = vsub.s32 0, %v380
        %v382 = vrot.slane %v377, %v381
        %v400 = vunpack.c.l.b16 %v361
        %v401 = vunpack.c.l.b16 %v362
        %v402 = vunpack.c.l.b16 %v363
        %v403 = vunpack.c.l.b16 %v364
        %v404 = vunpack.c.l.b16 %v365
        %v405 = vunpack.c.l.b16 %v366
        %v406 = vunpack.c.l.b16 %v367
        %v407 = vunpack.c.l.b16 %v368
        %v408 = vunpack.c.l.b16 %v369
        %v409 = vunpack.c.l.b16 %v370
        %v410 = vunpack.c.l.b16 %v371
        %v411 = vunpack.c.l.b16 %v372
        %v412 = vunpack.c.l.b16 %v373
        %v413 = vunpack.c.l.b16 %v374
        %v414 = vunpack.c.l.b16 %v375
        %v415 = vunpack.c.l.b16 %v376
        %v416 = vpack.c.b16 %v401, %v400
        %v417 = vpack.c.b16 %v403, %v402
        %v418 = vpack.c.b16 %v405, %v404
        %v419 = vpack.c.b16 %v407, %v406
        %v420 = vpack.c.b16 %v409, %v408
        %v421 = vpack.c.b16 %v411, %v410
        %v422 = vpack.c.b16 %v413, %v412
        %v423 = vpack.c.b16 %v415, %v414
        %432 = vmatprep.subr.bf16.mxu0 0
        %433 = vmatpush1.bf16.msra.mxu0 %v416
        %434 = vmatprep.subr.bf16.mxu0 0
        %435 = vmatpush1.bf16.msra.mxu0 %v417
        %436 = vmatprep.subr.bf16.mxu0 0
        %437 = vmatpush1.bf16.msra.mxu0 %v418
        %438 = vmatprep.subr.bf16.mxu0 0
        %439 = vmatpush1.bf16.msra.mxu0 %v419
        %440 = vmatprep.subr.bf16.mxu0 0
        %441 = vmatpush1.bf16.msra.mxu0 %v420
        %442 = vmatprep.subr.bf16.mxu0 0
        %443 = vmatpush1.bf16.msra.mxu0 %v421
        %444 = vmatprep.subr.bf16.mxu0 0
        %445 = vmatpush1.bf16.msra.mxu0 %v422
        %446 = vmatprep.subr.bf16.mxu0 0
        %447 = vmatpush1.bf16.msra.mxu0 %v423
        %448 = vmatprep.subr.bf16.mxu0 0
        %449 = vmatpush1.bf16.msra.mxu0 0
        %450 = vmatprep.subr.bf16.mxu0 0
        %451 = vmatpush1.bf16.msra.mxu0 0
        %452 = vmatprep.subr.bf16.mxu0 0
        %453 = vmatpush1.bf16.msra.mxu0 0
        %454 = vmatprep.subr.bf16.mxu0 0
        %455 = vmatpush1.bf16.msra.mxu0 0
        %456 = vmatprep.subr.bf16.mxu0 0
        %457 = vmatpush1.bf16.msra.mxu0 0
        %458 = vmatprep.subr.bf16.mxu0 0
        %459 = vmatpush1.bf16.msra.mxu0 0
        %460 = vmatprep.subr.bf16.mxu0 0
        %461 = vmatpush1.bf16.msra.mxu0 0
        %462 = vmatprep.subr.bf16.mxu0 0
        %463 = vmatpush1.bf16.msra.mxu0 0
        %464 = vmatprep.mubr.bf16.mxu0 0
        %465 = vmatmul.mubr.bf16.gmra.mrb[0].mxu0 %v345
        %v466 = vpop.f32.mrb[0].mxu0
        %v467 = vadd.f32 %v382, %v466
        %v468 = vpop.f32.mrb[0].mxu0
        %v469 = vpop.f32.mrb[0].mxu0
        %v470 = vadd.f32 %v382, %v469
        %v471 = vpop.f32.mrb[0].mxu0
        %472 = vmatprep.mubr.bf16.mxu0 0
        %473 = vmatmul.mubr.bf16.gmra.mrb[0].mxu0 %v346
        %v474 = vpop.f32.mrb[0].mxu0
        %v475 = vadd.f32 %v382, %v474
        %v476 = vpop.f32.mrb[0].mxu0
        %v477 = vpop.f32.mrb[0].mxu0
        %v478 = vadd.f32 %v382, %v477
        %v479 = vpop.f32.mrb[0].mxu0
        %480 = vmatprep.mubr.bf16.mxu0 0
        %481 = vmatmul.mubr.bf16.gmra.mrb[0].mxu0 %v347
        %v482 = vpop.f32.mrb[0].mxu0
        %v483 = vadd.f32 %v382, %v482
        %v484 = vpop.f32.mrb[0].mxu0
        %v485 = vpop.f32.mrb[0].mxu0
        %v486 = vadd.f32 %v382, %v485
        %v487 = vpop.f32.mrb[0].mxu0
        %488 = vmatprep.mubr.bf16.mxu0 0
        %489 = vmatmul.mubr.bf16.gmra.mrb[0].mxu0 %v348
        %v490 = vpop.f32.mrb[0].mxu0
        %v491 = vadd.f32 %v382, %v490
        %v492 = vpop.f32.mrb[0].mxu0
        %v493 = vpop.f32.mrb[0].mxu0
        %v494 = vadd.f32 %v382, %v493
        %v495 = vpop.f32.mrb[0].mxu0
        %496 = vmatprep.mubr.bf16.mxu0 0
        %497 = vmatmul.mubr.bf16.gmra.mrb[0].mxu0 %v349
        %v498 = vpop.f32.mrb[0].mxu0
        %v499 = vadd.f32 %v382, %v498
        %v500 = vpop.f32.mrb[0].mxu0
        %v501 = vpop.f32.mrb[0].mxu0
        %v502 = vadd.f32 %v382, %v501
        %v503 = vpop.f32.mrb[0].mxu0
        %504 = vmatprep.mubr.bf16.mxu0 0
        %505 = vmatmul.mubr.bf16.gmra.mrb[0].mxu0 %v350
        %v506 = vpop.f32.mrb[0].mxu0
        %v507 = vadd.f32 %v382, %v506
        %v508 = vpop.f32.mrb[0].mxu0
        %v509 = vpop.f32.mrb[0].mxu0
        %v510 = vadd.f32 %v382, %v509
        %v511 = vpop.f32.mrb[0].mxu0
        %512 = vmatprep.mubr.bf16.mxu0 0
        %513 = vmatmul.mubr.bf16.gmra.mrb[0].mxu0 %v351
        %v514 = vpop.f32.mrb[0].mxu0
        %v515 = vadd.f32 %v382, %v514
        %v516 = vpop.f32.mrb[0].mxu0
        %v517 = vpop.f32.mrb[0].mxu0
        %v518 = vadd.f32 %v382, %v517
        %v519 = vpop.f32.mrb[0].mxu0
        %520 = vmatprep.mubr.bf16.mxu0 0
        %521 = vmatmul.mubr.bf16.gmra.mrb[0].mxu0 %v352
        %v522 = vpop.f32.mrb[0].mxu0
        %v523 = vadd.f32 %v382, %v522
        %v524 = vpop.f32.mrb[0].mxu0
        %v525 = vpop.f32.mrb[0].mxu0
        %v526 = vadd.f32 %v382, %v525
        %v527 = vpop.f32.mrb[0].mxu0
        %528 = vmatprep.mubr.bf16.mxu0 0
        %529 = vmatmul.mubr.bf16.gmra.mrb[0].mxu0 %v353
        %v530 = vpop.f32.mrb[0].mxu0
        %v531 = vadd.f32 %v382, %v530
        %v532 = vpop.f32.mrb[0].mxu0
        %v533 = vpop.f32.mrb[0].mxu0
        %v534 = vadd.f32 %v382, %v533
        %v535 = vpop.f32.mrb[0].mxu0
        %536 = vmatprep.mubr.bf16.mxu0 0
        %537 = vmatmul.mubr.bf16.gmra.mrb[0].mxu0 %v354
        %v538 = vpop.f32.mrb[0].mxu0
        %v539 = vadd.f32 %v382, %v538
        %v540 = vpop.f32.mrb[0].mxu0
        %v541 = vpop.f32.mrb[0].mxu0
        %v542 = vadd.f32 %v382, %v541
        %v543 = vpop.f32.mrb[0].mxu0
        %544 = vmatprep.mubr.bf16.mxu0 0
        %545 = vmatmul.mubr.bf16.gmra.mrb[0].mxu0 %v355
        %v546 = vpop.f32.mrb[0].mxu0
        %v547 = vadd.f32 %v382, %v546
        %v548 = vpop.f32.mrb[0].mxu0
        %v549 = vpop.f32.mrb[0].mxu0
        %v550 = vadd.f32 %v382, %v549
        %v551 = vpop.f32.mrb[0].mxu0
        %552 = vmatprep.mubr.bf16.mxu0 0
        %553 = vmatmul.mubr.bf16.gmra.mrb[0].mxu0 %v356
        %v554 = vpop.f32.mrb[0].mxu0
        %v555 = vadd.f32 %v382, %v554
        %v556 = vpop.f32.mrb[0].mxu0
        %v557 = vpop.f32.mrb[0].mxu0
        %v558 = vadd.f32 %v382, %v557
        %v559 = vpop.f32.mrb[0].mxu0
        %560 = vmatprep.mubr.bf16.mxu0 0
        %561 = vmatmul.mubr.bf16.gmra.mrb[0].mxu0 %v357
        %v562 = vpop.f32.mrb[0].mxu0
        %v563 = vadd.f32 %v382, %v562
        %v564 = vpop.f32.mrb[0].mxu0
        %v565 = vpop.f32.mrb[0].mxu0
        %v566 = vadd.f32 %v382, %v565
        %v567 = vpop.f32.mrb[0].mxu0
        %568 = vmatprep.mubr.bf16.mxu0 0
        %569 = vmatmul.mubr.bf16.gmra.mrb[0].mxu0 %v358
        %v570 = vpop.f32.mrb[0].mxu0
        %v571 = vadd.f32 %v382, %v570
        %v572 = vpop.f32.mrb[0].mxu0
        %v573 = vpop.f32.mrb[0].mxu0
        %v574 = vadd.f32 %v382, %v573
        %v575 = vpop.f32.mrb[0].mxu0
        %576 = vmatprep.mubr.bf16.mxu0 0
        %577 = vmatmul.mubr.bf16.gmra.mrb[0].mxu0 %v359
        %v578 = vpop.f32.mrb[0].mxu0
        %v579 = vadd.f32 %v382, %v578
        %v580 = vpop.f32.mrb[0].mxu0
        %v581 = vpop.f32.mrb[0].mxu0
        %v582 = vadd.f32 %v382, %v581
        %v583 = vpop.f32.mrb[0].mxu0
        %584 = vmatprep.mubr.bf16.mxu0 0
        %585 = vmatmul.mubr.bf16.gmra.mrb[0].mxu0 %v360
        %v586 = vpop.f32.mrb[0].mxu0
        %v587 = vadd.f32 %v382, %v586
        %v588 = vpop.f32.mrb[0].mxu0
        %v589 = vpop.f32.mrb[0].mxu0
        %v590 = vadd.f32 %v382, %v589
        %v591 = vpop.f32.mrb[0].mxu0
        %592 = vdwg.mxu0
        %v593 = vmax.f32 %v467, 0.0
        %v594 = vmax.f32 %v470, 0.0
        %v595 = vmax.f32 %v475, 0.0
        %v596 = vmax.f32 %v478, 0.0
        %v597 = vmax.f32 %v483, 0.0
        %v598 = vmax.f32 %v486, 0.0
        %v599 = vmax.f32 %v491, 0.0
        %v600 = vmax.f32 %v494, 0.0
        %v601 = vmax.f32 %v499, 0.0
        %v602 = vmax.f32 %v502, 0.0
        %v603 = vmax.f32 %v507, 0.0
        %v604 = vmax.f32 %v510, 0.0
        %v605 = vmax.f32 %v515, 0.0
        %v606 = vmax.f32 %v518, 0.0
        %v607 = vmax.f32 %v523, 0.0
        %v608 = vmax.f32 %v526, 0.0
        %v609 = vmax.f32 %v531, 0.0
        %v610 = vmax.f32 %v534, 0.0
        %v611 = vmax.f32 %v539, 0.0
        %v612 = vmax.f32 %v542, 0.0
        %v613 = vmax.f32 %v547, 0.0
        %v614 = vmax.f32 %v550, 0.0
        %v615 = vmax.f32 %v555, 0.0
        %v616 = vmax.f32 %v558, 0.0
        %v617 = vmax.f32 %v563, 0.0
        %v618 = vmax.f32 %v566, 0.0
        %v619 = vmax.f32 %v571, 0.0
        %v620 = vmax.f32 %v574, 0.0
        %v621 = vmax.f32 %v579, 0.0
        %v622 = vmax.f32 %v582, 0.0
        %v623 = vmax.f32 %v587, 0.0
        %v624 = vmax.f32 %v590, 0.0
        %vm625 = vcmask 261120
        %626 = vst.msk [vmem:[#allocation2] sm:$0xff] %vm625, 0.0
        %627 = vst.msk [vmem:[#allocation2 + $0x8] sm:$0xff] %vm625, 0.0
        %628 = vst.msk [vmem:[#allocation2 + $0x10] sm:$0xff] %vm625, 0.0
        %629 = vst.msk [vmem:[#allocation2 + $0x18] sm:$0xff] %vm625, 0.0
        %630 = vst.msk [vmem:[#allocation2 + $0x20] sm:$0xff] %vm625, 0.0
        %631 = vst.msk [vmem:[#allocation2 + $0x28] sm:$0xff] %vm625, 0.0
        %632 = vst.msk [vmem:[#allocation2 + $0x30] sm:$0xff] %vm625, 0.0
        %633 = vst.msk [vmem:[#allocation2 + $0x38] sm:$0xff] %vm625, 0.0
        %634 = vst.msk [vmem:[#allocation2 + $0x40] sm:$0xff] %vm625, 0.0
        %635 = vst.msk [vmem:[#allocation2 + $0x48] sm:$0xff] %vm625, 0.0
        %636 = vst.msk [vmem:[#allocation2 + $0x50] sm:$0xff] %vm625, 0.0
        %637 = vst.msk [vmem:[#allocation2 + $0x58] sm:$0xff] %vm625, 0.0
        %638 = vst.msk [vmem:[#allocation2 + $0x60] sm:$0xff] %vm625, 0.0
        %639 = vst.msk [vmem:[#allocation2 + $0x68] sm:$0xff] %vm625, 0.0
        %640 = vst.msk [vmem:[#allocation2 + $0x70] sm:$0xff] %vm625, 0.0
        %641 = vst.msk [vmem:[#allocation2 + $0x78] sm:$0xff] %vm625, 0.0
        %642 = vst.msk [vmem:[#allocation2 + $0x80] sm:$0xff] %vm625, 0.0
        %643 = vst.msk [vmem:[#allocation2 + $0x88] sm:$0xff] %vm625, 0.0
        %644 = vst.msk [vmem:[#allocation2 + $0x90] sm:$0xff] %vm625, 0.0
        %645 = vst.msk [vmem:[#allocation2 + $0x98] sm:$0xff] %vm625, 0.0
        %646 = vst.msk [vmem:[#allocation2 + $0xa0] sm:$0xff] %vm625, 0.0
        %647 = vst.msk [vmem:[#allocation2 + $0xa8] sm:$0xff] %vm625, 0.0
        %648 = vst.msk [vmem:[#allocation2 + $0xb0] sm:$0xff] %vm625, 0.0
        %649 = vst.msk [vmem:[#allocation2 + $0xb8] sm:$0xff] %vm625, 0.0
        %650 = vst.msk [vmem:[#allocation2 + $0xc0] sm:$0xff] %vm625, 0.0
        %651 = vst.msk [vmem:[#allocation2 + $0xc8] sm:$0xff] %vm625, 0.0
        %652 = vst.msk [vmem:[#allocation2 + $0xd0] sm:$0xff] %vm625, 0.0
        %653 = vst.msk [vmem:[#allocation2 + $0xd8] sm:$0xff] %vm625, 0.0
        %654 = vst.msk [vmem:[#allocation2 + $0xe0] sm:$0xff] %vm625, 0.0
        %655 = vst.msk [vmem:[#allocation2 + $0xe8] sm:$0xff] %vm625, 0.0
        %656 = vst.msk [vmem:[#allocation2 + $0xf0] sm:$0xff] %vm625, 0.0
        %657 = vst.msk [vmem:[#allocation2 + $0xf8] sm:$0xff] %vm625, 0.0
        %658 = vst.msk [vmem:[#allocation2 + $0x100] sm:$0xff] %vm625, 0.0
        %659 = vst.msk [vmem:[#allocation2 + $0x108] sm:$0xff] %vm625, 0.0
        %660 = vst.msk [vmem:[#allocation2 + $0x110] sm:$0xff] %vm625, 0.0
        %661 = vst.msk [vmem:[#allocation2 + $0x118] sm:$0xff] %vm625, 0.0
        %662 = vst.msk [vmem:[#allocation2 + $0x120] sm:$0xff] %vm625, 0.0
        %663 = vst.msk [vmem:[#allocation2 + $0x128] sm:$0xff] %vm625, 0.0
        %664 = vst.msk [vmem:[#allocation2 + $0x18] sm:$0xff] %vm625, %v593
        %665 = vst.msk [vmem:[#allocation2 + $0x20] sm:$0xff] %vm625, %v594
        %666 = vst.msk [vmem:[#allocation2 + $0x28] sm:$0xff] %vm625, %v595
        %667 = vst.msk [vmem:[#allocation2 + $0x30] sm:$0xff] %vm625, %v596
        %668 = vst.msk [vmem:[#allocation2 + $0x38] sm:$0xff] %vm625, %v597
        %669 = vst.msk [vmem:[#allocation2 + $0x40] sm:$0xff] %vm625, %v598
        %670 = vst.msk [vmem:[#allocation2 + $0x48] sm:$0xff] %vm625, %v599
        %671 = vst.msk [vmem:[#allocation2 + $0x50] sm:$0xff] %vm625, %v600
        %672 = vst.msk [vmem:[#allocation2 + $0x58] sm:$0xff] %vm625, %v601
        %673 = vst.msk [vmem:[#allocation2 + $0x60] sm:$0xff] %vm625, %v602
        %674 = vst.msk [vmem:[#allocation2 + $0x68] sm:$0xff] %vm625, %v603
        %675 = vst.msk [vmem:[#allocation2 + $0x70] sm:$0xff] %vm625, %v604
        %676 = vst.msk [vmem:[#allocation2 + $0x78] sm:$0xff] %vm625, %v605
        %677 = vst.msk [vmem:[#allocation2 + $0x80] sm:$0xff] %vm625, %v606
        %678 = vst.msk [vmem:[#allocation2 + $0x88] sm:$0xff] %vm625, %v607
        %679 = vst.msk [vmem:[#allocation2 + $0x90] sm:$0xff] %vm625, %v608
        %680 = vst.msk [vmem:[#allocation2 + $0x98] sm:$0xff] %vm625, %v609
        %681 = vst.msk [vmem:[#allocation2 + $0xa0] sm:$0xff] %vm625, %v610
        %682 = vst.msk [vmem:[#allocation2 + $0xa8] sm:$0xff] %vm625, %v611
        %683 = vst.msk [vmem:[#allocation2 + $0xb0] sm:$0xff] %vm625, %v612
        %684 = vst.msk [vmem:[#allocation2 + $0xb8] sm:$0xff] %vm625, %v613
        %685 = vst.msk [vmem:[#allocation2 + $0xc0] sm:$0xff] %vm625, %v614
        %686 = vst.msk [vmem:[#allocation2 + $0xc8] sm:$0xff] %vm625, %v615
        %687 = vst.msk [vmem:[#allocation2 + $0xd0] sm:$0xff] %vm625, %v616
        %688 = vst.msk [vmem:[#allocation2 + $0xd8] sm:$0xff] %vm625, %v617
        %689 = vst.msk [vmem:[#allocation2 + $0xe0] sm:$0xff] %vm625, %v618
        %690 = vst.msk [vmem:[#allocation2 + $0xe8] sm:$0xff] %vm625, %v619
        %691 = vst.msk [vmem:[#allocation2 + $0xf0] sm:$0xff] %vm625, %v620
        %692 = vst.msk [vmem:[#allocation2 + $0xf8] sm:$0xff] %vm625, %v621
        %693 = vst.msk [vmem:[#allocation2 + $0x100] sm:$0xff] %vm625, %v622
        %694 = vst.msk [vmem:[#allocation2 + $0x108] sm:$0xff] %vm625, %v623
        %695 = vst.msk [vmem:[#allocation2 + $0x110] sm:$0xff] %vm625, %v624
        %v696 = vlaneseq
        %v697 = vshrl.u32 %v696, 7
        %v698 = vadd.s32 %v697, 8
        %v699 = vadd.s32 %v697, 16
        %v700 = vadd.s32 %v697, 24
        %v701 = vadd.s32 %v697, 32
        %v702 = vadd.s32 %v697, 40
        %v703 = vadd.s32 %v697, 48
        %v704 = vadd.s32 %v697, 56
        %v705 = vadd.s32 %v697, 64
        %v706 = vadd.s32 %v697, 72
        %v707 = vadd.s32 %v697, 80
        %v708 = vadd.s32 %v697, 88
        %v709 = vadd.s32 %v697, 96
        %v710 = vadd.s32 %v697, 104
        %v711 = vadd.s32 %v697, 112
        %v712 = vadd.s32 %v697, 120
        %v713 = vadd.s32 %v697, 128
        %v714 = vadd.s32 %v697, 136
        %v715 = vadd.s32 %v697, 144
        %v716 = vadd.s32 %v697, 152
        %v717 = vadd.s32 %v697, 160
        %v718 = vadd.s32 %v697, 168
        %v719 = vadd.s32 %v697, 176
        %v720 = vadd.s32 %v697, 184
        %v721 = vadd.s32 %v697, 192
        %v722 = vadd.s32 %v697, 200
        %v723 = vadd.s32 %v697, 208
        %v724 = vadd.s32 %v697, 216
        %v725 = vadd.s32 %v697, 224
        %v726 = vadd.s32 %v697, 232
        %v727 = vadd.s32 %v697, 240
        %v728 = vadd.s32 %v697, 248
        %vm729 = vcmp.lt.s32.totalorder %v697, 0
        %v730 = vsub.s32 0, %v697
        %v731 = vsel %vm729, %v730, %v697
        %v732 = vshrl.u32 %v731, 4
        %v733 = vand.u32 %v731, 15
        %v734 = vsub.s32 0, %v733
        %v735 = vsel %vm729, %v734, %v733
        %vm736 = vcmp.lt.s32.totalorder %v698, 0
        %v737 = vsub.s32 0, %v698
        %v738 = vsel %vm736, %v737, %v698
        %v739 = vshrl.u32 %v738, 4
        %v740 = vand.u32 %v738, 15
        %v741 = vsub.s32 0, %v740
        %v742 = vsel %vm736, %v741, %v740
        %vm743 = vcmp.lt.s32.totalorder %v699, 0
        %v744 = vsub.s32 0, %v699
        %v745 = vsel %vm743, %v744, %v699
        %v746 = vshrl.u32 %v745, 4
        %v747 = vand.u32 %v745, 15
        %v748 = vsub.s32 0, %v747
        %v749 = vsel %vm743, %v748, %v747
        %vm750 = vcmp.lt.s32.totalorder %v700, 0
        %v751 = vsub.s32 0, %v700
        %v752 = vsel %vm750, %v751, %v700
        %v753 = vshrl.u32 %v752, 4
        %v754 = vand.u32 %v752, 15
        %v755 = vsub.s32 0, %v754
        %v756 = vsel %vm750, %v755, %v754
        %vm757 = vcmp.lt.s32.totalorder %v701, 0
        %v758 = vsub.s32 0, %v701
        %v759 = vsel %vm757, %v758, %v701
        %v760 = vshrl.u32 %v759, 4
        %v761 = vand.u32 %v759, 15
        %v762 = vsub.s32 0, %v761
        %v763 = vsel %vm757, %v762, %v761
        %vm764 = vcmp.lt.s32.totalorder %v702, 0
        %v765 = vsub.s32 0, %v702
        %v766 = vsel %vm764, %v765, %v702
        %v767 = vshrl.u32 %v766, 4
        %v768 = vand.u32 %v766, 15
        %v769 = vsub.s32 0, %v768
        %v770 = vsel %vm764, %v769, %v768
        %vm771 = vcmp.lt.s32.totalorder %v703, 0
        %v772 = vsub.s32 0, %v703
        %v773 = vsel %vm771, %v772, %v703
        %v774 = vshrl.u32 %v773, 4
        %v775 = vand.u32 %v773, 15
        %v776 = vsub.s32 0, %v775
        %v777 = vsel %vm771, %v776, %v775
        %vm778 = vcmp.lt.s32.totalorder %v704, 0
        %v779 = vsub.s32 0, %v704
        %v780 = vsel %vm778, %v779, %v704
        %v781 = vshrl.u32 %v780, 4
        %v782 = vand.u32 %v780, 15
        %v783 = vsub.s32 0, %v782
        %v784 = vsel %vm778, %v783, %v782
        %vm785 = vcmp.lt.s32.totalorder %v705, 0
        %v786 = vsub.s32 0, %v705
        %v787 = vsel %vm785, %v786, %v705
        %v788 = vshrl.u32 %v787, 4
        %v789 = vand.u32 %v787, 15
        %v790 = vsub.s32 0, %v789
        %v791 = vsel %vm785, %v790, %v789
        %vm792 = vcmp.lt.s32.totalorder %v706, 0
        %v793 = vsub.s32 0, %v706
        %v794 = vsel %vm792, %v793, %v706
        %v795 = vshrl.u32 %v794, 4
        %v796 = vand.u32 %v794, 15
        %v797 = vsub.s32 0, %v796
        %v798 = vsel %vm792, %v797, %v796
        %vm799 = vcmp.lt.s32.totalorder %v707, 0
        %v800 = vsub.s32 0, %v707
        %v801 = vsel %vm799, %v800, %v707
        %v802 = vshrl.u32 %v801, 4
        %v803 = vand.u32 %v801, 15
        %v804 = vsub.s32 0, %v803
        %v805 = vsel %vm799, %v804, %v803
        %vm806 = vcmp.lt.s32.totalorder %v708, 0
        %v807 = vsub.s32 0, %v708
        %v808 = vsel %vm806, %v807, %v708
        %v809 = vshrl.u32 %v808, 4
        %v810 = vand.u32 %v808, 15
        %v811 = vsub.s32 0, %v810
        %v812 = vsel %vm806, %v811, %v810
        %vm813 = vcmp.lt.s32.totalorder %v709, 0
        %v814 = vsub.s32 0, %v709
        %v815 = vsel %vm813, %v814, %v709
        %v816 = vshrl.u32 %v815, 4
        %v817 = vand.u32 %v815, 15
        %v818 = vsub.s32 0, %v817
        %v819 = vsel %vm813, %v818, %v817
        %vm820 = vcmp.lt.s32.totalorder %v710, 0
        %v821 = vsub.s32 0, %v710
        %v822 = vsel %vm820, %v821, %v710
        %v823 = vshrl.u32 %v822, 4
        %v824 = vand.u32 %v822, 15
        %v825 = vsub.s32 0, %v824
        %v826 = vsel %vm820, %v825, %v824
        %vm827 = vcmp.lt.s32.totalorder %v711, 0
        %v828 = vsub.s32 0, %v711
        %v829 = vsel %vm827, %v828, %v711
        %v830 = vshrl.u32 %v829, 4
        %v831 = vand.u32 %v829, 15
        %v832 = vsub.s32 0, %v831
        %v833 = vsel %vm827, %v832, %v831
        %vm834 = vcmp.lt.s32.totalorder %v712, 0
        %v835 = vsub.s32 0, %v712
        %v836 = vsel %vm834, %v835, %v712
        %v837 = vshrl.u32 %v836, 4
        %v838 = vand.u32 %v836, 15
        %v839 = vsub.s32 0, %v838
        %v840 = vsel %vm834, %v839, %v838
        %vm841 = vcmp.lt.s32.totalorder %v713, 0
        %v842 = vsub.s32 0, %v713
        %v843 = vsel %vm841, %v842, %v713
        %v844 = vshrl.u32 %v843, 4
        %v845 = vand.u32 %v843, 15
        %v846 = vsub.s32 0, %v845
        %v847 = vsel %vm841, %v846, %v845
        %vm848 = vcmp.lt.s32.totalorder %v714, 0
        %v849 = vsub.s32 0, %v714
        %v850 = vsel %vm848, %v849, %v714
        %v851 = vshrl.u32 %v850, 4
        %v852 = vand.u32 %v850, 15
        %v853 = vsub.s32 0, %v852
        %v854 = vsel %vm848, %v853, %v852
        %vm855 = vcmp.lt.s32.totalorder %v715, 0
        %v856 = vsub.s32 0, %v715
        %v857 = vsel %vm855, %v856, %v715
        %v858 = vshrl.u32 %v857, 4
        %v859 = vand.u32 %v857, 15
        %v860 = vsub.s32 0, %v859
        %v861 = vsel %vm855, %v860, %v859
        %vm862 = vcmp.lt.s32.totalorder %v716, 0
        %v863 = vsub.s32 0, %v716
        %v864 = vsel %vm862, %v863, %v716
        %v865 = vshrl.u32 %v864, 4
        %v866 = vand.u32 %v864, 15
        %v867 = vsub.s32 0, %v866
        %v868 = vsel %vm862, %v867, %v866
        %vm869 = vcmp.lt.s32.totalorder %v717, 0
        %v870 = vsub.s32 0, %v717
        %v871 = vsel %vm869, %v870, %v717
        %v872 = vshrl.u32 %v871, 4
        %v873 = vand.u32 %v871, 15
        %v874 = vsub.s32 0, %v873
        %v875 = vsel %vm869, %v874, %v873
        %vm876 = vcmp.lt.s32.totalorder %v718, 0
        %v877 = vsub.s32 0, %v718
        %v878 = vsel %vm876, %v877, %v718
        %v879 = vshrl.u32 %v878, 4
        %v880 = vand.u32 %v878, 15
        %v881 = vsub.s32 0, %v880
        %v882 = vsel %vm876, %v881, %v880
        %vm883 = vcmp.lt.s32.totalorder %v719, 0
        %v884 = vsub.s32 0, %v719
        %v885 = vsel %vm883, %v884, %v719
        %v886 = vshrl.u32 %v885, 4
        %v887 = vand.u32 %v885, 15
        %v888 = vsub.s32 0, %v887
        %v889 = vsel %vm883, %v888, %v887
        %vm890 = vcmp.lt.s32.totalorder %v720, 0
        %v891 = vsub.s32 0, %v720
        %v892 = vsel %vm890, %v891, %v720
        %v893 = vshrl.u32 %v892, 4
        %v894 = vand.u32 %v892, 15
        %v895 = vsub.s32 0, %v894
        %v896 = vsel %vm890, %v895, %v894
        %vm897 = vcmp.lt.s32.totalorder %v721, 0
        %v898 = vsub.s32 0, %v721
        %v899 = vsel %vm897, %v898, %v721
        %v900 = vshrl.u32 %v899, 4
        %v901 = vand.u32 %v899, 15
        %v902 = vsub.s32 0, %v901
        %v903 = vsel %vm897, %v902, %v901
        %vm904 = vcmp.lt.s32.totalorder %v722, 0
        %v905 = vsub.s32 0, %v722
        %v906 = vsel %vm904, %v905, %v722
        %v907 = vshrl.u32 %v906, 4
        %v908 = vand.u32 %v906, 15
        %v909 = vsub.s32 0, %v908
        %v910 = vsel %vm904, %v909, %v908
        %vm911 = vcmp.lt.s32.totalorder %v723, 0
        %v912 = vsub.s32 0, %v723
        %v913 = vsel %vm911, %v912, %v723
        %v914 = vshrl.u32 %v913, 4
        %v915 = vand.u32 %v913, 15
        %v916 = vsub.s32 0, %v915
        %v917 = vsel %vm911, %v916, %v915
        %vm918 = vcmp.lt.s32.totalorder %v724, 0
        %v919 = vsub.s32 0, %v724
        %v920 = vsel %vm918, %v919, %v724
        %v921 = vshrl.u32 %v920, 4
        %v922 = vand.u32 %v920, 15
        %v923 = vsub.s32 0, %v922
        %v924 = vsel %vm918, %v923, %v922
        %vm925 = vcmp.lt.s32.totalorder %v725, 0
        %v926 = vsub.s32 0, %v725
        %v927 = vsel %vm925, %v926, %v725
        %v928 = vshrl.u32 %v927, 4
        %v929 = vand.u32 %v927, 15
        %v930 = vsub.s32 0, %v929
        %v931 = vsel %vm925, %v930, %v929
        %vm932 = vcmp.lt.s32.totalorder %v726, 0
        %v933 = vsub.s32 0, %v726
        %v934 = vsel %vm932, %v933, %v726
        %v935 = vshrl.u32 %v934, 4
        %v936 = vand.u32 %v934, 15
        %v937 = vsub.s32 0, %v936
        %v938 = vsel %vm932, %v937, %v936
        %vm939 = vcmp.lt.s32.totalorder %v727, 0
        %v940 = vsub.s32 0, %v727
        %v941 = vsel %vm939, %v940, %v727
        %v942 = vshrl.u32 %v941, 4
        %v943 = vand.u32 %v941, 15
        %v944 = vsub.s32 0, %v943
        %v945 = vsel %vm939, %v944, %v943
        %vm946 = vcmp.lt.s32.totalorder %v728, 0
        %v947 = vsub.s32 0, %v728
        %v948 = vsel %vm946, %v947, %v728
        %v949 = vshrl.u32 %v948, 4
        %v950 = vand.u32 %v948, 15
        %v951 = vsub.s32 0, %v950
        %v952 = vsel %vm946, %v951, %v950
        %vm953 = vcmp.ne.s32.totalorder %v735, 0
        %vm954 = vcmp.ne.s32.totalorder %v742, 0
        %vm955 = vcmp.ne.s32.totalorder %v749, 0
        %vm956 = vcmp.ne.s32.totalorder %v756, 0
        %vm957 = vcmp.ne.s32.totalorder %v763, 0
        %vm958 = vcmp.ne.s32.totalorder %v770, 0
        %vm959 = vcmp.ne.s32.totalorder %v777, 0
        %vm960 = vcmp.ne.s32.totalorder %v784, 0
        %vm961 = vcmp.ne.s32.totalorder %v791, 0
        %vm962 = vcmp.ne.s32.totalorder %v798, 0
        %vm963 = vcmp.ne.s32.totalorder %v805, 0
        %vm964 = vcmp.ne.s32.totalorder %v812, 0
        %vm965 = vcmp.ne.s32.totalorder %v819, 0
        %vm966 = vcmp.ne.s32.totalorder %v826, 0
        %vm967 = vcmp.ne.s32.totalorder %v833, 0
        %vm968 = vcmp.ne.s32.totalorder %v840, 0
        %vm969 = vcmp.ne.s32.totalorder %v847, 0
        %vm970 = vcmp.ne.s32.totalorder %v854, 0
        %vm971 = vcmp.ne.s32.totalorder %v861, 0
        %vm972 = vcmp.ne.s32.totalorder %v868, 0
        %vm973 = vcmp.ne.s32.totalorder %v875, 0
        %vm974 = vcmp.ne.s32.totalorder %v882, 0
        %vm975 = vcmp.ne.s32.totalorder %v889, 0
        %vm976 = vcmp.ne.s32.totalorder %v896, 0
        %vm977 = vcmp.ne.s32.totalorder %v903, 0
        %vm978 = vcmp.ne.s32.totalorder %v910, 0
        %vm979 = vcmp.ne.s32.totalorder %v917, 0
        %vm980 = vcmp.ne.s32.totalorder %v924, 0
        %vm981 = vcmp.ne.s32.totalorder %v931, 0
        %vm982 = vcmp.ne.s32.totalorder %v938, 0
        %vm983 = vcmp.ne.s32.totalorder %v945, 0
        %vm984 = vcmp.ne.s32.totalorder %v952, 0
        %vm985 = vcmp.lt.s32.totalorder %v735, 0
        %vm986 = vcmp.lt.s32.totalorder %v742, 0
        %vm987 = vcmp.lt.s32.totalorder %v749, 0
        %vm988 = vcmp.lt.s32.totalorder %v756, 0
        %vm989 = vcmp.lt.s32.totalorder %v763, 0
        %vm990 = vcmp.lt.s32.totalorder %v770, 0
        %vm991 = vcmp.lt.s32.totalorder %v777, 0
        %vm992 = vcmp.lt.s32.totalorder %v784, 0
        %vm993 = vcmp.lt.s32.totalorder %v791, 0
        %vm994 = vcmp.lt.s32.totalorder %v798, 0
        %vm995 = vcmp.lt.s32.totalorder %v805, 0
        %vm996 = vcmp.lt.s32.totalorder %v812, 0
        %vm997 = vcmp.lt.s32.totalorder %v819, 0
        %vm998 = vcmp.lt.s32.totalorder %v826, 0
        %vm999 = vcmp.lt.s32.totalorder %v833, 0
        %vm1000 = vcmp.lt.s32.totalorder %v840, 0
        %vm1001 = vcmp.lt.s32.totalorder %v847, 0
        %vm1002 = vcmp.lt.s32.totalorder %v854, 0
        %vm1003 = vcmp.lt.s32.totalorder %v861, 0
        %vm1004 = vcmp.lt.s32.totalorder %v868, 0
        %vm1005 = vcmp.lt.s32.totalorder %v875, 0
        %vm1006 = vcmp.lt.s32.totalorder %v882, 0
        %vm1007 = vcmp.lt.s32.totalorder %v889, 0
        %vm1008 = vcmp.lt.s32.totalorder %v896, 0
        %vm1009 = vcmp.lt.s32.totalorder %v903, 0
        %vm1010 = vcmp.lt.s32.totalorder %v910, 0
        %vm1011 = vcmp.lt.s32.totalorder %v917, 0
        %vm1012 = vcmp.lt.s32.totalorder %v924, 0
        %vm1013 = vcmp.lt.s32.totalorder %v931, 0
        %vm1014 = vcmp.lt.s32.totalorder %v938, 0
        %vm1015 = vcmp.lt.s32.totalorder %v945, 0
        %vm1016 = vcmp.lt.s32.totalorder %v952, 0
        %vm1017 = vmand %vm985, %vm953
        %vm1018 = vmand %vm986, %vm954
        %vm1019 = vmand %vm987, %vm955
        %vm1020 = vmand %vm988, %vm956
        %vm1021 = vmand %vm989, %vm957
        %vm1022 = vmand %vm990, %vm958
        %vm1023 = vmand %vm991, %vm959
        %vm1024 = vmand %vm992, %vm960
        %vm1025 = vmand %vm993, %vm961
        %vm1026 = vmand %vm994, %vm962
        %vm1027 = vmand %vm995, %vm963
        %vm1028 = vmand %vm996, %vm964
        %vm1029 = vmand %vm997, %vm965
        %vm1030 = vmand %vm998, %vm966
        %vm1031 = vmand %vm999, %vm967
        %vm1032 = vmand %vm1000, %vm968
        %vm1033 = vmand %vm1001, %vm969
        %vm1034 = vmand %vm1002, %vm970
        %vm1035 = vmand %vm1003, %vm971
        %vm1036 = vmand %vm1004, %vm972
        %vm1037 = vmand %vm1005, %vm973
        %vm1038 = vmand %vm1006, %vm974
        %vm1039 = vmand %vm1007, %vm975
        %vm1040 = vmand %vm1008, %vm976
        %vm1041 = vmand %vm1009, %vm977
        %vm1042 = vmand %vm1010, %vm978
        %vm1043 = vmand %vm1011, %vm979
        %vm1044 = vmand %vm1012, %vm980
        %vm1045 = vmand %vm1013, %vm981
        %vm1046 = vmand %vm1014, %vm982
        %vm1047 = vmand %vm1015, %vm983
        %vm1048 = vmand %vm1016, %vm984
        %v1049 = vadd.s32 %v735, 16
        %v1050 = vadd.s32 %v742, 16
        %v1051 = vadd.s32 %v749, 16
        %v1052 = vadd.s32 %v756, 16
        %v1053 = vadd.s32 %v763, 16
        %v1054 = vadd.s32 %v770, 16
        %v1055 = vadd.s32 %v777, 16
        %v1056 = vadd.s32 %v784, 16
        %v1057 = vadd.s32 %v791, 16
        %v1058 = vadd.s32 %v798, 16
        %v1059 = vadd.s32 %v805, 16
        %v1060 = vadd.s32 %v812, 16
        %v1061 = vadd.s32 %v819, 16
        %v1062 = vadd.s32 %v826, 16
        %v1063 = vadd.s32 %v833, 16
        %v1064 = vadd.s32 %v840, 16
        %v1065 = vadd.s32 %v847, 16
        %v1066 = vadd.s32 %v854, 16
        %v1067 = vadd.s32 %v861, 16
        %v1068 = vadd.s32 %v868, 16
        %v1069 = vadd.s32 %v875, 16
        %v1070 = vadd.s32 %v882, 16
        %v1071 = vadd.s32 %v889, 16
        %v1072 = vadd.s32 %v896, 16
        %v1073 = vadd.s32 %v903, 16
        %v1074 = vadd.s32 %v910, 16
        %v1075 = vadd.s32 %v917, 16
        %v1076 = vadd.s32 %v924, 16
        %v1077 = vadd.s32 %v931, 16
        %v1078 = vadd.s32 %v938, 16
        %v1079 = vadd.s32 %v945, 16
        %v1080 = vadd.s32 %v952, 16
        %v1081 = vsel %vm1017, %v1049, %v735
        %v1082 = vsel %vm1018, %v1050, %v742
        %v1083 = vsel %vm1019, %v1051, %v749
        %v1084 = vsel %vm1020, %v1052, %v756
        %v1085 = vsel %vm1021, %v1053, %v763
        %v1086 = vsel %vm1022, %v1054, %v770
        %v1087 = vsel %vm1023, %v1055, %v777
        %v1088 = vsel %vm1024, %v1056, %v784
        %v1089 = vsel %vm1025, %v1057, %v791
        %v1090 = vsel %vm1026, %v1058, %v798
        %v1091 = vsel %vm1027, %v1059, %v805
        %v1092 = vsel %vm1028, %v1060, %v812
        %v1093 = vsel %vm1029, %v1061, %v819
        %v1094 = vsel %vm1030, %v1062, %v826
        %v1095 = vsel %vm1031, %v1063, %v833
        %v1096 = vsel %vm1032, %v1064, %v840
        %v1097 = vsel %vm1033, %v1065, %v847
        %v1098 = vsel %vm1034, %v1066, %v854
        %v1099 = vsel %vm1035, %v1067, %v861
        %v1100 = vsel %vm1036, %v1068, %v868
        %v1101 = vsel %vm1037, %v1069, %v875
        %v1102 = vsel %vm1038, %v1070, %v882
        %v1103 = vsel %vm1039, %v1071, %v889
        %v1104 = vsel %vm1040, %v1072, %v896
        %v1105 = vsel %vm1041, %v1073, %v903
        %v1106 = vsel %vm1042, %v1074, %v910
        %v1107 = vsel %vm1043, %v1075, %v917
        %v1108 = vsel %vm1044, %v1076, %v924
        %v1109 = vsel %vm1045, %v1077, %v931
        %v1110 = vsel %vm1046, %v1078, %v938
        %v1111 = vsel %vm1047, %v1079, %v945
        %v1112 = vsel %vm1048, %v1080, %v952
        %vm1113 = vcmp.ne.s32.totalorder %v1081, 0
        %vm1114 = vcmp.ne.s32.totalorder %v1082, 0
        %vm1115 = vcmp.ne.s32.totalorder %v1083, 0
        %vm1116 = vcmp.ne.s32.totalorder %v1084, 0
        %vm1117 = vcmp.ne.s32.totalorder %v1085, 0
        %vm1118 = vcmp.ne.s32.totalorder %v1086, 0
        %vm1119 = vcmp.ne.s32.totalorder %v1087, 0
        %vm1120 = vcmp.ne.s32.totalorder %v1088, 0
        %vm1121 = vcmp.ne.s32.totalorder %v1089, 0
        %vm1122 = vcmp.ne.s32.totalorder %v1090, 0
        %vm1123 = vcmp.ne.s32.totalorder %v1091, 0
        %vm1124 = vcmp.ne.s32.totalorder %v1092, 0
        %vm1125 = vcmp.ne.s32.totalorder %v1093, 0
        %vm1126 = vcmp.ne.s32.totalorder %v1094, 0
        %vm1127 = vcmp.ne.s32.totalorder %v1095, 0
        %vm1128 = vcmp.ne.s32.totalorder %v1096, 0
        %vm1129 = vcmp.ne.s32.totalorder %v1097, 0
        %vm1130 = vcmp.ne.s32.totalorder %v1098, 0
        %vm1131 = vcmp.ne.s32.totalorder %v1099, 0
        %vm1132 = vcmp.ne.s32.totalorder %v1100, 0
        %vm1133 = vcmp.ne.s32.totalorder %v1101, 0
        %vm1134 = vcmp.ne.s32.totalorder %v1102, 0
        %vm1135 = vcmp.ne.s32.totalorder %v1103, 0
        %vm1136 = vcmp.ne.s32.totalorder %v1104, 0
        %vm1137 = vcmp.ne.s32.totalorder %v1105, 0
        %vm1138 = vcmp.ne.s32.totalorder %v1106, 0
        %vm1139 = vcmp.ne.s32.totalorder %v1107, 0
        %vm1140 = vcmp.ne.s32.totalorder %v1108, 0
        %vm1141 = vcmp.ne.s32.totalorder %v1109, 0
        %vm1142 = vcmp.ne.s32.totalorder %v1110, 0
        %vm1143 = vcmp.ne.s32.totalorder %v1111, 0
        %vm1144 = vcmp.ne.s32.totalorder %v1112, 0
        %vm1145 = vcmp.ne.s32.totalorder %v1081, 15
        %vm1146 = vcmp.ne.s32.totalorder %v1082, 15
        %vm1147 = vcmp.ne.s32.totalorder %v1083, 15
        %vm1148 = vcmp.ne.s32.totalorder %v1084, 15
        %vm1149 = vcmp.ne.s32.totalorder %v1085, 15
        %vm1150 = vcmp.ne.s32.totalorder %v1086, 15
        %vm1151 = vcmp.ne.s32.totalorder %v1087, 15
        %vm1152 = vcmp.ne.s32.totalorder %v1088, 15
        %vm1153 = vcmp.ne.s32.totalorder %v1089, 15
        %vm1154 = vcmp.ne.s32.totalorder %v1090, 15
        %vm1155 = vcmp.ne.s32.totalorder %v1091, 15
        %vm1156 = vcmp.ne.s32.totalorder %v1092, 15
        %vm1157 = vcmp.ne.s32.totalorder %v1093, 15
        %vm1158 = vcmp.ne.s32.totalorder %v1094, 15
        %vm1159 = vcmp.ne.s32.totalorder %v1095, 15
        %vm1160 = vcmp.ne.s32.totalorder %v1096, 15
        %vm1161 = vcmp.ne.s32.totalorder %v1097, 15
        %vm1162 = vcmp.ne.s32.totalorder %v1098, 15
        %vm1163 = vcmp.ne.s32.totalorder %v1099, 15
        %vm1164 = vcmp.ne.s32.totalorder %v1100, 15
        %vm1165 = vcmp.ne.s32.totalorder %v1101, 15
        %vm1166 = vcmp.ne.s32.totalorder %v1102, 15
        %vm1167 = vcmp.ne.s32.totalorder %v1103, 15
        %vm1168 = vcmp.ne.s32.totalorder %v1104, 15
        %vm1169 = vcmp.ne.s32.totalorder %v1105, 15
        %vm1170 = vcmp.ne.s32.totalorder %v1106, 15
        %vm1171 = vcmp.ne.s32.totalorder %v1107, 15
        %vm1172 = vcmp.ne.s32.totalorder %v1108, 15
        %vm1173 = vcmp.ne.s32.totalorder %v1109, 15
        %vm1174 = vcmp.ne.s32.totalorder %v1110, 15
        %vm1175 = vcmp.ne.s32.totalorder %v1111, 15
        %vm1176 = vcmp.ne.s32.totalorder %v1112, 15
        %v1177 = vld [vmem:[#allocation2 + $0x7] sm:$0xff]
        %v1178 = vld [vmem:[#allocation2 + $0xf] sm:$0xff]
        %v1179 = vld [vmem:[#allocation2 + $0x17] sm:$0xff]
        %v1180 = vld [vmem:[#allocation2 + $0x1f] sm:$0xff]
        %v1181 = vld [vmem:[#allocation2 + $0x27] sm:$0xff]
        %v1182 = vld [vmem:[#allocation2 + $0x2f] sm:$0xff]
        %v1183 = vld [vmem:[#allocation2 + $0x37] sm:$0xff]
        %v1184 = vld [vmem:[#allocation2 + $0x3f] sm:$0xff]
        %v1185 = vld [vmem:[#allocation2 + $0x47] sm:$0xff]
        %v1186 = vld [vmem:[#allocation2 + $0x4f] sm:$0xff]
        %v1187 = vld [vmem:[#allocation2 + $0x57] sm:$0xff]
        %v1188 = vld [vmem:[#allocation2 + $0x5f] sm:$0xff]
        %v1189 = vld [vmem:[#allocation2 + $0x67] sm:$0xff]
        %v1190 = vld [vmem:[#allocation2 + $0x6f] sm:$0xff]
        %v1191 = vld [vmem:[#allocation2 + $0x77] sm:$0xff]
        %v1192 = vld [vmem:[#allocation2 + $0x7f] sm:$0xff]
        %v1193 = vld [vmem:[#allocation2 + $0x87] sm:$0xff]
        %v1194 = vld [vmem:[#allocation2 + $0x8f] sm:$0xff]
        %v1195 = vld [vmem:[#allocation2 + $0x97] sm:$0xff]
        %v1196 = vld [vmem:[#allocation2 + $0x9f] sm:$0xff]
        %v1197 = vld [vmem:[#allocation2 + $0xa7] sm:$0xff]
        %v1198 = vld [vmem:[#allocation2 + $0xaf] sm:$0xff]
        %v1199 = vld [vmem:[#allocation2 + $0xb7] sm:$0xff]
        %v1200 = vld [vmem:[#allocation2 + $0xbf] sm:$0xff]
        %v1201 = vld [vmem:[#allocation2 + $0xc7] sm:$0xff]
        %v1202 = vld [vmem:[#allocation2 + $0xcf] sm:$0xff]
        %v1203 = vld [vmem:[#allocation2 + $0xd7] sm:$0xff]
        %v1204 = vld [vmem:[#allocation2 + $0xdf] sm:$0xff]
        %v1205 = vld [vmem:[#allocation2 + $0xe7] sm:$0xff]
        %v1206 = vld [vmem:[#allocation2 + $0xef] sm:$0xff]
        %v1207 = vld [vmem:[#allocation2 + $0xf7] sm:$0xff]
        %v1208 = vld [vmem:[#allocation2 + $0xff] sm:$0xff]
        %v1209 = vsel %vm1113, %v1177, 0.0
        %v1210 = vsel %vm1114, %v1178, 0.0
        %v1211 = vsel %vm1115, %v1179, 0.0
        %v1212 = vsel %vm1116, %v1180, 0.0
        %v1213 = vsel %vm1117, %v1181, 0.0
        %v1214 = vsel %vm1118, %v1182, 0.0
        %v1215 = vsel %vm1119, %v1183, 0.0
        %v1216 = vsel %vm1120, %v1184, 0.0
        %v1217 = vsel %vm1121, %v1185, 0.0
        %v1218 = vsel %vm1122, %v1186, 0.0
        %v1219 = vsel %vm1123, %v1187, 0.0
        %v1220 = vsel %vm1124, %v1188, 0.0
        %v1221 = vsel %vm1125, %v1189, 0.0
        %v1222 = vsel %vm1126, %v1190, 0.0
        %v1223 = vsel %vm1127, %v1191, 0.0
        %v1224 = vsel %vm1128, %v1192, 0.0
        %v1225 = vsel %vm1129, %v1193, 0.0
        %v1226 = vsel %vm1130, %v1194, 0.0
        %v1227 = vsel %vm1131, %v1195, 0.0
        %v1228 = vsel %vm1132, %v1196, 0.0
        %v1229 = vsel %vm1133, %v1197, 0.0
        %v1230 = vsel %vm1134, %v1198, 0.0
        %v1231 = vsel %vm1135, %v1199, 0.0
        %v1232 = vsel %vm1136, %v1200, 0.0
        %v1233 = vsel %vm1137, %v1201, 0.0
        %v1234 = vsel %vm1138, %v1202, 0.0
        %v1235 = vsel %vm1139, %v1203, 0.0
        %v1236 = vsel %vm1140, %v1204, 0.0
        %v1237 = vsel %vm1141, %v1205, 0.0
        %v1238 = vsel %vm1142, %v1206, 0.0
        %v1239 = vsel %vm1143, %v1207, 0.0
        %v1240 = vsel %vm1144, %v1208, 0.0
        %v1241 = vpack.c.bf16 %v1210, %v1209
        %v1242 = vpack.c.bf16 %v1212, %v1211
        %v1243 = vpack.c.bf16 %v1214, %v1213
        %v1244 = vpack.c.bf16 %v1216, %v1215
        %v1245 = vpack.c.bf16 %v1218, %v1217
        %v1246 = vpack.c.bf16 %v1220, %v1219
        %v1247 = vpack.c.bf16 %v1222, %v1221
        %v1248 = vpack.c.bf16 %v1224, %v1223
        %v1249 = vpack.c.bf16 %v1226, %v1225
        %v1250 = vpack.c.bf16 %v1228, %v1227
        %v1251 = vpack.c.bf16 %v1230, %v1229
        %v1252 = vpack.c.bf16 %v1232, %v1231
        %v1253 = vpack.c.bf16 %v1234, %v1233
        %v1254 = vpack.c.bf16 %v1236, %v1235
        %v1255 = vpack.c.bf16 %v1238, %v1237
        %v1256 = vpack.c.bf16 %v1240, %v1239
        %v1257 = vld [vmem:[#allocation6] sm:$0xf]
        %v1258 = vld [vmem:[#allocation6 + $0x4] sm:$0xf]
        %v1259 = vld [vmem:[#allocation6 + $0x8] sm:$0xf]
        %v1260 = vld [vmem:[#allocation6 + $0xc] sm:$0xf]
        %v1261 = vld [vmem:[#allocation2 + $0x8] sm:$0xff]
        %v1262 = vld [vmem:[#allocation2 + $0x10] sm:$0xff]
        %v1263 = vld [vmem:[#allocation2 + $0x18] sm:$0xff]
        %v1264 = vld [vmem:[#allocation2 + $0x20] sm:$0xff]
        %v1265 = vld [vmem:[#allocation2 + $0x28] sm:$0xff]
        %v1266 = vld [vmem:[#allocation2 + $0x30] sm:$0xff]
        %v1267 = vld [vmem:[#allocation2 + $0x38] sm:$0xff]
        %v1268 = vld [vmem:[#allocation2 + $0x40] sm:$0xff]
        %v1269 = vld [vmem:[#allocation2 + $0x48] sm:$0xff]
        %v1270 = vld [vmem:[#allocation2 + $0x50] sm:$0xff]
        %v1271 = vld [vmem:[#allocation2 + $0x58] sm:$0xff]
        %v1272 = vld [vmem:[#allocation2 + $0x60] sm:$0xff]
        %v1273 = vld [vmem:[#allocation2 + $0x68] sm:$0xff]
        %v1274 = vld [vmem:[#allocation2 + $0x70] sm:$0xff]
        %v1275 = vld [vmem:[#allocation2 + $0x78] sm:$0xff]
        %v1276 = vld [vmem:[#allocation2 + $0x80] sm:$0xff]
        %v1277 = vld [vmem:[#allocation2 + $0x88] sm:$0xff]
        %v1278 = vld [vmem:[#allocation2 + $0x90] sm:$0xff]
        %v1279 = vld [vmem:[#allocation2 + $0x98] sm:$0xff]
        %v1280 = vld [vmem:[#allocation2 + $0xa0] sm:$0xff]
        %v1281 = vld [vmem:[#allocation2 + $0xa8] sm:$0xff]
        %v1282 = vld [vmem:[#allocation2 + $0xb0] sm:$0xff]
        %v1283 = vld [vmem:[#allocation2 + $0xb8] sm:$0xff]
        %v1284 = vld [vmem:[#allocation2 + $0xc0] sm:$0xff]
        %v1285 = vld [vmem:[#allocation2 + $0xc8] sm:$0xff]
        %v1286 = vld [vmem:[#allocation2 + $0xd0] sm:$0xff]
        %v1287 = vld [vmem:[#allocation2 + $0xd8] sm:$0xff]
        %v1288 = vld [vmem:[#allocation2 + $0xe0] sm:$0xff]
        %v1289 = vld [vmem:[#allocation2 + $0xe8] sm:$0xff]
        %v1290 = vld [vmem:[#allocation2 + $0xf0] sm:$0xff]
        %v1291 = vld [vmem:[#allocation2 + $0xf8] sm:$0xff]
        %v1292 = vld [vmem:[#allocation2 + $0x100] sm:$0xff]
        %v1293 = vpack.c.bf16 %v1262, %v1261
        %v1294 = vpack.c.bf16 %v1264, %v1263
        %v1295 = vpack.c.bf16 %v1266, %v1265
        %v1296 = vpack.c.bf16 %v1268, %v1267
        %v1297 = vpack.c.bf16 %v1270, %v1269
        %v1298 = vpack.c.bf16 %v1272, %v1271
        %v1299 = vpack.c.bf16 %v1274, %v1273
        %v1300 = vpack.c.bf16 %v1276, %v1275
        %v1301 = vpack.c.bf16 %v1278, %v1277
        %v1302 = vpack.c.bf16 %v1280, %v1279
        %v1303 = vpack.c.bf16 %v1282, %v1281
        %v1304 = vpack.c.bf16 %v1284, %v1283
        %v1305 = vpack.c.bf16 %v1286, %v1285
        %v1306 = vpack.c.bf16 %v1288, %v1287
        %v1307 = vpack.c.bf16 %v1290, %v1289
        %v1308 = vpack.c.bf16 %v1292, %v1291
        %s1309 = scalar_lea.vmem [#allocation6], 16
        %v1310 = vld [vmem:[%s1309] sm:$0xf]
        %v1311 = vld [vmem:[%s1309 + $0x4] sm:$0xf]
        %v1312 = vld [vmem:[%s1309 + $0x8] sm:$0xf]
        %v1313 = vld [vmem:[%s1309 + $0xc] sm:$0xf]
        %v1318 = vunpack.c.l.b16 %v1310
        %v1319 = vunpack.c.l.b16 %v1311
        %v1320 = vunpack.c.l.b16 %v1312
        %v1321 = vunpack.c.l.b16 %v1313
        %v1322 = vpack.c.b16 %v1319, %v1318
        %v1323 = vpack.c.b16 %v1321, %v1320
        %v1327 = vsel %vm625, %v1293, 0
        %v1330 = vsel %vm625, %v1294, 0
        %v1333 = vsel %vm625, %v1295, 0
        %v1336 = vsel %vm625, %v1296, 0
        %v1339 = vsel %vm625, %v1297, 0
        %v1342 = vsel %vm625, %v1298, 0
        %v1345 = vsel %vm625, %v1299, 0
        %v1348 = vsel %vm625, %v1300, 0
        %v1351 = vsel %vm625, %v1301, 0
        %v1354 = vsel %vm625, %v1302, 0
        %v1357 = vsel %vm625, %v1303, 0
        %v1360 = vsel %vm625, %v1304, 0
        %v1363 = vsel %vm625, %v1305, 0
        %v1366 = vsel %vm625, %v1306, 0
        %v1369 = vsel %vm625, %v1307, 0
        %v1372 = vsel %vm625, %v1308, 0
        %1374 = vmatprep.subr.bf16.mxu0 0
        %1375 = vmatpush1.bf16.msra.mxu0 %v1322
        %1376 = vmatprep.subr.bf16.mxu0 0
        %1377 = vmatpush1.bf16.msra.mxu0 %v1323
        %1378 = vmatprep.subr.bf16.mxu0 0
        %1379 = vmatpush1.bf16.msra.mxu0 0
        %1380 = vmatprep.subr.bf16.mxu0 0
        %1381 = vmatpush1.bf16.msra.mxu0 0
        %1382 = vmatprep.subr.bf16.mxu0 0
        %1383 = vmatpush1.bf16.msra.mxu0 0
        %1384 = vmatprep.subr.bf16.mxu0 0
        %1385 = vmatpush1.bf16.msra.mxu0 0
        %1386 = vmatprep.subr.bf16.mxu0 0
        %1387 = vmatpush1.bf16.msra.mxu0 0
        %1388 = vmatprep.subr.bf16.mxu0 0
        %1389 = vmatpush1.bf16.msra.mxu0 0
        %1390 = vmatprep.subr.bf16.mxu0 0
        %1391 = vmatpush1.bf16.msra.mxu0 0
        %1392 = vmatprep.subr.bf16.mxu0 0
        %1393 = vmatpush1.bf16.msra.mxu0 0
        %1394 = vmatprep.subr.bf16.mxu0 0
        %1395 = vmatpush1.bf16.msra.mxu0 0
        %1396 = vmatprep.subr.bf16.mxu0 0
        %1397 = vmatpush1.bf16.msra.mxu0 0
        %1398 = vmatprep.subr.bf16.mxu0 0
        %1399 = vmatpush1.bf16.msra.mxu0 0
        %1400 = vmatprep.subr.bf16.mxu0 0
        %1401 = vmatpush1.bf16.msra.mxu0 0
        %1402 = vmatprep.subr.bf16.mxu0 0
        %1403 = vmatpush1.bf16.msra.mxu0 0
        %1404 = vmatprep.subr.bf16.mxu0 0
        %1405 = vmatpush1.bf16.msra.mxu0 0
        %1406 = vmatprep.mubr.bf16.mxu0 0
        %1407 = vmatmul.mubr.bf16.gmra.mrb[0].mxu0 %v1327
        %v1408 = vpop.f32.mrb[0].mxu0
        %v1409 = vadd.f32 0.0, %v1408
        %v1410 = vpop.f32.mrb[0].mxu0
        %v1411 = vpop.f32.mrb[0].mxu0
        %v1412 = vadd.f32 0.0, %v1411
        %v1413 = vpop.f32.mrb[0].mxu0
        %1414 = vmatprep.mubr.bf16.mxu0 0
        %1415 = vmatmul.mubr.bf16.gmra.mrb[0].mxu0 %v1330
        %v1416 = vpop.f32.mrb[0].mxu0
        %v1417 = vadd.f32 0.0, %v1416
        %v1418 = vpop.f32.mrb[0].mxu0
        %v1419 = vpop.f32.mrb[0].mxu0
        %v1420 = vadd.f32 0.0, %v1419
        %v1421 = vpop.f32.mrb[0].mxu0
        %1422 = vmatprep.mubr.bf16.mxu0 0
        %1423 = vmatmul.mubr.bf16.gmra.mrb[0].mxu0 %v1333
        %v1424 = vpop.f32.mrb[0].mxu0
        %v1425 = vadd.f32 0.0, %v1424
        %v1426 = vpop.f32.mrb[0].mxu0
        %v1427 = vpop.f32.mrb[0].mxu0
        %v1428 = vadd.f32 0.0, %v1427
        %v1429 = vpop.f32.mrb[0].mxu0
        %1430 = vmatprep.mubr.bf16.mxu0 0
        %1431 = vmatmul.mubr.bf16.gmra.mrb[0].mxu0 %v1336
        %v1432 = vpop.f32.mrb[0].mxu0
        %v1433 = vadd.f32 0.0, %v1432
        %v1434 = vpop.f32.mrb[0].mxu0
        %v1435 = vpop.f32.mrb[0].mxu0
        %v1436 = vadd.f32 0.0, %v1435
        %v1437 = vpop.f32.mrb[0].mxu0
        %1438 = vmatprep.mubr.bf16.mxu0 0
        %1439 = vmatmul.mubr.bf16.gmra.mrb[0].mxu0 %v1339
        %v1440 = vpop.f32.mrb[0].mxu0
        %v1441 = vadd.f32 0.0, %v1440
        %v1442 = vpop.f32.mrb[0].mxu0
        %v1443 = vpop.f32.mrb[0].mxu0
        %v1444 = vadd.f32 0.0, %v1443
        %v1445 = vpop.f32.mrb[0].mxu0
        %1446 = vmatprep.mubr.bf16.mxu0 0
        %1447 = vmatmul.mubr.bf16.gmra.mrb[0].mxu0 %v1342
        %v1448 = vpop.f32.mrb[0].mxu0
        %v1449 = vadd.f32 0.0, %v1448
        %v1450 = vpop.f32.mrb[0].mxu0
        %v1451 = vpop.f32.mrb[0].mxu0
        %v1452 = vadd.f32 0.0, %v1451
        %v1453 = vpop.f32.mrb[0].mxu0
        %1454 = vmatprep.mubr.bf16.mxu0 0
        %1455 = vmatmul.mubr.bf16.gmra.mrb[0].mxu0 %v1345
        %v1456 = vpop.f32.mrb[0].mxu0
        %v1457 = vadd.f32 0.0, %v1456
        %v1458 = vpop.f32.mrb[0].mxu0
        %v1459 = vpop.f32.mrb[0].mxu0
        %v1460 = vadd.f32 0.0, %v1459
        %v1461 = vpop.f32.mrb[0].mxu0
        %1462 = vmatprep.mubr.bf16.mxu0 0
        %1463 = vmatmul.mubr.bf16.gmra.mrb[0].mxu0 %v1348
        %v1464 = vpop.f32.mrb[0].mxu0
        %v1465 = vadd.f32 0.0, %v1464
        %v1466 = vpop.f32.mrb[0].mxu0
        %v1467 = vpop.f32.mrb[0].mxu0
        %v1468 = vadd.f32 0.0, %v1467
        %v1469 = vpop.f32.mrb[0].mxu0
        %1470 = vmatprep.mubr.bf16.mxu0 0
        %1471 = vmatmul.mubr.bf16.gmra.mrb[0].mxu0 %v1351
        %v1472 = vpop.f32.mrb[0].mxu0
        %v1473 = vadd.f32 0.0, %v1472
        %v1474 = vpop.f32.mrb[0].mxu0
        %v1475 = vpop.f32.mrb[0].mxu0
        %v1476 = vadd.f32 0.0, %v1475
        %v1477 = vpop.f32.mrb[0].mxu0
        %1478 = vmatprep.mubr.bf16.mxu0 0
        %1479 = vmatmul.mubr.bf16.gmra.mrb[0].mxu0 %v1354
        %v1480 = vpop.f32.mrb[0].mxu0
        %v1481 = vadd.f32 0.0, %v1480
        %v1482 = vpop.f32.mrb[0].mxu0
        %v1483 = vpop.f32.mrb[0].mxu0
        %v1484 = vadd.f32 0.0, %v1483
        %v1485 = vpop.f32.mrb[0].mxu0
        %1486 = vmatprep.mubr.bf16.mxu0 0
        %1487 = vmatmul.mubr.bf16.gmra.mrb[0].mxu0 %v1357
        %v1488 = vpop.f32.mrb[0].mxu0
        %v1489 = vadd.f32 0.0, %v1488
        %v1490 = vpop.f32.mrb[0].mxu0
        %v1491 = vpop.f32.mrb[0].mxu0
        %v1492 = vadd.f32 0.0, %v1491
        %v1493 = vpop.f32.mrb[0].mxu0
        %1494 = vmatprep.mubr.bf16.mxu0 0
        %1495 = vmatmul.mubr.bf16.gmra.mrb[0].mxu0 %v1360
        %v1496 = vpop.f32.mrb[0].mxu0
        %v1497 = vadd.f32 0.0, %v1496
        %v1498 = vpop.f32.mrb[0].mxu0
        %v1499 = vpop.f32.mrb[0].mxu0
        %v1500 = vadd.f32 0.0, %v1499
        %v1501 = vpop.f32.mrb[0].mxu0
        %1502 = vmatprep.mubr.bf16.mxu0 0
        %1503 = vmatmul.mubr.bf16.gmra.mrb[0].mxu0 %v1363
        %v1504 = vpop.f32.mrb[0].mxu0
        %v1505 = vadd.f32 0.0, %v1504
        %v1506 = vpop.f32.mrb[0].mxu0
        %v1507 = vpop.f32.mrb[0].mxu0
        %v1508 = vadd.f32 0.0, %v1507
        %v1509 = vpop.f32.mrb[0].mxu0
        %1510 = vmatprep.mubr.bf16.mxu0 0
        %1511 = vmatmul.mubr.bf16.gmra.mrb[0].mxu0 %v1366
        %v1512 = vpop.f32.mrb[0].mxu0
        %v1513 = vadd.f32 0.0, %v1512
        %v1514 = vpop.f32.mrb[0].mxu0
        %v1515 = vpop.f32.mrb[0].mxu0
        %v1516 = vadd.f32 0.0, %v1515
        %v1517 = vpop.f32.mrb[0].mxu0
        %1518 = vmatprep.mubr.bf16.mxu0 0
        %1519 = vmatmul.mubr.bf16.gmra.mrb[0].mxu0 %v1369
        %v1520 = vpop.f32.mrb[0].mxu0
        %v1521 = vadd.f32 0.0, %v1520
        %v1522 = vpop.f32.mrb[0].mxu0
        %v1523 = vpop.f32.mrb[0].mxu0
        %v1524 = vadd.f32 0.0, %v1523
        %v1525 = vpop.f32.mrb[0].mxu0
        %1526 = vmatprep.mubr.bf16.mxu0 0
        %1527 = vmatmul.mubr.bf16.gmra.mrb[0].mxu0 %v1372
        %v1528 = vpop.f32.mrb[0].mxu0
        %v1529 = vadd.f32 0.0, %v1528
        %v1530 = vpop.f32.mrb[0].mxu0
        %v1531 = vpop.f32.mrb[0].mxu0
        %v1532 = vadd.f32 0.0, %v1531
        %v1533 = vpop.f32.mrb[0].mxu0
        %1534 = vdwg.mxu0
        %v1539 = vunpack.c.l.b16 %v1257
        %v1540 = vunpack.c.l.b16 %v1258
        %v1541 = vunpack.c.l.b16 %v1259
        %v1542 = vunpack.c.l.b16 %v1260
        %v1543 = vpack.c.b16 %v1540, %v1539
        %v1544 = vpack.c.b16 %v1542, %v1541
        %v1548 = vsel %vm625, %v1241, 0
        %v1551 = vsel %vm625, %v1242, 0
        %v1554 = vsel %vm625, %v1243, 0
        %v1557 = vsel %vm625, %v1244, 0
        %v1560 = vsel %vm625, %v1245, 0
        %v1563 = vsel %vm625, %v1246, 0
        %v1566 = vsel %vm625, %v1247, 0
        %v1569 = vsel %vm625, %v1248, 0
        %v1572 = vsel %vm625, %v1249, 0
        %v1575 = vsel %vm625, %v1250, 0
        %v1578 = vsel %vm625, %v1251, 0
        %v1581 = vsel %vm625, %v1252, 0
        %v1584 = vsel %vm625, %v1253, 0
        %v1587 = vsel %vm625, %v1254, 0
        %v1590 = vsel %vm625, %v1255, 0
        %v1593 = vsel %vm625, %v1256, 0
        %1595 = vmatprep.subr.bf16.mxu0 0
        %1596 = vmatpush1.bf16.msra.mxu0 %v1543
        %1597 = vmatprep.subr.bf16.mxu0 0
        %1598 = vmatpush1.bf16.msra.mxu0 %v1544
        %1599 = vmatprep.subr.bf16.mxu0 0
        %1600 = vmatpush1.bf16.msra.mxu0 0
        %1601 = vmatprep.subr.bf16.mxu0 0
        %1602 = vmatpush1.bf16.msra.mxu0 0
        %1603 = vmatprep.subr.bf16.mxu0 0
        %1604 = vmatpush1.bf16.msra.mxu0 0
        %1605 = vmatprep.subr.bf16.mxu0 0
        %1606 = vmatpush1.bf16.msra.mxu0 0
        %1607 = vmatprep.subr.bf16.mxu0 0
        %1608 = vmatpush1.bf16.msra.mxu0 0
        %1609 = vmatprep.subr.bf16.mxu0 0
        %1610 = vmatpush1.bf16.msra.mxu0 0
        %1611 = vmatprep.subr.bf16.mxu0 0
        %1612 = vmatpush1.bf16.msra.mxu0 0
        %1613 = vmatprep.subr.bf16.mxu0 0
        %1614 = vmatpush1.bf16.msra.mxu0 0
        %1615 = vmatprep.subr.bf16.mxu0 0
        %1616 = vmatpush1.bf16.msra.mxu0 0
        %1617 = vmatprep.subr.bf16.mxu0 0
        %1618 = vmatpush1.bf16.msra.mxu0 0
        %1619 = vmatprep.subr.bf16.mxu0 0
        %1620 = vmatpush1.bf16.msra.mxu0 0
        %1621 = vmatprep.subr.bf16.mxu0 0
        %1622 = vmatpush1.bf16.msra.mxu0 0
        %1623 = vmatprep.subr.bf16.mxu0 0
        %1624 = vmatpush1.bf16.msra.mxu0 0
        %1625 = vmatprep.subr.bf16.mxu0 0
        %1626 = vmatpush1.bf16.msra.mxu0 0
        %1627 = vmatprep.mubr.bf16.mxu0 0
        %1628 = vmatmul.mubr.bf16.gmra.mrb[0].mxu0 %v1548
        %v1629 = vpop.f32.mrb[0].mxu0
        %v1630 = vadd.f32 %v1409, %v1629
        %v1631 = vpop.f32.mrb[0].mxu0
        %v1632 = vpop.f32.mrb[0].mxu0
        %v1633 = vadd.f32 %v1412, %v1632
        %v1634 = vpop.f32.mrb[0].mxu0
        %1635 = vmatprep.mubr.bf16.mxu0 0
        %1636 = vmatmul.mubr.bf16.gmra.mrb[0].mxu0 %v1551
        %v1637 = vpop.f32.mrb[0].mxu0
        %v1638 = vadd.f32 %v1417, %v1637
        %v1639 = vpop.f32.mrb[0].mxu0
        %v1640 = vpop.f32.mrb[0].mxu0
        %v1641 = vadd.f32 %v1420, %v1640
        %v1642 = vpop.f32.mrb[0].mxu0
        %1643 = vmatprep.mubr.bf16.mxu0 0
        %1644 = vmatmul.mubr.bf16.gmra.mrb[0].mxu0 %v1554
        %v1645 = vpop.f32.mrb[0].mxu0
        %v1646 = vadd.f32 %v1425, %v1645
        %v1647 = vpop.f32.mrb[0].mxu0
        %v1648 = vpop.f32.mrb[0].mxu0
        %v1649 = vadd.f32 %v1428, %v1648
        %v1650 = vpop.f32.mrb[0].mxu0
        %1651 = vmatprep.mubr.bf16.mxu0 0
        %1652 = vmatmul.mubr.bf16.gmra.mrb[0].mxu0 %v1557
        %v1653 = vpop.f32.mrb[0].mxu0
        %v1654 = vadd.f32 %v1433, %v1653
        %v1655 = vpop.f32.mrb[0].mxu0
        %v1656 = vpop.f32.mrb[0].mxu0
        %v1657 = vadd.f32 %v1436, %v1656
        %v1658 = vpop.f32.mrb[0].mxu0
        %1659 = vmatprep.mubr.bf16.mxu0 0
        %1660 = vmatmul.mubr.bf16.gmra.mrb[0].mxu0 %v1560
        %v1661 = vpop.f32.mrb[0].mxu0
        %v1662 = vadd.f32 %v1441, %v1661
        %v1663 = vpop.f32.mrb[0].mxu0
        %v1664 = vpop.f32.mrb[0].mxu0
        %v1665 = vadd.f32 %v1444, %v1664
        %v1666 = vpop.f32.mrb[0].mxu0
        %1667 = vmatprep.mubr.bf16.mxu0 0
        %1668 = vmatmul.mubr.bf16.gmra.mrb[0].mxu0 %v1563
        %v1669 = vpop.f32.mrb[0].mxu0
        %v1670 = vadd.f32 %v1449, %v1669
        %v1671 = vpop.f32.mrb[0].mxu0
        %v1672 = vpop.f32.mrb[0].mxu0
        %v1673 = vadd.f32 %v1452, %v1672
        %v1674 = vpop.f32.mrb[0].mxu0
        %1675 = vmatprep.mubr.bf16.mxu0 0
        %1676 = vmatmul.mubr.bf16.gmra.mrb[0].mxu0 %v1566
        %v1677 = vpop.f32.mrb[0].mxu0
        %v1678 = vadd.f32 %v1457, %v1677
        %v1679 = vpop.f32.mrb[0].mxu0
        %v1680 = vpop.f32.mrb[0].mxu0
        %v1681 = vadd.f32 %v1460, %v1680
        %v1682 = vpop.f32.mrb[0].mxu0
        %1683 = vmatprep.mubr.bf16.mxu0 0
        %1684 = vmatmul.mubr.bf16.gmra.mrb[0].mxu0 %v1569
        %v1685 = vpop.f32.mrb[0].mxu0
        %v1686 = vadd.f32 %v1465, %v1685
        %v1687 = vpop.f32.mrb[0].mxu0
        %v1688 = vpop.f32.mrb[0].mxu0
        %v1689 = vadd.f32 %v1468, %v1688
        %v1690 = vpop.f32.mrb[0].mxu0
        %1691 = vmatprep.mubr.bf16.mxu0 0
        %1692 = vmatmul.mubr.bf16.gmra.mrb[0].mxu0 %v1572
        %v1693 = vpop.f32.mrb[0].mxu0
        %v1694 = vadd.f32 %v1473, %v1693
        %v1695 = vpop.f32.mrb[0].mxu0
        %v1696 = vpop.f32.mrb[0].mxu0
        %v1697 = vadd.f32 %v1476, %v1696
        %v1698 = vpop.f32.mrb[0].mxu0
        %1699 = vmatprep.mubr.bf16.mxu0 0
        %1700 = vmatmul.mubr.bf16.gmra.mrb[0].mxu0 %v1575
        %v1701 = vpop.f32.mrb[0].mxu0
        %v1702 = vadd.f32 %v1481, %v1701
        %v1703 = vpop.f32.mrb[0].mxu0
        %v1704 = vpop.f32.mrb[0].mxu0
        %v1705 = vadd.f32 %v1484, %v1704
        %v1706 = vpop.f32.mrb[0].mxu0
        %1707 = vmatprep.mubr.bf16.mxu0 0
        %1708 = vmatmul.mubr.bf16.gmra.mrb[0].mxu0 %v1578
        %v1709 = vpop.f32.mrb[0].mxu0
        %v1710 = vadd.f32 %v1489, %v1709
        %v1711 = vpop.f32.mrb[0].mxu0
        %v1712 = vpop.f32.mrb[0].mxu0
        %v1713 = vadd.f32 %v1492, %v1712
        %v1714 = vpop.f32.mrb[0].mxu0
        %1715 = vmatprep.mubr.bf16.mxu0 0
        %1716 = vmatmul.mubr.bf16.gmra.mrb[0].mxu0 %v1581
        %v1717 = vpop.f32.mrb[0].mxu0
        %v1718 = vadd.f32 %v1497, %v1717
        %v1719 = vpop.f32.mrb[0].mxu0
        %v1720 = vpop.f32.mrb[0].mxu0
        %v1721 = vadd.f32 %v1500, %v1720
        %v1722 = vpop.f32.mrb[0].mxu0
        %1723 = vmatprep.mubr.bf16.mxu0 0
        %1724 = vmatmul.mubr.bf16.gmra.mrb[0].mxu0 %v1584
        %v1725 = vpop.f32.mrb[0].mxu0
        %v1726 = vadd.f32 %v1505, %v1725
        %v1727 = vpop.f32.mrb[0].mxu0
        %v1728 = vpop.f32.mrb[0].mxu0
        %v1729 = vadd.f32 %v1508, %v1728
        %v1730 = vpop.f32.mrb[0].mxu0
        %1731 = vmatprep.mubr.bf16.mxu0 0
        %1732 = vmatmul.mubr.bf16.gmra.mrb[0].mxu0 %v1587
        %v1733 = vpop.f32.mrb[0].mxu0
        %v1734 = vadd.f32 %v1513, %v1733
        %v1735 = vpop.f32.mrb[0].mxu0
        %v1736 = vpop.f32.mrb[0].mxu0
        %v1737 = vadd.f32 %v1516, %v1736
        %v1738 = vpop.f32.mrb[0].mxu0
        %1739 = vmatprep.mubr.bf16.mxu0 0
        %1740 = vmatmul.mubr.bf16.gmra.mrb[0].mxu0 %v1590
        %v1741 = vpop.f32.mrb[0].mxu0
        %v1742 = vadd.f32 %v1521, %v1741
        %v1743 = vpop.f32.mrb[0].mxu0
        %v1744 = vpop.f32.mrb[0].mxu0
        %v1745 = vadd.f32 %v1524, %v1744
        %v1746 = vpop.f32.mrb[0].mxu0
        %1747 = vmatprep.mubr.bf16.mxu0 0
        %1748 = vmatmul.mubr.bf16.gmra.mrb[0].mxu0 %v1593
        %v1749 = vpop.f32.mrb[0].mxu0
        %v1750 = vadd.f32 %v1529, %v1749
        %v1751 = vpop.f32.mrb[0].mxu0
        %v1752 = vpop.f32.mrb[0].mxu0
        %v1753 = vadd.f32 %v1532, %v1752
        %v1754 = vpop.f32.mrb[0].mxu0
        %1755 = vdwg.mxu0
        %v1756 = vld [vmem:[#allocation2 + $0x9] sm:$0xff]
        %v1757 = vld [vmem:[#allocation2 + $0x11] sm:$0xff]
        %v1758 = vld [vmem:[#allocation2 + $0x19] sm:$0xff]
        %v1759 = vld [vmem:[#allocation2 + $0x21] sm:$0xff]
        %v1760 = vld [vmem:[#allocation2 + $0x29] sm:$0xff]
        %v1761 = vld [vmem:[#allocation2 + $0x31] sm:$0xff]
        %v1762 = vld [vmem:[#allocation2 + $0x39] sm:$0xff]
        %v1763 = vld [vmem:[#allocation2 + $0x41] sm:$0xff]
        %v1764 = vld [vmem:[#allocation2 + $0x49] sm:$0xff]
        %v1765 = vld [vmem:[#allocation2 + $0x51] sm:$0xff]
        %v1766 = vld [vmem:[#allocation2 + $0x59] sm:$0xff]
        %v1767 = vld [vmem:[#allocation2 + $0x61] sm:$0xff]
        %v1768 = vld [vmem:[#allocation2 + $0x69] sm:$0xff]
        %v1769 = vld [vmem:[#allocation2 + $0x71] sm:$0xff]
        %v1770 = vld [vmem:[#allocation2 + $0x79] sm:$0xff]
        %v1771 = vld [vmem:[#allocation2 + $0x81] sm:$0xff]
        %v1772 = vld [vmem:[#allocation2 + $0x89] sm:$0xff]
        %v1773 = vld [vmem:[#allocation2 + $0x91] sm:$0xff]
        %v1774 = vld [vmem:[#allocation2 + $0x99] sm:$0xff]
        %v1775 = vld [vmem:[#allocation2 + $0xa1] sm:$0xff]
        %v1776 = vld [vmem:[#allocation2 + $0xa9] sm:$0xff]
        %v1777 = vld [vmem:[#allocation2 + $0xb1] sm:$0xff]
        %v1778 = vld [vmem:[#allocation2 + $0xb9] sm:$0xff]
        %v1779 = vld [vmem:[#allocation2 + $0xc1] sm:$0xff]
        %v1780 = vld [vmem:[#allocation2 + $0xc9] sm:$0xff]
        %v1781 = vld [vmem:[#allocation2 + $0xd1] sm:$0xff]
        %v1782 = vld [vmem:[#allocation2 + $0xd9] sm:$0xff]
        %v1783 = vld [vmem:[#allocation2 + $0xe1] sm:$0xff]
        %v1784 = vld [vmem:[#allocation2 + $0xe9] sm:$0xff]
        %v1785 = vld [vmem:[#allocation2 + $0xf1] sm:$0xff]
        %v1786 = vld [vmem:[#allocation2 + $0xf9] sm:$0xff]
        %v1787 = vld [vmem:[#allocation2 + $0x101] sm:$0xff]
        %v1788 = vsel %vm1145, %v1756, 0.0
        %v1789 = vsel %vm1146, %v1757, 0.0
        %v1790 = vsel %vm1147, %v1758, 0.0
        %v1791 = vsel %vm1148, %v1759, 0.0
        %v1792 = vsel %vm1149, %v1760, 0.0
        %v1793 = vsel %vm1150, %v1761, 0.0
        %v1794 = vsel %vm1151, %v1762, 0.0
        %v1795 = vsel %vm1152, %v1763, 0.0
        %v1796 = vsel %vm1153, %v1764, 0.0
        %v1797 = vsel %vm1154, %v1765, 0.0
        %v1798 = vsel %vm1155, %v1766, 0.0
        %v1799 = vsel %vm1156, %v1767, 0.0
        %v1800 = vsel %vm1157, %v1768, 0.0
        %v1801 = vsel %vm1158, %v1769, 0.0
        %v1802 = vsel %vm1159, %v1770, 0.0
        %v1803 = vsel %vm1160, %v1771, 0.0
        %v1804 = vsel %vm1161, %v1772, 0.0
        %v1805 = vsel %vm1162, %v1773, 0.0
        %v1806 = vsel %vm1163, %v1774, 0.0
        %v1807 = vsel %vm1164, %v1775, 0.0
        %v1808 = vsel %vm1165, %v1776, 0.0
        %v1809 = vsel %vm1166, %v1777, 0.0
        %v1810 = vsel %vm1167, %v1778, 0.0
        %v1811 = vsel %vm1168, %v1779, 0.0
        %v1812 = vsel %vm1169, %v1780, 0.0
        %v1813 = vsel %vm1170, %v1781, 0.0
        %v1814 = vsel %vm1171, %v1782, 0.0
        %v1815 = vsel %vm1172, %v1783, 0.0
        %v1816 = vsel %vm1173, %v1784, 0.0
        %v1817 = vsel %vm1174, %v1785, 0.0
        %v1818 = vsel %vm1175, %v1786, 0.0
        %v1819 = vsel %vm1176, %v1787, 0.0
        %v1820 = vpack.c.bf16 %v1789, %v1788
        %v1821 = vpack.c.bf16 %v1791, %v1790
        %v1822 = vpack.c.bf16 %v1793, %v1792
        %v1823 = vpack.c.bf16 %v1795, %v1794
        %v1824 = vpack.c.bf16 %v1797, %v1796
        %v1825 = vpack.c.bf16 %v1799, %v1798
        %v1826 = vpack.c.bf16 %v1801, %v1800
        %v1827 = vpack.c.bf16 %v1803, %v1802
        %v1828 = vpack.c.bf16 %v1805, %v1804
        %v1829 = vpack.c.bf16 %v1807, %v1806
        %v1830 = vpack.c.bf16 %v1809, %v1808
        %v1831 = vpack.c.bf16 %v1811, %v1810
        %v1832 = vpack.c.bf16 %v1813, %v1812
        %v1833 = vpack.c.bf16 %v1815, %v1814
        %v1834 = vpack.c.bf16 %v1817, %v1816
        %v1835 = vpack.c.bf16 %v1819, %v1818
        %s1836 = scalar_lea.vmem [#allocation6], 32
        %v1837 = vld [vmem:[%s1836] sm:$0xf]
        %v1838 = vld [vmem:[%s1836 + $0x4] sm:$0xf]
        %v1839 = vld [vmem:[%s1836 + $0x8] sm:$0xf]
        %v1840 = vld [vmem:[%s1836 + $0xc] sm:$0xf]
        %v1845 = vunpack.c.l.b16 %v1837
        %v1846 = vunpack.c.l.b16 %v1838
        %v1847 = vunpack.c.l.b16 %v1839
        %v1848 = vunpack.c.l.b16 %v1840
        %v1849 = vpack.c.b16 %v1846, %v1845
        %v1850 = vpack.c.b16 %v1848, %v1847
        %v1854 = vsel %vm625, %v1820, 0
        %v1857 = vsel %vm625, %v1821, 0
        %v1860 = vsel %vm625, %v1822, 0
        %v1863 = vsel %vm625, %v1823, 0
        %v1866 = vsel %vm625, %v1824, 0
        %v1869 = vsel %vm625, %v1825, 0
        %v1872 = vsel %vm625, %v1826, 0
        %v1875 = vsel %vm625, %v1827, 0
        %v1878 = vsel %vm625, %v1828, 0
        %v1881 = vsel %vm625, %v1829, 0
        %v1884 = vsel %vm625, %v1830, 0
        %v1887 = vsel %vm625, %v1831, 0
        %v1890 = vsel %vm625, %v1832, 0
        %v1893 = vsel %vm625, %v1833, 0
        %v1896 = vsel %vm625, %v1834, 0
        %v1899 = vsel %vm625, %v1835, 0
        %1901 = vmatprep.subr.bf16.mxu0 0
        %1902 = vmatpush1.bf16.msra.mxu0 %v1849
        %1903 = vmatprep.subr.bf16.mxu0 0
        %1904 = vmatpush1.bf16.msra.mxu0 %v1850
        %1905 = vmatprep.subr.bf16.mxu0 0
        %1906 = vmatpush1.bf16.msra.mxu0 0
        %1907 = vmatprep.subr.bf16.mxu0 0
        %1908 = vmatpush1.bf16.msra.mxu0 0
        %1909 = vmatprep.subr.bf16.mxu0 0
        %1910 = vmatpush1.bf16.msra.mxu0 0
        %1911 = vmatprep.subr.bf16.mxu0 0
        %1912 = vmatpush1.bf16.msra.mxu0 0
        %1913 = vmatprep.subr.bf16.mxu0 0
        %1914 = vmatpush1.bf16.msra.mxu0 0
        %1915 = vmatprep.subr.bf16.mxu0 0
        %1916 = vmatpush1.bf16.msra.mxu0 0
        %1917 = vmatprep.subr.bf16.mxu0 0
        %1918 = vmatpush1.bf16.msra.mxu0 0
        %1919 = vmatprep.subr.bf16.mxu0 0
        %1920 = vmatpush1.bf16.msra.mxu0 0
        %1921 = vmatprep.subr.bf16.mxu0 0
        %1922 = vmatpush1.bf16.msra.mxu0 0
        %1923 = vmatprep.subr.bf16.mxu0 0
        %1924 = vmatpush1.bf16.msra.mxu0 0
        %1925 = vmatprep.subr.bf16.mxu0 0
        %1926 = vmatpush1.bf16.msra.mxu0 0
        %1927 = vmatprep.subr.bf16.mxu0 0
        %1928 = vmatpush1.bf16.msra.mxu0 0
        %1929 = vmatprep.subr.bf16.mxu0 0
        %1930 = vmatpush1.bf16.msra.mxu0 0
        %1931 = vmatprep.subr.bf16.mxu0 0
        %1932 = vmatpush1.bf16.msra.mxu0 0
        %1933 = vmatprep.mubr.bf16.mxu0 0
        %1934 = vmatmul.mubr.bf16.gmra.mrb[0].mxu0 %v1854
        %v1935 = vpop.f32.mrb[0].mxu0
        %v1936 = vadd.f32 0.0, %v1935
        %v1937 = vpop.f32.mrb[0].mxu0
        %v1938 = vpop.f32.mrb[0].mxu0
        %v1939 = vadd.f32 0.0, %v1938
        %v1940 = vpop.f32.mrb[0].mxu0
        %1941 = vmatprep.mubr.bf16.mxu0 0
        %1942 = vmatmul.mubr.bf16.gmra.mrb[0].mxu0 %v1857
        %v1943 = vpop.f32.mrb[0].mxu0
        %v1944 = vadd.f32 0.0, %v1943
        %v1945 = vpop.f32.mrb[0].mxu0
        %v1946 = vpop.f32.mrb[0].mxu0
        %v1947 = vadd.f32 0.0, %v1946
        %v1948 = vpop.f32.mrb[0].mxu0
        %1949 = vmatprep.mubr.bf16.mxu0 0
        %1950 = vmatmul.mubr.bf16.gmra.mrb[0].mxu0 %v1860
        %v1951 = vpop.f32.mrb[0].mxu0
        %v1952 = vadd.f32 0.0, %v1951
        %v1953 = vpop.f32.mrb[0].mxu0
        %v1954 = vpop.f32.mrb[0].mxu0
        %v1955 = vadd.f32 0.0, %v1954
        %v1956 = vpop.f32.mrb[0].mxu0
        %1957 = vmatprep.mubr.bf16.mxu0 0
        %1958 = vmatmul.mubr.bf16.gmra.mrb[0].mxu0 %v1863
        %v1959 = vpop.f32.mrb[0].mxu0
        %v1960 = vadd.f32 0.0, %v1959
        %v1961 = vpop.f32.mrb[0].mxu0
        %v1962 = vpop.f32.mrb[0].mxu0
        %v1963 = vadd.f32 0.0, %v1962
        %v1964 = vpop.f32.mrb[0].mxu0
        %1965 = vmatprep.mubr.bf16.mxu0 0
        %1966 = vmatmul.mubr.bf16.gmra.mrb[0].mxu0 %v1866
        %v1967 = vpop.f32.mrb[0].mxu0
        %v1968 = vadd.f32 0.0, %v1967
        %v1969 = vpop.f32.mrb[0].mxu0
        %v1970 = vpop.f32.mrb[0].mxu0
        %v1971 = vadd.f32 0.0, %v1970
        %v1972 = vpop.f32.mrb[0].mxu0
        %1973 = vmatprep.mubr.bf16.mxu0 0
        %1974 = vmatmul.mubr.bf16.gmra.mrb[0].mxu0 %v1869
        %v1975 = vpop.f32.mrb[0].mxu0
        %v1976 = vadd.f32 0.0, %v1975
        %v1977 = vpop.f32.mrb[0].mxu0
        %v1978 = vpop.f32.mrb[0].mxu0
        %v1979 = vadd.f32 0.0, %v1978
        %v1980 = vpop.f32.mrb[0].mxu0
        %1981 = vmatprep.mubr.bf16.mxu0 0
        %1982 = vmatmul.mubr.bf16.gmra.mrb[0].mxu0 %v1872
        %v1983 = vpop.f32.mrb[0].mxu0
        %v1984 = vadd.f32 0.0, %v1983
        %v1985 = vpop.f32.mrb[0].mxu0
        %v1986 = vpop.f32.mrb[0].mxu0
        %v1987 = vadd.f32 0.0, %v1986
        %v1988 = vpop.f32.mrb[0].mxu0
        %1989 = vmatprep.mubr.bf16.mxu0 0
        %1990 = vmatmul.mubr.bf16.gmra.mrb[0].mxu0 %v1875
        %v1991 = vpop.f32.mrb[0].mxu0
        %v1992 = vadd.f32 0.0, %v1991
        %v1993 = vpop.f32.mrb[0].mxu0
        %v1994 = vpop.f32.mrb[0].mxu0
        %v1995 = vadd.f32 0.0, %v1994
        %v1996 = vpop.f32.mrb[0].mxu0
        %1997 = vmatprep.mubr.bf16.mxu0 0
        %1998 = vmatmul.mubr.bf16.gmra.mrb[0].mxu0 %v1878
        %v1999 = vpop.f32.mrb[0].mxu0
        %v2000 = vadd.f32 0.0, %v1999
        %v2001 = vpop.f32.mrb[0].mxu0
        %v2002 = vpop.f32.mrb[0].mxu0
        %v2003 = vadd.f32 0.0, %v2002
        %v2004 = vpop.f32.mrb[0].mxu0
        %2005 = vmatprep.mubr.bf16.mxu0 0
        %2006 = vmatmul.mubr.bf16.gmra.mrb[0].mxu0 %v1881
        %v2007 = vpop.f32.mrb[0].mxu0
        %v2008 = vadd.f32 0.0, %v2007
        %v2009 = vpop.f32.mrb[0].mxu0
        %v2010 = vpop.f32.mrb[0].mxu0
        %v2011 = vadd.f32 0.0, %v2010
        %v2012 = vpop.f32.mrb[0].mxu0
        %2013 = vmatprep.mubr.bf16.mxu0 0
        %2014 = vmatmul.mubr.bf16.gmra.mrb[0].mxu0 %v1884
        %v2015 = vpop.f32.mrb[0].mxu0
        %v2016 = vadd.f32 0.0, %v2015
        %v2017 = vpop.f32.mrb[0].mxu0
        %v2018 = vpop.f32.mrb[0].mxu0
        %v2019 = vadd.f32 0.0, %v2018
        %v2020 = vpop.f32.mrb[0].mxu0
        %2021 = vmatprep.mubr.bf16.mxu0 0
        %2022 = vmatmul.mubr.bf16.gmra.mrb[0].mxu0 %v1887
        %v2023 = vpop.f32.mrb[0].mxu0
        %v2024 = vadd.f32 0.0, %v2023
        %v2025 = vpop.f32.mrb[0].mxu0
        %v2026 = vpop.f32.mrb[0].mxu0
        %v2027 = vadd.f32 0.0, %v2026
        %v2028 = vpop.f32.mrb[0].mxu0
        %2029 = vmatprep.mubr.bf16.mxu0 0
        %2030 = vmatmul.mubr.bf16.gmra.mrb[0].mxu0 %v1890
        %v2031 = vpop.f32.mrb[0].mxu0
        %v2032 = vadd.f32 0.0, %v2031
        %v2033 = vpop.f32.mrb[0].mxu0
        %v2034 = vpop.f32.mrb[0].mxu0
        %v2035 = vadd.f32 0.0, %v2034
        %v2036 = vpop.f32.mrb[0].mxu0
        %2037 = vmatprep.mubr.bf16.mxu0 0
        %2038 = vmatmul.mubr.bf16.gmra.mrb[0].mxu0 %v1893
        %v2039 = vpop.f32.mrb[0].mxu0
        %v2040 = vadd.f32 0.0, %v2039
        %v2041 = vpop.f32.mrb[0].mxu0
        %v2042 = vpop.f32.mrb[0].mxu0
        %v2043 = vadd.f32 0.0, %v2042
        %v2044 = vpop.f32.mrb[0].mxu0
        %2045 = vmatprep.mubr.bf16.mxu0 0
        %2046 = vmatmul.mubr.bf16.gmra.mrb[0].mxu0 %v1896
        %v2047 = vpop.f32.mrb[0].mxu0
        %v2048 = vadd.f32 0.0, %v2047
        %v2049 = vpop.f32.mrb[0].mxu0
        %v2050 = vpop.f32.mrb[0].mxu0
        %v2051 = vadd.f32 0.0, %v2050
        %v2052 = vpop.f32.mrb[0].mxu0
        %2053 = vmatprep.mubr.bf16.mxu0 0
        %2054 = vmatmul.mubr.bf16.gmra.mrb[0].mxu0 %v1899
        %v2055 = vpop.f32.mrb[0].mxu0
        %v2056 = vadd.f32 0.0, %v2055
        %v2057 = vpop.f32.mrb[0].mxu0
        %v2058 = vpop.f32.mrb[0].mxu0
        %v2059 = vadd.f32 0.0, %v2058
        %v2060 = vpop.f32.mrb[0].mxu0
        %2061 = vdwg.mxu0
        %v2062 = vadd.f32 %v1630, %v1936
        %v2063 = vadd.f32 %v1633, %v1939
        %v2064 = vadd.f32 %v1638, %v1944
        %v2065 = vadd.f32 %v1641, %v1947
        %v2066 = vadd.f32 %v1646, %v1952
        %v2067 = vadd.f32 %v1649, %v1955
        %v2068 = vadd.f32 %v1654, %v1960
        %v2069 = vadd.f32 %v1657, %v1963
        %v2070 = vadd.f32 %v1662, %v1968
        %v2071 = vadd.f32 %v1665, %v1971
        %v2072 = vadd.f32 %v1670, %v1976
        %v2073 = vadd.f32 %v1673, %v1979
        %v2074 = vadd.f32 %v1678, %v1984
        %v2075 = vadd.f32 %v1681, %v1987
        %v2076 = vadd.f32 %v1686, %v1992
        %v2077 = vadd.f32 %v1689, %v1995
        %v2078 = vadd.f32 %v1694, %v2000
        %v2079 = vadd.f32 %v1697, %v2003
        %v2080 = vadd.f32 %v1702, %v2008
        %v2081 = vadd.f32 %v1705, %v2011
        %v2082 = vadd.f32 %v1710, %v2016
        %v2083 = vadd.f32 %v1713, %v2019
        %v2084 = vadd.f32 %v1718, %v2024
        %v2085 = vadd.f32 %v1721, %v2027
        %v2086 = vadd.f32 %v1726, %v2032
        %v2087 = vadd.f32 %v1729, %v2035
        %v2088 = vadd.f32 %v1734, %v2040
        %v2089 = vadd.f32 %v1737, %v2043
        %v2090 = vadd.f32 %v1742, %v2048
        %v2091 = vadd.f32 %v1745, %v2051
        %v2092 = vadd.f32 %v1750, %v2056
        %v2093 = vadd.f32 %v1753, %v2059
        %v2094 = vld [vmem:[#allocation2 + $0x17] sm:$0xff]
        %v2095 = vld [vmem:[#allocation2 + $0x1f] sm:$0xff]
        %v2096 = vld [vmem:[#allocation2 + $0x27] sm:$0xff]
        %v2097 = vld [vmem:[#allocation2 + $0x2f] sm:$0xff]
        %v2098 = vld [vmem:[#allocation2 + $0x37] sm:$0xff]
        %v2099 = vld [vmem:[#allocation2 + $0x3f] sm:$0xff]
        %v2100 = vld [vmem:[#allocation2 + $0x47] sm:$0xff]
        %v2101 = vld [vmem:[#allocation2 + $0x4f] sm:$0xff]
        %v2102 = vld [vmem:[#allocation2 + $0x57] sm:$0xff]
        %v2103 = vld [vmem:[#allocation2 + $0x5f] sm:$0xff]
        %v2104 = vld [vmem:[#allocation2 + $0x67] sm:$0xff]
        %v2105 = vld [vmem:[#allocation2 + $0x6f] sm:$0xff]
        %v2106 = vld [vmem:[#allocation2 + $0x77] sm:$0xff]
        %v2107 = vld [vmem:[#allocation2 + $0x7f] sm:$0xff]
        %v2108 = vld [vmem:[#allocation2 + $0x87] sm:$0xff]
        %v2109 = vld [vmem:[#allocation2 + $0x8f] sm:$0xff]
        %v2110 = vld [vmem:[#allocation2 + $0x97] sm:$0xff]
        %v2111 = vld [vmem:[#allocation2 + $0x9f] sm:$0xff]
        %v2112 = vld [vmem:[#allocation2 + $0xa7] sm:$0xff]
        %v2113 = vld [vmem:[#allocation2 + $0xaf] sm:$0xff]
        %v2114 = vld [vmem:[#allocation2 + $0xb7] sm:$0xff]
        %v2115 = vld [vmem:[#allocation2 + $0xbf] sm:$0xff]
        %v2116 = vld [vmem:[#allocation2 + $0xc7] sm:$0xff]
        %v2117 = vld [vmem:[#allocation2 + $0xcf] sm:$0xff]
        %v2118 = vld [vmem:[#allocation2 + $0xd7] sm:$0xff]
        %v2119 = vld [vmem:[#allocation2 + $0xdf] sm:$0xff]
        %v2120 = vld [vmem:[#allocation2 + $0xe7] sm:$0xff]
        %v2121 = vld [vmem:[#allocation2 + $0xef] sm:$0xff]
        %v2122 = vld [vmem:[#allocation2 + $0xf7] sm:$0xff]
        %v2123 = vld [vmem:[#allocation2 + $0xff] sm:$0xff]
        %v2124 = vld [vmem:[#allocation2 + $0x107] sm:$0xff]
        %v2125 = vld [vmem:[#allocation2 + $0x10f] sm:$0xff]
        %v2126 = vsel %vm1113, %v2094, 0.0
        %v2127 = vsel %vm1114, %v2095, 0.0
        %v2128 = vsel %vm1115, %v2096, 0.0
        %v2129 = vsel %vm1116, %v2097, 0.0
        %v2130 = vsel %vm1117, %v2098, 0.0
        %v2131 = vsel %vm1118, %v2099, 0.0
        %v2132 = vsel %vm1119, %v2100, 0.0
        %v2133 = vsel %vm1120, %v2101, 0.0
        %v2134 = vsel %vm1121, %v2102, 0.0
        %v2135 = vsel %vm1122, %v2103, 0.0
        %v2136 = vsel %vm1123, %v2104, 0.0
        %v2137 = vsel %vm1124, %v2105, 0.0
        %v2138 = vsel %vm1125, %v2106, 0.0
        %v2139 = vsel %vm1126, %v2107, 0.0
        %v2140 = vsel %vm1127, %v2108, 0.0
        %v2141 = vsel %vm1128, %v2109, 0.0
        %v2142 = vsel %vm1129, %v2110, 0.0
        %v2143 = vsel %vm1130, %v2111, 0.0
        %v2144 = vsel %vm1131, %v2112, 0.0
        %v2145 = vsel %vm1132, %v2113, 0.0
        %v2146 = vsel %vm1133, %v2114, 0.0
        %v2147 = vsel %vm1134, %v2115, 0.0
        %v2148 = vsel %vm1135, %v2116, 0.0
        %v2149 = vsel %vm1136, %v2117, 0.0
        %v2150 = vsel %vm1137, %v2118, 0.0
        %v2151 = vsel %vm1138, %v2119, 0.0
        %v2152 = vsel %vm1139, %v2120, 0.0
        %v2153 = vsel %vm1140, %v2121, 0.0
        %v2154 = vsel %vm1141, %v2122, 0.0
        %v2155 = vsel %vm1142, %v2123, 0.0
        %v2156 = vsel %vm1143, %v2124, 0.0
        %v2157 = vsel %vm1144, %v2125, 0.0
        %v2158 = vpack.c.bf16 %v2127, %v2126
        %v2159 = vpack.c.bf16 %v2129, %v2128
        %v2160 = vpack.c.bf16 %v2131, %v2130
        %v2161 = vpack.c.bf16 %v2133, %v2132
        %v2162 = vpack.c.bf16 %v2135, %v2134
        %v2163 = vpack.c.bf16 %v2137, %v2136
        %v2164 = vpack.c.bf16 %v2139, %v2138
        %v2165 = vpack.c.bf16 %v2141, %v2140
        %v2166 = vpack.c.bf16 %v2143, %v2142
        %v2167 = vpack.c.bf16 %v2145, %v2144
        %v2168 = vpack.c.bf16 %v2147, %v2146
        %v2169 = vpack.c.bf16 %v2149, %v2148
        %v2170 = vpack.c.bf16 %v2151, %v2150
        %v2171 = vpack.c.bf16 %v2153, %v2152
        %v2172 = vpack.c.bf16 %v2155, %v2154
        %v2173 = vpack.c.bf16 %v2157, %v2156
        %s2174 = scalar_lea.vmem [#allocation6], 48
        %v2175 = vld [vmem:[%s2174] sm:$0xf]
        %v2176 = vld [vmem:[%s2174 + $0x4] sm:$0xf]
        %v2177 = vld [vmem:[%s2174 + $0x8] sm:$0xf]
        %v2178 = vld [vmem:[%s2174 + $0xc] sm:$0xf]
        %v2183 = vunpack.c.l.b16 %v2175
        %v2184 = vunpack.c.l.b16 %v2176
        %v2185 = vunpack.c.l.b16 %v2177
        %v2186 = vunpack.c.l.b16 %v2178
        %v2187 = vpack.c.b16 %v2184, %v2183
        %v2188 = vpack.c.b16 %v2186, %v2185
        %v2192 = vsel %vm625, %v2158, 0
        %v2195 = vsel %vm625, %v2159, 0
        %v2198 = vsel %vm625, %v2160, 0
        %v2201 = vsel %vm625, %v2161, 0
        %v2204 = vsel %vm625, %v2162, 0
        %v2207 = vsel %vm625, %v2163, 0
        %v2210 = vsel %vm625, %v2164, 0
        %v2213 = vsel %vm625, %v2165, 0
        %v2216 = vsel %vm625, %v2166, 0
        %v2219 = vsel %vm625, %v2167, 0
        %v2222 = vsel %vm625, %v2168, 0
        %v2225 = vsel %vm625, %v2169, 0
        %v2228 = vsel %vm625, %v2170, 0
        %v2231 = vsel %vm625, %v2171, 0
        %v2234 = vsel %vm625, %v2172, 0
        %v2237 = vsel %vm625, %v2173, 0
        %2239 = vmatprep.subr.bf16.mxu0 0
        %2240 = vmatpush1.bf16.msra.mxu0 %v2187
        %2241 = vmatprep.subr.bf16.mxu0 0
        %2242 = vmatpush1.bf16.msra.mxu0 %v2188
        %2243 = vmatprep.subr.bf16.mxu0 0
        %2244 = vmatpush1.bf16.msra.mxu0 0
        %2245 = vmatprep.subr.bf16.mxu0 0
        %2246 = vmatpush1.bf16.msra.mxu0 0
        %2247 = vmatprep.subr.bf16.mxu0 0
        %2248 = vmatpush1.bf16.msra.mxu0 0
        %2249 = vmatprep.subr.bf16.mxu0 0
        %2250 = vmatpush1.bf16.msra.mxu0 0
        %2251 = vmatprep.subr.bf16.mxu0 0
        %2252 = vmatpush1.bf16.msra.mxu0 0
        %2253 = vmatprep.subr.bf16.mxu0 0
        %2254 = vmatpush1.bf16.msra.mxu0 0
        %2255 = vmatprep.subr.bf16.mxu0 0
        %2256 = vmatpush1.bf16.msra.mxu0 0
        %2257 = vmatprep.subr.bf16.mxu0 0
        %2258 = vmatpush1.bf16.msra.mxu0 0
        %2259 = vmatprep.subr.bf16.mxu0 0
        %2260 = vmatpush1.bf16.msra.mxu0 0
        %2261 = vmatprep.subr.bf16.mxu0 0
        %2262 = vmatpush1.bf16.msra.mxu0 0
        %2263 = vmatprep.subr.bf16.mxu0 0
        %2264 = vmatpush1.bf16.msra.mxu0 0
        %2265 = vmatprep.subr.bf16.mxu0 0
        %2266 = vmatpush1.bf16.msra.mxu0 0
        %2267 = vmatprep.subr.bf16.mxu0 0
        %2268 = vmatpush1.bf16.msra.mxu0 0
        %2269 = vmatprep.subr.bf16.mxu0 0
        %2270 = vmatpush1.bf16.msra.mxu0 0
        %2271 = vmatprep.mubr.bf16.mxu0 0
        %2272 = vmatmul.mubr.bf16.gmra.mrb[0].mxu0 %v2192
        %v2273 = vpop.f32.mrb[0].mxu0
        %v2274 = vadd.f32 0.0, %v2273
        %v2275 = vpop.f32.mrb[0].mxu0
        %v2276 = vpop.f32.mrb[0].mxu0
        %v2277 = vadd.f32 0.0, %v2276
        %v2278 = vpop.f32.mrb[0].mxu0
        %2279 = vmatprep.mubr.bf16.mxu0 0
        %2280 = vmatmul.mubr.bf16.gmra.mrb[0].mxu0 %v2195
        %v2281 = vpop.f32.mrb[0].mxu0
        %v2282 = vadd.f32 0.0, %v2281
        %v2283 = vpop.f32.mrb[0].mxu0
        %v2284 = vpop.f32.mrb[0].mxu0
        %v2285 = vadd.f32 0.0, %v2284
        %v2286 = vpop.f32.mrb[0].mxu0
        %2287 = vmatprep.mubr.bf16.mxu0 0
        %2288 = vmatmul.mubr.bf16.gmra.mrb[0].mxu0 %v2198
        %v2289 = vpop.f32.mrb[0].mxu0
        %v2290 = vadd.f32 0.0, %v2289
        %v2291 = vpop.f32.mrb[0].mxu0
        %v2292 = vpop.f32.mrb[0].mxu0
        %v2293 = vadd.f32 0.0, %v2292
        %v2294 = vpop.f32.mrb[0].mxu0
        %2295 = vmatprep.mubr.bf16.mxu0 0
        %2296 = vmatmul.mubr.bf16.gmra.mrb[0].mxu0 %v2201
        %v2297 = vpop.f32.mrb[0].mxu0
        %v2298 = vadd.f32 0.0, %v2297
        %v2299 = vpop.f32.mrb[0].mxu0
        %v2300 = vpop.f32.mrb[0].mxu0
        %v2301 = vadd.f32 0.0, %v2300
        %v2302 = vpop.f32.mrb[0].mxu0
        %2303 = vmatprep.mubr.bf16.mxu0 0
        %2304 = vmatmul.mubr.bf16.gmra.mrb[0].mxu0 %v2204
        %v2305 = vpop.f32.mrb[0].mxu0
        %v2306 = vadd.f32 0.0, %v2305
        %v2307 = vpop.f32.mrb[0].mxu0
        %v2308 = vpop.f32.mrb[0].mxu0
        %v2309 = vadd.f32 0.0, %v2308
        %v2310 = vpop.f32.mrb[0].mxu0
        %2311 = vmatprep.mubr.bf16.mxu0 0
        %2312 = vmatmul.mubr.bf16.gmra.mrb[0].mxu0 %v2207
        %v2313 = vpop.f32.mrb[0].mxu0
        %v2314 = vadd.f32 0.0, %v2313
        %v2315 = vpop.f32.mrb[0].mxu0
        %v2316 = vpop.f32.mrb[0].mxu0
        %v2317 = vadd.f32 0.0, %v2316
        %v2318 = vpop.f32.mrb[0].mxu0
        %2319 = vmatprep.mubr.bf16.mxu0 0
        %2320 = vmatmul.mubr.bf16.gmra.mrb[0].mxu0 %v2210
        %v2321 = vpop.f32.mrb[0].mxu0
        %v2322 = vadd.f32 0.0, %v2321
        %v2323 = vpop.f32.mrb[0].mxu0
        %v2324 = vpop.f32.mrb[0].mxu0
        %v2325 = vadd.f32 0.0, %v2324
        %v2326 = vpop.f32.mrb[0].mxu0
        %2327 = vmatprep.mubr.bf16.mxu0 0
        %2328 = vmatmul.mubr.bf16.gmra.mrb[0].mxu0 %v2213
        %v2329 = vpop.f32.mrb[0].mxu0
        %v2330 = vadd.f32 0.0, %v2329
        %v2331 = vpop.f32.mrb[0].mxu0
        %v2332 = vpop.f32.mrb[0].mxu0
        %v2333 = vadd.f32 0.0, %v2332
        %v2334 = vpop.f32.mrb[0].mxu0
        %2335 = vmatprep.mubr.bf16.mxu0 0
        %2336 = vmatmul.mubr.bf16.gmra.mrb[0].mxu0 %v2216
        %v2337 = vpop.f32.mrb[0].mxu0
        %v2338 = vadd.f32 0.0, %v2337
        %v2339 = vpop.f32.mrb[0].mxu0
        %v2340 = vpop.f32.mrb[0].mxu0
        %v2341 = vadd.f32 0.0, %v2340
        %v2342 = vpop.f32.mrb[0].mxu0
        %2343 = vmatprep.mubr.bf16.mxu0 0
        %2344 = vmatmul.mubr.bf16.gmra.mrb[0].mxu0 %v2219
        %v2345 = vpop.f32.mrb[0].mxu0
        %v2346 = vadd.f32 0.0, %v2345
        %v2347 = vpop.f32.mrb[0].mxu0
        %v2348 = vpop.f32.mrb[0].mxu0
        %v2349 = vadd.f32 0.0, %v2348
        %v2350 = vpop.f32.mrb[0].mxu0
        %2351 = vmatprep.mubr.bf16.mxu0 0
        %2352 = vmatmul.mubr.bf16.gmra.mrb[0].mxu0 %v2222
        %v2353 = vpop.f32.mrb[0].mxu0
        %v2354 = vadd.f32 0.0, %v2353
        %v2355 = vpop.f32.mrb[0].mxu0
        %v2356 = vpop.f32.mrb[0].mxu0
        %v2357 = vadd.f32 0.0, %v2356
        %v2358 = vpop.f32.mrb[0].mxu0
        %2359 = vmatprep.mubr.bf16.mxu0 0
        %2360 = vmatmul.mubr.bf16.gmra.mrb[0].mxu0 %v2225
        %v2361 = vpop.f32.mrb[0].mxu0
        %v2362 = vadd.f32 0.0, %v2361
        %v2363 = vpop.f32.mrb[0].mxu0
        %v2364 = vpop.f32.mrb[0].mxu0
        %v2365 = vadd.f32 0.0, %v2364
        %v2366 = vpop.f32.mrb[0].mxu0
        %2367 = vmatprep.mubr.bf16.mxu0 0
        %2368 = vmatmul.mubr.bf16.gmra.mrb[0].mxu0 %v2228
        %v2369 = vpop.f32.mrb[0].mxu0
        %v2370 = vadd.f32 0.0, %v2369
        %v2371 = vpop.f32.mrb[0].mxu0
        %v2372 = vpop.f32.mrb[0].mxu0
        %v2373 = vadd.f32 0.0, %v2372
        %v2374 = vpop.f32.mrb[0].mxu0
        %2375 = vmatprep.mubr.bf16.mxu0 0
        %2376 = vmatmul.mubr.bf16.gmra.mrb[0].mxu0 %v2231
        %v2377 = vpop.f32.mrb[0].mxu0
        %v2378 = vadd.f32 0.0, %v2377
        %v2379 = vpop.f32.mrb[0].mxu0
        %v2380 = vpop.f32.mrb[0].mxu0
        %v2381 = vadd.f32 0.0, %v2380
        %v2382 = vpop.f32.mrb[0].mxu0
        %2383 = vmatprep.mubr.bf16.mxu0 0
        %2384 = vmatmul.mubr.bf16.gmra.mrb[0].mxu0 %v2234
        %v2385 = vpop.f32.mrb[0].mxu0
        %v2386 = vadd.f32 0.0, %v2385
        %v2387 = vpop.f32.mrb[0].mxu0
        %v2388 = vpop.f32.mrb[0].mxu0
        %v2389 = vadd.f32 0.0, %v2388
        %v2390 = vpop.f32.mrb[0].mxu0
        %2391 = vmatprep.mubr.bf16.mxu0 0
        %2392 = vmatmul.mubr.bf16.gmra.mrb[0].mxu0 %v2237
        %v2393 = vpop.f32.mrb[0].mxu0
        %v2394 = vadd.f32 0.0, %v2393
        %v2395 = vpop.f32.mrb[0].mxu0
        %v2396 = vpop.f32.mrb[0].mxu0
        %v2397 = vadd.f32 0.0, %v2396
        %v2398 = vpop.f32.mrb[0].mxu0
        %2399 = vdwg.mxu0
        %v2400 = vadd.f32 %v2062, %v2274
        %v2401 = vadd.f32 %v2063, %v2277
        %v2402 = vadd.f32 %v2064, %v2282
        %v2403 = vadd.f32 %v2065, %v2285
        %v2404 = vadd.f32 %v2066, %v2290
        %v2405 = vadd.f32 %v2067, %v2293
        %v2406 = vadd.f32 %v2068, %v2298
        %v2407 = vadd.f32 %v2069, %v2301
        %v2408 = vadd.f32 %v2070, %v2306
        %v2409 = vadd.f32 %v2071, %v2309
        %v2410 = vadd.f32 %v2072, %v2314
        %v2411 = vadd.f32 %v2073, %v2317
        %v2412 = vadd.f32 %v2074, %v2322
        %v2413 = vadd.f32 %v2075, %v2325
        %v2414 = vadd.f32 %v2076, %v2330
        %v2415 = vadd.f32 %v2077, %v2333
        %v2416 = vadd.f32 %v2078, %v2338
        %v2417 = vadd.f32 %v2079, %v2341
        %v2418 = vadd.f32 %v2080, %v2346
        %v2419 = vadd.f32 %v2081, %v2349
        %v2420 = vadd.f32 %v2082, %v2354
        %v2421 = vadd.f32 %v2083, %v2357
        %v2422 = vadd.f32 %v2084, %v2362
        %v2423 = vadd.f32 %v2085, %v2365
        %v2424 = vadd.f32 %v2086, %v2370
        %v2425 = vadd.f32 %v2087, %v2373
        %v2426 = vadd.f32 %v2088, %v2378
        %v2427 = vadd.f32 %v2089, %v2381
        %v2428 = vadd.f32 %v2090, %v2386
        %v2429 = vadd.f32 %v2091, %v2389
        %v2430 = vadd.f32 %v2092, %v2394
        %v2431 = vadd.f32 %v2093, %v2397
        %v2432 = vld [vmem:[#allocation2 + $0x18] sm:$0xff]
        %v2433 = vld [vmem:[#allocation2 + $0x20] sm:$0xff]
        %v2434 = vld [vmem:[#allocation2 + $0x28] sm:$0xff]
        %v2435 = vld [vmem:[#allocation2 + $0x30] sm:$0xff]
        %v2436 = vld [vmem:[#allocation2 + $0x38] sm:$0xff]
        %v2437 = vld [vmem:[#allocation2 + $0x40] sm:$0xff]
        %v2438 = vld [vmem:[#allocation2 + $0x48] sm:$0xff]
        %v2439 = vld [vmem:[#allocation2 + $0x50] sm:$0xff]
        %v2440 = vld [vmem:[#allocation2 + $0x58] sm:$0xff]
        %v2441 = vld [vmem:[#allocation2 + $0x60] sm:$0xff]
        %v2442 = vld [vmem:[#allocation2 + $0x68] sm:$0xff]
        %v2443 = vld [vmem:[#allocation2 + $0x70] sm:$0xff]
        %v2444 = vld [vmem:[#allocation2 + $0x78] sm:$0xff]
        %v2445 = vld [vmem:[#allocation2 + $0x80] sm:$0xff]
        %v2446 = vld [vmem:[#allocation2 + $0x88] sm:$0xff]
        %v2447 = vld [vmem:[#allocation2 + $0x90] sm:$0xff]
        %v2448 = vld [vmem:[#allocation2 + $0x98] sm:$0xff]
        %v2449 = vld [vmem:[#allocation2 + $0xa0] sm:$0xff]
        %v2450 = vld [vmem:[#allocation2 + $0xa8] sm:$0xff]
        %v2451 = vld [vmem:[#allocation2 + $0xb0] sm:$0xff]
        %v2452 = vld [vmem:[#allocation2 + $0xb8] sm:$0xff]
        %v2453 = vld [vmem:[#allocation2 + $0xc0] sm:$0xff]
        %v2454 = vld [vmem:[#allocation2 + $0xc8] sm:$0xff]
        %v2455 = vld [vmem:[#allocation2 + $0xd0] sm:$0xff]
        %v2456 = vld [vmem:[#allocation2 + $0xd8] sm:$0xff]
        %v2457 = vld [vmem:[#allocation2 + $0xe0] sm:$0xff]
        %v2458 = vld [vmem:[#allocation2 + $0xe8] sm:$0xff]
        %v2459 = vld [vmem:[#allocation2 + $0xf0] sm:$0xff]
        %v2460 = vld [vmem:[#allocation2 + $0xf8] sm:$0xff]
        %v2461 = vld [vmem:[#allocation2 + $0x100] sm:$0xff]
        %v2462 = vld [vmem:[#allocation2 + $0x108] sm:$0xff]
        %v2463 = vld [vmem:[#allocation2 + $0x110] sm:$0xff]
        %v2464 = vpack.c.bf16 %v2433, %v2432
        %v2465 = vpack.c.bf16 %v2435, %v2434
        %v2466 = vpack.c.bf16 %v2437, %v2436
        %v2467 = vpack.c.bf16 %v2439, %v2438
        %v2468 = vpack.c.bf16 %v2441, %v2440
        %v2469 = vpack.c.bf16 %v2443, %v2442
        %v2470 = vpack.c.bf16 %v2445, %v2444
        %v2471 = vpack.c.bf16 %v2447, %v2446
        %v2472 = vpack.c.bf16 %v2449, %v2448
        %v2473 = vpack.c.bf16 %v2451, %v2450
        %v2474 = vpack.c.bf16 %v2453, %v2452
        %v2475 = vpack.c.bf16 %v2455, %v2454
        %v2476 = vpack.c.bf16 %v2457, %v2456
        %v2477 = vpack.c.bf16 %v2459, %v2458
        %v2478 = vpack.c.bf16 %v2461, %v2460
        %v2479 = vpack.c.bf16 %v2463, %v2462
        %s2480 = scalar_lea.vmem [#allocation6], 64
        %v2481 = vld [vmem:[%s2480] sm:$0xf]
        %v2482 = vld [vmem:[%s2480 + $0x4] sm:$0xf]
        %v2483 = vld [vmem:[%s2480 + $0x8] sm:$0xf]
        %v2484 = vld [vmem:[%s2480 + $0xc] sm:$0xf]
        %v2489 = vunpack.c.l.b16 %v2481
        %v2490 = vunpack.c.l.b16 %v2482
        %v2491 = vunpack.c.l.b16 %v2483
        %v2492 = vunpack.c.l.b16 %v2484
        %v2493 = vpack.c.b16 %v2490, %v2489
        %v2494 = vpack.c.b16 %v2492, %v2491
        %v2498 = vsel %vm625, %v2464, 0
        %v2501 = vsel %vm625, %v2465, 0
        %v2504 = vsel %vm625, %v2466, 0
        %v2507 = vsel %vm625, %v2467, 0
        %v2510 = vsel %vm625, %v2468, 0
        %v2513 = vsel %vm625, %v2469, 0
        %v2516 = vsel %vm625, %v2470, 0
        %v2519 = vsel %vm625, %v2471, 0
        %v2522 = vsel %vm625, %v2472, 0
        %v2525 = vsel %vm625, %v2473, 0
        %v2528 = vsel %vm625, %v2474, 0
        %v2531 = vsel %vm625, %v2475, 0
        %v2534 = vsel %vm625, %v2476, 0
        %v2537 = vsel %vm625, %v2477, 0
        %v2540 = vsel %vm625, %v2478, 0
        %v2543 = vsel %vm625, %v2479, 0
        %2545 = vmatprep.subr.bf16.mxu0 0
        %2546 = vmatpush1.bf16.msra.mxu0 %v2493
        %2547 = vmatprep.subr.bf16.mxu0 0
        %2548 = vmatpush1.bf16.msra.mxu0 %v2494
        %2549 = vmatprep.subr.bf16.mxu0 0
        %2550 = vmatpush1.bf16.msra.mxu0 0
        %2551 = vmatprep.subr.bf16.mxu0 0
        %2552 = vmatpush1.bf16.msra.mxu0 0
        %2553 = vmatprep.subr.bf16.mxu0 0
        %2554 = vmatpush1.bf16.msra.mxu0 0
        %2555 = vmatprep.subr.bf16.mxu0 0
        %2556 = vmatpush1.bf16.msra.mxu0 0
        %2557 = vmatprep.subr.bf16.mxu0 0
        %2558 = vmatpush1.bf16.msra.mxu0 0
        %2559 = vmatprep.subr.bf16.mxu0 0
        %2560 = vmatpush1.bf16.msra.mxu0 0
        %2561 = vmatprep.subr.bf16.mxu0 0
        %2562 = vmatpush1.bf16.msra.mxu0 0
        %2563 = vmatprep.subr.bf16.mxu0 0
        %2564 = vmatpush1.bf16.msra.mxu0 0
        %2565 = vmatprep.subr.bf16.mxu0 0
        %2566 = vmatpush1.bf16.msra.mxu0 0
        %2567 = vmatprep.subr.bf16.mxu0 0
        %2568 = vmatpush1.bf16.msra.mxu0 0
        %2569 = vmatprep.subr.bf16.mxu0 0
        %2570 = vmatpush1.bf16.msra.mxu0 0
        %2571 = vmatprep.subr.bf16.mxu0 0
        %2572 = vmatpush1.bf16.msra.mxu0 0
        %2573 = vmatprep.subr.bf16.mxu0 0
        %2574 = vmatpush1.bf16.msra.mxu0 0
        %2575 = vmatprep.subr.bf16.mxu0 0
        %2576 = vmatpush1.bf16.msra.mxu0 0
        %2577 = vmatprep.mubr.bf16.mxu0 0
        %2578 = vmatmul.mubr.bf16.gmra.mrb[0].mxu0 %v2498
        %v2579 = vpop.f32.mrb[0].mxu0
        %v2580 = vadd.f32 0.0, %v2579
        %v2581 = vpop.f32.mrb[0].mxu0
        %v2582 = vpop.f32.mrb[0].mxu0
        %v2583 = vadd.f32 0.0, %v2582
        %v2584 = vpop.f32.mrb[0].mxu0
        %2585 = vmatprep.mubr.bf16.mxu0 0
        %2586 = vmatmul.mubr.bf16.gmra.mrb[0].mxu0 %v2501
        %v2587 = vpop.f32.mrb[0].mxu0
        %v2588 = vadd.f32 0.0, %v2587
        %v2589 = vpop.f32.mrb[0].mxu0
        %v2590 = vpop.f32.mrb[0].mxu0
        %v2591 = vadd.f32 0.0, %v2590
        %v2592 = vpop.f32.mrb[0].mxu0
        %2593 = vmatprep.mubr.bf16.mxu0 0
        %2594 = vmatmul.mubr.bf16.gmra.mrb[0].mxu0 %v2504
        %v2595 = vpop.f32.mrb[0].mxu0
        %v2596 = vadd.f32 0.0, %v2595
        %v2597 = vpop.f32.mrb[0].mxu0
        %v2598 = vpop.f32.mrb[0].mxu0
        %v2599 = vadd.f32 0.0, %v2598
        %v2600 = vpop.f32.mrb[0].mxu0
        %2601 = vmatprep.mubr.bf16.mxu0 0
        %2602 = vmatmul.mubr.bf16.gmra.mrb[0].mxu0 %v2507
        %v2603 = vpop.f32.mrb[0].mxu0
        %v2604 = vadd.f32 0.0, %v2603
        %v2605 = vpop.f32.mrb[0].mxu0
        %v2606 = vpop.f32.mrb[0].mxu0
        %v2607 = vadd.f32 0.0, %v2606
        %v2608 = vpop.f32.mrb[0].mxu0
        %2609 = vmatprep.mubr.bf16.mxu0 0
        %2610 = vmatmul.mubr.bf16.gmra.mrb[0].mxu0 %v2510
        %v2611 = vpop.f32.mrb[0].mxu0
        %v2612 = vadd.f32 0.0, %v2611
        %v2613 = vpop.f32.mrb[0].mxu0
        %v2614 = vpop.f32.mrb[0].mxu0
        %v2615 = vadd.f32 0.0, %v2614
        %v2616 = vpop.f32.mrb[0].mxu0
        %2617 = vmatprep.mubr.bf16.mxu0 0
        %2618 = vmatmul.mubr.bf16.gmra.mrb[0].mxu0 %v2513
        %v2619 = vpop.f32.mrb[0].mxu0
        %v2620 = vadd.f32 0.0, %v2619
        %v2621 = vpop.f32.mrb[0].mxu0
        %v2622 = vpop.f32.mrb[0].mxu0
        %v2623 = vadd.f32 0.0, %v2622
        %v2624 = vpop.f32.mrb[0].mxu0
        %2625 = vmatprep.mubr.bf16.mxu0 0
        %2626 = vmatmul.mubr.bf16.gmra.mrb[0].mxu0 %v2516
        %v2627 = vpop.f32.mrb[0].mxu0
        %v2628 = vadd.f32 0.0, %v2627
        %v2629 = vpop.f32.mrb[0].mxu0
        %v2630 = vpop.f32.mrb[0].mxu0
        %v2631 = vadd.f32 0.0, %v2630
        %v2632 = vpop.f32.mrb[0].mxu0
        %2633 = vmatprep.mubr.bf16.mxu0 0
        %2634 = vmatmul.mubr.bf16.gmra.mrb[0].mxu0 %v2519
        %v2635 = vpop.f32.mrb[0].mxu0
        %v2636 = vadd.f32 0.0, %v2635
        %v2637 = vpop.f32.mrb[0].mxu0
        %v2638 = vpop.f32.mrb[0].mxu0
        %v2639 = vadd.f32 0.0, %v2638
        %v2640 = vpop.f32.mrb[0].mxu0
        %2641 = vmatprep.mubr.bf16.mxu0 0
        %2642 = vmatmul.mubr.bf16.gmra.mrb[0].mxu0 %v2522
        %v2643 = vpop.f32.mrb[0].mxu0
        %v2644 = vadd.f32 0.0, %v2643
        %v2645 = vpop.f32.mrb[0].mxu0
        %v2646 = vpop.f32.mrb[0].mxu0
        %v2647 = vadd.f32 0.0, %v2646
        %v2648 = vpop.f32.mrb[0].mxu0
        %2649 = vmatprep.mubr.bf16.mxu0 0
        %2650 = vmatmul.mubr.bf16.gmra.mrb[0].mxu0 %v2525
        %v2651 = vpop.f32.mrb[0].mxu0
        %v2652 = vadd.f32 0.0, %v2651
        %v2653 = vpop.f32.mrb[0].mxu0
        %v2654 = vpop.f32.mrb[0].mxu0
        %v2655 = vadd.f32 0.0, %v2654
        %v2656 = vpop.f32.mrb[0].mxu0
        %2657 = vmatprep.mubr.bf16.mxu0 0
        %2658 = vmatmul.mubr.bf16.gmra.mrb[0].mxu0 %v2528
        %v2659 = vpop.f32.mrb[0].mxu0
        %v2660 = vadd.f32 0.0, %v2659
        %v2661 = vpop.f32.mrb[0].mxu0
        %v2662 = vpop.f32.mrb[0].mxu0
        %v2663 = vadd.f32 0.0, %v2662
        %v2664 = vpop.f32.mrb[0].mxu0
        %2665 = vmatprep.mubr.bf16.mxu0 0
        %2666 = vmatmul.mubr.bf16.gmra.mrb[0].mxu0 %v2531
        %v2667 = vpop.f32.mrb[0].mxu0
        %v2668 = vadd.f32 0.0, %v2667
        %v2669 = vpop.f32.mrb[0].mxu0
        %v2670 = vpop.f32.mrb[0].mxu0
        %v2671 = vadd.f32 0.0, %v2670
        %v2672 = vpop.f32.mrb[0].mxu0
        %2673 = vmatprep.mubr.bf16.mxu0 0
        %2674 = vmatmul.mubr.bf16.gmra.mrb[0].mxu0 %v2534
        %v2675 = vpop.f32.mrb[0].mxu0
        %v2676 = vadd.f32 0.0, %v2675
        %v2677 = vpop.f32.mrb[0].mxu0
        %v2678 = vpop.f32.mrb[0].mxu0
        %v2679 = vadd.f32 0.0, %v2678
        %v2680 = vpop.f32.mrb[0].mxu0
        %2681 = vmatprep.mubr.bf16.mxu0 0
        %2682 = vmatmul.mubr.bf16.gmra.mrb[0].mxu0 %v2537
        %v2683 = vpop.f32.mrb[0].mxu0
        %v2684 = vadd.f32 0.0, %v2683
        %v2685 = vpop.f32.mrb[0].mxu0
        %v2686 = vpop.f32.mrb[0].mxu0
        %v2687 = vadd.f32 0.0, %v2686
        %v2688 = vpop.f32.mrb[0].mxu0
        %2689 = vmatprep.mubr.bf16.mxu0 0
        %2690 = vmatmul.mubr.bf16.gmra.mrb[0].mxu0 %v2540
        %v2691 = vpop.f32.mrb[0].mxu0
        %v2692 = vadd.f32 0.0, %v2691
        %v2693 = vpop.f32.mrb[0].mxu0
        %v2694 = vpop.f32.mrb[0].mxu0
        %v2695 = vadd.f32 0.0, %v2694
        %v2696 = vpop.f32.mrb[0].mxu0
        %2697 = vmatprep.mubr.bf16.mxu0 0
        %2698 = vmatmul.mubr.bf16.gmra.mrb[0].mxu0 %v2543
        %v2699 = vpop.f32.mrb[0].mxu0
        %v2700 = vadd.f32 0.0, %v2699
        %v2701 = vpop.f32.mrb[0].mxu0
        %v2702 = vpop.f32.mrb[0].mxu0
        %v2703 = vadd.f32 0.0, %v2702
        %v2704 = vpop.f32.mrb[0].mxu0
        %2705 = vdwg.mxu0
        %v2706 = vadd.f32 %v2400, %v2580
        %v2707 = vadd.f32 %v2401, %v2583
        %v2708 = vadd.f32 %v2402, %v2588
        %v2709 = vadd.f32 %v2403, %v2591
        %v2710 = vadd.f32 %v2404, %v2596
        %v2711 = vadd.f32 %v2405, %v2599
        %v2712 = vadd.f32 %v2406, %v2604
        %v2713 = vadd.f32 %v2407, %v2607
        %v2714 = vadd.f32 %v2408, %v2612
        %v2715 = vadd.f32 %v2409, %v2615
        %v2716 = vadd.f32 %v2410, %v2620
        %v2717 = vadd.f32 %v2411, %v2623
        %v2718 = vadd.f32 %v2412, %v2628
        %v2719 = vadd.f32 %v2413, %v2631
        %v2720 = vadd.f32 %v2414, %v2636
        %v2721 = vadd.f32 %v2415, %v2639
        %v2722 = vadd.f32 %v2416, %v2644
        %v2723 = vadd.f32 %v2417, %v2647
        %v2724 = vadd.f32 %v2418, %v2652
        %v2725 = vadd.f32 %v2419, %v2655
        %v2726 = vadd.f32 %v2420, %v2660
        %v2727 = vadd.f32 %v2421, %v2663
        %v2728 = vadd.f32 %v2422, %v2668
        %v2729 = vadd.f32 %v2423, %v2671
        %v2730 = vadd.f32 %v2424, %v2676
        %v2731 = vadd.f32 %v2425, %v2679
        %v2732 = vadd.f32 %v2426, %v2684
        %v2733 = vadd.f32 %v2427, %v2687
        %v2734 = vadd.f32 %v2428, %v2692
        %v2735 = vadd.f32 %v2429, %v2695
        %v2736 = vadd.f32 %v2430, %v2700
        %v2737 = vadd.f32 %v2431, %v2703
        %v2738 = vld [vmem:[#allocation2 + $0x19] sm:$0xff]
        %v2739 = vld [vmem:[#allocation2 + $0x21] sm:$0xff]
        %v2740 = vld [vmem:[#allocation2 + $0x29] sm:$0xff]
        %v2741 = vld [vmem:[#allocation2 + $0x31] sm:$0xff]
        %v2742 = vld [vmem:[#allocation2 + $0x39] sm:$0xff]
        %v2743 = vld [vmem:[#allocation2 + $0x41] sm:$0xff]
        %v2744 = vld [vmem:[#allocation2 + $0x49] sm:$0xff]
        %v2745 = vld [vmem:[#allocation2 + $0x51] sm:$0xff]
        %v2746 = vld [vmem:[#allocation2 + $0x59] sm:$0xff]
        %v2747 = vld [vmem:[#allocation2 + $0x61] sm:$0xff]
        %v2748 = vld [vmem:[#allocation2 + $0x69] sm:$0xff]
        %v2749 = vld [vmem:[#allocation2 + $0x71] sm:$0xff]
        %v2750 = vld [vmem:[#allocation2 + $0x79] sm:$0xff]
        %v2751 = vld [vmem:[#allocation2 + $0x81] sm:$0xff]
        %v2752 = vld [vmem:[#allocation2 + $0x89] sm:$0xff]
        %v2753 = vld [vmem:[#allocation2 + $0x91] sm:$0xff]
        %v2754 = vld [vmem:[#allocation2 + $0x99] sm:$0xff]
        %v2755 = vld [vmem:[#allocation2 + $0xa1] sm:$0xff]
        %v2756 = vld [vmem:[#allocation2 + $0xa9] sm:$0xff]
        %v2757 = vld [vmem:[#allocation2 + $0xb1] sm:$0xff]
        %v2758 = vld [vmem:[#allocation2 + $0xb9] sm:$0xff]
        %v2759 = vld [vmem:[#allocation2 + $0xc1] sm:$0xff]
        %v2760 = vld [vmem:[#allocation2 + $0xc9] sm:$0xff]
        %v2761 = vld [vmem:[#allocation2 + $0xd1] sm:$0xff]
        %v2762 = vld [vmem:[#allocation2 + $0xd9] sm:$0xff]
        %v2763 = vld [vmem:[#allocation2 + $0xe1] sm:$0xff]
        %v2764 = vld [vmem:[#allocation2 + $0xe9] sm:$0xff]
        %v2765 = vld [vmem:[#allocation2 + $0xf1] sm:$0xff]
        %v2766 = vld [vmem:[#allocation2 + $0xf9] sm:$0xff]
        %v2767 = vld [vmem:[#allocation2 + $0x101] sm:$0xff]
        %v2768 = vld [vmem:[#allocation2 + $0x109] sm:$0xff]
        %v2769 = vld [vmem:[#allocation2 + $0x111] sm:$0xff]
        %v2770 = vsel %vm1145, %v2738, 0.0
        %v2771 = vsel %vm1146, %v2739, 0.0
        %v2772 = vsel %vm1147, %v2740, 0.0
        %v2773 = vsel %vm1148, %v2741, 0.0
        %v2774 = vsel %vm1149, %v2742, 0.0
        %v2775 = vsel %vm1150, %v2743, 0.0
        %v2776 = vsel %vm1151, %v2744, 0.0
        %v2777 = vsel %vm1152, %v2745, 0.0
        %v2778 = vsel %vm1153, %v2746, 0.0
        %v2779 = vsel %vm1154, %v2747, 0.0
        %v2780 = vsel %vm1155, %v2748, 0.0
        %v2781 = vsel %vm1156, %v2749, 0.0
        %v2782 = vsel %vm1157, %v2750, 0.0
        %v2783 = vsel %vm1158, %v2751, 0.0
        %v2784 = vsel %vm1159, %v2752, 0.0
        %v2785 = vsel %vm1160, %v2753, 0.0
        %v2786 = vsel %vm1161, %v2754, 0.0
        %v2787 = vsel %vm1162, %v2755, 0.0
        %v2788 = vsel %vm1163, %v2756, 0.0
        %v2789 = vsel %vm1164, %v2757, 0.0
        %v2790 = vsel %vm1165, %v2758, 0.0
        %v2791 = vsel %vm1166, %v2759, 0.0
        %v2792 = vsel %vm1167, %v2760, 0.0
        %v2793 = vsel %vm1168, %v2761, 0.0
        %v2794 = vsel %vm1169, %v2762, 0.0
        %v2795 = vsel %vm1170, %v2763, 0.0
        %v2796 = vsel %vm1171, %v2764, 0.0
        %v2797 = vsel %vm1172, %v2765, 0.0
        %v2798 = vsel %vm1173, %v2766, 0.0
        %v2799 = vsel %vm1174, %v2767, 0.0
        %v2800 = vsel %vm1175, %v2768, 0.0
        %v2801 = vsel %vm1176, %v2769, 0.0
        %v2802 = vpack.c.bf16 %v2771, %v2770
        %v2803 = vpack.c.bf16 %v2773, %v2772
        %v2804 = vpack.c.bf16 %v2775, %v2774
        %v2805 = vpack.c.bf16 %v2777, %v2776
        %v2806 = vpack.c.bf16 %v2779, %v2778
        %v2807 = vpack.c.bf16 %v2781, %v2780
        %v2808 = vpack.c.bf16 %v2783, %v2782
        %v2809 = vpack.c.bf16 %v2785, %v2784
        %v2810 = vpack.c.bf16 %v2787, %v2786
        %v2811 = vpack.c.bf16 %v2789, %v2788
        %v2812 = vpack.c.bf16 %v2791, %v2790
        %v2813 = vpack.c.bf16 %v2793, %v2792
        %v2814 = vpack.c.bf16 %v2795, %v2794
        %v2815 = vpack.c.bf16 %v2797, %v2796
        %v2816 = vpack.c.bf16 %v2799, %v2798
        %v2817 = vpack.c.bf16 %v2801, %v2800
        %s2818 = scalar_lea.vmem [#allocation6], 80
        %v2819 = vld [vmem:[%s2818] sm:$0xf]
        %v2820 = vld [vmem:[%s2818 + $0x4] sm:$0xf]
        %v2821 = vld [vmem:[%s2818 + $0x8] sm:$0xf]
        %v2822 = vld [vmem:[%s2818 + $0xc] sm:$0xf]
        %v2827 = vunpack.c.l.b16 %v2819
        %v2828 = vunpack.c.l.b16 %v2820
        %v2829 = vunpack.c.l.b16 %v2821
        %v2830 = vunpack.c.l.b16 %v2822
        %v2831 = vpack.c.b16 %v2828, %v2827
        %v2832 = vpack.c.b16 %v2830, %v2829
        %v2836 = vsel %vm625, %v2802, 0
        %v2839 = vsel %vm625, %v2803, 0
        %v2842 = vsel %vm625, %v2804, 0
        %v2845 = vsel %vm625, %v2805, 0
        %v2848 = vsel %vm625, %v2806, 0
        %v2851 = vsel %vm625, %v2807, 0
        %v2854 = vsel %vm625, %v2808, 0
        %v2857 = vsel %vm625, %v2809, 0
        %v2860 = vsel %vm625, %v2810, 0
        %v2863 = vsel %vm625, %v2811, 0
        %v2866 = vsel %vm625, %v2812, 0
        %v2869 = vsel %vm625, %v2813, 0
        %v2872 = vsel %vm625, %v2814, 0
        %v2875 = vsel %vm625, %v2815, 0
        %v2878 = vsel %vm625, %v2816, 0
        %v2881 = vsel %vm625, %v2817, 0
        %2883 = vmatprep.subr.bf16.mxu0 0
        %2884 = vmatpush1.bf16.msra.mxu0 %v2831
        %2885 = vmatprep.subr.bf16.mxu0 0
        %2886 = vmatpush1.bf16.msra.mxu0 %v2832
        %2887 = vmatprep.subr.bf16.mxu0 0
        %2888 = vmatpush1.bf16.msra.mxu0 0
        %2889 = vmatprep.subr.bf16.mxu0 0
        %2890 = vmatpush1.bf16.msra.mxu0 0
        %2891 = vmatprep.subr.bf16.mxu0 0
        %2892 = vmatpush1.bf16.msra.mxu0 0
        %2893 = vmatprep.subr.bf16.mxu0 0
        %2894 = vmatpush1.bf16.msra.mxu0 0
        %2895 = vmatprep.subr.bf16.mxu0 0
        %2896 = vmatpush1.bf16.msra.mxu0 0
        %2897 = vmatprep.subr.bf16.mxu0 0
        %2898 = vmatpush1.bf16.msra.mxu0 0
        %2899 = vmatprep.subr.bf16.mxu0 0
        %2900 = vmatpush1.bf16.msra.mxu0 0
        %2901 = vmatprep.subr.bf16.mxu0 0
        %2902 = vmatpush1.bf16.msra.mxu0 0
        %2903 = vmatprep.subr.bf16.mxu0 0
        %2904 = vmatpush1.bf16.msra.mxu0 0
        %2905 = vmatprep.subr.bf16.mxu0 0
        %2906 = vmatpush1.bf16.msra.mxu0 0
        %2907 = vmatprep.subr.bf16.mxu0 0
        %2908 = vmatpush1.bf16.msra.mxu0 0
        %2909 = vmatprep.subr.bf16.mxu0 0
        %2910 = vmatpush1.bf16.msra.mxu0 0
        %2911 = vmatprep.subr.bf16.mxu0 0
        %2912 = vmatpush1.bf16.msra.mxu0 0
        %2913 = vmatprep.subr.bf16.mxu0 0
        %2914 = vmatpush1.bf16.msra.mxu0 0
        %2915 = vmatprep.mubr.bf16.mxu0 0
        %2916 = vmatmul.mubr.bf16.gmra.mrb[0].mxu0 %v2836
        %v2917 = vpop.f32.mrb[0].mxu0
        %v2918 = vadd.f32 0.0, %v2917
        %v2919 = vpop.f32.mrb[0].mxu0
        %v2920 = vpop.f32.mrb[0].mxu0
        %v2921 = vadd.f32 0.0, %v2920
        %v2922 = vpop.f32.mrb[0].mxu0
        %2923 = vmatprep.mubr.bf16.mxu0 0
        %2924 = vmatmul.mubr.bf16.gmra.mrb[0].mxu0 %v2839
        %v2925 = vpop.f32.mrb[0].mxu0
        %v2926 = vadd.f32 0.0, %v2925
        %v2927 = vpop.f32.mrb[0].mxu0
        %v2928 = vpop.f32.mrb[0].mxu0
        %v2929 = vadd.f32 0.0, %v2928
        %v2930 = vpop.f32.mrb[0].mxu0
        %2931 = vmatprep.mubr.bf16.mxu0 0
        %2932 = vmatmul.mubr.bf16.gmra.mrb[0].mxu0 %v2842
        %v2933 = vpop.f32.mrb[0].mxu0
        %v2934 = vadd.f32 0.0, %v2933
        %v2935 = vpop.f32.mrb[0].mxu0
        %v2936 = vpop.f32.mrb[0].mxu0
        %v2937 = vadd.f32 0.0, %v2936
        %v2938 = vpop.f32.mrb[0].mxu0
        %2939 = vmatprep.mubr.bf16.mxu0 0
        %2940 = vmatmul.mubr.bf16.gmra.mrb[0].mxu0 %v2845
        %v2941 = vpop.f32.mrb[0].mxu0
        %v2942 = vadd.f32 0.0, %v2941
        %v2943 = vpop.f32.mrb[0].mxu0
        %v2944 = vpop.f32.mrb[0].mxu0
        %v2945 = vadd.f32 0.0, %v2944
        %v2946 = vpop.f32.mrb[0].mxu0
        %2947 = vmatprep.mubr.bf16.mxu0 0
        %2948 = vmatmul.mubr.bf16.gmra.mrb[0].mxu0 %v2848
        %v2949 = vpop.f32.mrb[0].mxu0
        %v2950 = vadd.f32 0.0, %v2949
        %v2951 = vpop.f32.mrb[0].mxu0
        %v2952 = vpop.f32.mrb[0].mxu0
        %v2953 = vadd.f32 0.0, %v2952
        %v2954 = vpop.f32.mrb[0].mxu0
        %2955 = vmatprep.mubr.bf16.mxu0 0
        %2956 = vmatmul.mubr.bf16.gmra.mrb[0].mxu0 %v2851
        %v2957 = vpop.f32.mrb[0].mxu0
        %v2958 = vadd.f32 0.0, %v2957
        %v2959 = vpop.f32.mrb[0].mxu0
        %v2960 = vpop.f32.mrb[0].mxu0
        %v2961 = vadd.f32 0.0, %v2960
        %v2962 = vpop.f32.mrb[0].mxu0
        %2963 = vmatprep.mubr.bf16.mxu0 0
        %2964 = vmatmul.mubr.bf16.gmra.mrb[0].mxu0 %v2854
        %v2965 = vpop.f32.mrb[0].mxu0
        %v2966 = vadd.f32 0.0, %v2965
        %v2967 = vpop.f32.mrb[0].mxu0
        %v2968 = vpop.f32.mrb[0].mxu0
        %v2969 = vadd.f32 0.0, %v2968
        %v2970 = vpop.f32.mrb[0].mxu0
        %2971 = vmatprep.mubr.bf16.mxu0 0
        %2972 = vmatmul.mubr.bf16.gmra.mrb[0].mxu0 %v2857
        %v2973 = vpop.f32.mrb[0].mxu0
        %v2974 = vadd.f32 0.0, %v2973
        %v2975 = vpop.f32.mrb[0].mxu0
        %v2976 = vpop.f32.mrb[0].mxu0
        %v2977 = vadd.f32 0.0, %v2976
        %v2978 = vpop.f32.mrb[0].mxu0
        %2979 = vmatprep.mubr.bf16.mxu0 0
        %2980 = vmatmul.mubr.bf16.gmra.mrb[0].mxu0 %v2860
        %v2981 = vpop.f32.mrb[0].mxu0
        %v2982 = vadd.f32 0.0, %v2981
        %v2983 = vpop.f32.mrb[0].mxu0
        %v2984 = vpop.f32.mrb[0].mxu0
        %v2985 = vadd.f32 0.0, %v2984
        %v2986 = vpop.f32.mrb[0].mxu0
        %2987 = vmatprep.mubr.bf16.mxu0 0
        %2988 = vmatmul.mubr.bf16.gmra.mrb[0].mxu0 %v2863
        %v2989 = vpop.f32.mrb[0].mxu0
        %v2990 = vadd.f32 0.0, %v2989
        %v2991 = vpop.f32.mrb[0].mxu0
        %v2992 = vpop.f32.mrb[0].mxu0
        %v2993 = vadd.f32 0.0, %v2992
        %v2994 = vpop.f32.mrb[0].mxu0
        %2995 = vmatprep.mubr.bf16.mxu0 0
        %2996 = vmatmul.mubr.bf16.gmra.mrb[0].mxu0 %v2866
        %v2997 = vpop.f32.mrb[0].mxu0
        %v2998 = vadd.f32 0.0, %v2997
        %v2999 = vpop.f32.mrb[0].mxu0
        %v3000 = vpop.f32.mrb[0].mxu0
        %v3001 = vadd.f32 0.0, %v3000
        %v3002 = vpop.f32.mrb[0].mxu0
        %3003 = vmatprep.mubr.bf16.mxu0 0
        %3004 = vmatmul.mubr.bf16.gmra.mrb[0].mxu0 %v2869
        %v3005 = vpop.f32.mrb[0].mxu0
        %v3006 = vadd.f32 0.0, %v3005
        %v3007 = vpop.f32.mrb[0].mxu0
        %v3008 = vpop.f32.mrb[0].mxu0
        %v3009 = vadd.f32 0.0, %v3008
        %v3010 = vpop.f32.mrb[0].mxu0
        %3011 = vmatprep.mubr.bf16.mxu0 0
        %3012 = vmatmul.mubr.bf16.gmra.mrb[0].mxu0 %v2872
        %v3013 = vpop.f32.mrb[0].mxu0
        %v3014 = vadd.f32 0.0, %v3013
        %v3015 = vpop.f32.mrb[0].mxu0
        %v3016 = vpop.f32.mrb[0].mxu0
        %v3017 = vadd.f32 0.0, %v3016
        %v3018 = vpop.f32.mrb[0].mxu0
        %3019 = vmatprep.mubr.bf16.mxu0 0
        %3020 = vmatmul.mubr.bf16.gmra.mrb[0].mxu0 %v2875
        %v3021 = vpop.f32.mrb[0].mxu0
        %v3022 = vadd.f32 0.0, %v3021
        %v3023 = vpop.f32.mrb[0].mxu0
        %v3024 = vpop.f32.mrb[0].mxu0
        %v3025 = vadd.f32 0.0, %v3024
        %v3026 = vpop.f32.mrb[0].mxu0
        %3027 = vmatprep.mubr.bf16.mxu0 0
        %3028 = vmatmul.mubr.bf16.gmra.mrb[0].mxu0 %v2878
        %v3029 = vpop.f32.mrb[0].mxu0
        %v3030 = vadd.f32 0.0, %v3029
        %v3031 = vpop.f32.mrb[0].mxu0
        %v3032 = vpop.f32.mrb[0].mxu0
        %v3033 = vadd.f32 0.0, %v3032
        %v3034 = vpop.f32.mrb[0].mxu0
        %3035 = vmatprep.mubr.bf16.mxu0 0
        %3036 = vmatmul.mubr.bf16.gmra.mrb[0].mxu0 %v2881
        %v3037 = vpop.f32.mrb[0].mxu0
        %v3038 = vadd.f32 0.0, %v3037
        %v3039 = vpop.f32.mrb[0].mxu0
        %v3040 = vpop.f32.mrb[0].mxu0
        %v3041 = vadd.f32 0.0, %v3040
        %v3042 = vpop.f32.mrb[0].mxu0
        %3043 = vdwg.mxu0
        %v3044 = vadd.f32 %v2706, %v2918
        %v3045 = vadd.f32 %v2707, %v2921
        %v3046 = vadd.f32 %v2708, %v2926
        %v3047 = vadd.f32 %v2709, %v2929
        %v3048 = vadd.f32 %v2710, %v2934
        %v3049 = vadd.f32 %v2711, %v2937
        %v3050 = vadd.f32 %v2712, %v2942
        %v3051 = vadd.f32 %v2713, %v2945
        %v3052 = vadd.f32 %v2714, %v2950
        %v3053 = vadd.f32 %v2715, %v2953
        %v3054 = vadd.f32 %v2716, %v2958
        %v3055 = vadd.f32 %v2717, %v2961
        %v3056 = vadd.f32 %v2718, %v2966
        %v3057 = vadd.f32 %v2719, %v2969
        %v3058 = vadd.f32 %v2720, %v2974
        %v3059 = vadd.f32 %v2721, %v2977
        %v3060 = vadd.f32 %v2722, %v2982
        %v3061 = vadd.f32 %v2723, %v2985
        %v3062 = vadd.f32 %v2724, %v2990
        %v3063 = vadd.f32 %v2725, %v2993
        %v3064 = vadd.f32 %v2726, %v2998
        %v3065 = vadd.f32 %v2727, %v3001
        %v3066 = vadd.f32 %v2728, %v3006
        %v3067 = vadd.f32 %v2729, %v3009
        %v3068 = vadd.f32 %v2730, %v3014
        %v3069 = vadd.f32 %v2731, %v3017
        %v3070 = vadd.f32 %v2732, %v3022
        %v3071 = vadd.f32 %v2733, %v3025
        %v3072 = vadd.f32 %v2734, %v3030
        %v3073 = vadd.f32 %v2735, %v3033
        %v3074 = vadd.f32 %v2736, %v3038
        %v3075 = vadd.f32 %v2737, %v3041
        %v3076 = vld [vmem:[#allocation2 + $0x27] sm:$0xff]
        %v3077 = vld [vmem:[#allocation2 + $0x2f] sm:$0xff]
        %v3078 = vld [vmem:[#allocation2 + $0x37] sm:$0xff]
        %v3079 = vld [vmem:[#allocation2 + $0x3f] sm:$0xff]
        %v3080 = vld [vmem:[#allocation2 + $0x47] sm:$0xff]
        %v3081 = vld [vmem:[#allocation2 + $0x4f] sm:$0xff]
        %v3082 = vld [vmem:[#allocation2 + $0x57] sm:$0xff]
        %v3083 = vld [vmem:[#allocation2 + $0x5f] sm:$0xff]
        %v3084 = vld [vmem:[#allocation2 + $0x67] sm:$0xff]
        %v3085 = vld [vmem:[#allocation2 + $0x6f] sm:$0xff]
        %v3086 = vld [vmem:[#allocation2 + $0x77] sm:$0xff]
        %v3087 = vld [vmem:[#allocation2 + $0x7f] sm:$0xff]
        %v3088 = vld [vmem:[#allocation2 + $0x87] sm:$0xff]
        %v3089 = vld [vmem:[#allocation2 + $0x8f] sm:$0xff]
        %v3090 = vld [vmem:[#allocation2 + $0x97] sm:$0xff]
        %v3091 = vld [vmem:[#allocation2 + $0x9f] sm:$0xff]
        %v3092 = vld [vmem:[#allocation2 + $0xa7] sm:$0xff]
        %v3093 = vld [vmem:[#allocation2 + $0xaf] sm:$0xff]
        %v3094 = vld [vmem:[#allocation2 + $0xb7] sm:$0xff]
        %v3095 = vld [vmem:[#allocation2 + $0xbf] sm:$0xff]
        %v3096 = vld [vmem:[#allocation2 + $0xc7] sm:$0xff]
        %v3097 = vld [vmem:[#allocation2 + $0xcf] sm:$0xff]
        %v3098 = vld [vmem:[#allocation2 + $0xd7] sm:$0xff]
        %v3099 = vld [vmem:[#allocation2 + $0xdf] sm:$0xff]
        %v3100 = vld [vmem:[#allocation2 + $0xe7] sm:$0xff]
        %v3101 = vld [vmem:[#allocation2 + $0xef] sm:$0xff]
        %v3102 = vld [vmem:[#allocation2 + $0xf7] sm:$0xff]
        %v3103 = vld [vmem:[#allocation2 + $0xff] sm:$0xff]
        %v3104 = vld [vmem:[#allocation2 + $0x107] sm:$0xff]
        %v3105 = vld [vmem:[#allocation2 + $0x10f] sm:$0xff]
        %v3106 = vld [vmem:[#allocation2 + $0x117] sm:$0xff]
        %v3107 = vld [vmem:[#allocation2 + $0x11f] sm:$0xff]
        %v3108 = vsel %vm1113, %v3076, 0.0
        %v3109 = vsel %vm1114, %v3077, 0.0
        %v3110 = vsel %vm1115, %v3078, 0.0
        %v3111 = vsel %vm1116, %v3079, 0.0
        %v3112 = vsel %vm1117, %v3080, 0.0
        %v3113 = vsel %vm1118, %v3081, 0.0
        %v3114 = vsel %vm1119, %v3082, 0.0
        %v3115 = vsel %vm1120, %v3083, 0.0
        %v3116 = vsel %vm1121, %v3084, 0.0
        %v3117 = vsel %vm1122, %v3085, 0.0
        %v3118 = vsel %vm1123, %v3086, 0.0
        %v3119 = vsel %vm1124, %v3087, 0.0
        %v3120 = vsel %vm1125, %v3088, 0.0
        %v3121 = vsel %vm1126, %v3089, 0.0
        %v3122 = vsel %vm1127, %v3090, 0.0
        %v3123 = vsel %vm1128, %v3091, 0.0
        %v3124 = vsel %vm1129, %v3092, 0.0
        %v3125 = vsel %vm1130, %v3093, 0.0
        %v3126 = vsel %vm1131, %v3094, 0.0
        %v3127 = vsel %vm1132, %v3095, 0.0
        %v3128 = vsel %vm1133, %v3096, 0.0
        %v3129 = vsel %vm1134, %v3097, 0.0
        %v3130 = vsel %vm1135, %v3098, 0.0
        %v3131 = vsel %vm1136, %v3099, 0.0
        %v3132 = vsel %vm1137, %v3100, 0.0
        %v3133 = vsel %vm1138, %v3101, 0.0
        %v3134 = vsel %vm1139, %v3102, 0.0
        %v3135 = vsel %vm1140, %v3103, 0.0
        %v3136 = vsel %vm1141, %v3104, 0.0
        %v3137 = vsel %vm1142, %v3105, 0.0
        %v3138 = vsel %vm1143, %v3106, 0.0
        %v3139 = vsel %vm1144, %v3107, 0.0
        %v3140 = vpack.c.bf16 %v3109, %v3108
        %v3141 = vpack.c.bf16 %v3111, %v3110
        %v3142 = vpack.c.bf16 %v3113, %v3112
        %v3143 = vpack.c.bf16 %v3115, %v3114
        %v3144 = vpack.c.bf16 %v3117, %v3116
        %v3145 = vpack.c.bf16 %v3119, %v3118
        %v3146 = vpack.c.bf16 %v3121, %v3120
        %v3147 = vpack.c.bf16 %v3123, %v3122
        %v3148 = vpack.c.bf16 %v3125, %v3124
        %v3149 = vpack.c.bf16 %v3127, %v3126
        %v3150 = vpack.c.bf16 %v3129, %v3128
        %v3151 = vpack.c.bf16 %v3131, %v3130
        %v3152 = vpack.c.bf16 %v3133, %v3132
        %v3153 = vpack.c.bf16 %v3135, %v3134
        %v3154 = vpack.c.bf16 %v3137, %v3136
        %v3155 = vpack.c.bf16 %v3139, %v3138
        %s3156 = scalar_lea.vmem [#allocation6], 96
        %v3157 = vld [vmem:[%s3156] sm:$0xf]
        %v3158 = vld [vmem:[%s3156 + $0x4] sm:$0xf]
        %v3159 = vld [vmem:[%s3156 + $0x8] sm:$0xf]
        %v3160 = vld [vmem:[%s3156 + $0xc] sm:$0xf]
        %v3165 = vunpack.c.l.b16 %v3157
        %v3166 = vunpack.c.l.b16 %v3158
        %v3167 = vunpack.c.l.b16 %v3159
        %v3168 = vunpack.c.l.b16 %v3160
        %v3169 = vpack.c.b16 %v3166, %v3165
        %v3170 = vpack.c.b16 %v3168, %v3167
        %v3174 = vsel %vm625, %v3140, 0
        %v3177 = vsel %vm625, %v3141, 0
        %v3180 = vsel %vm625, %v3142, 0
        %v3183 = vsel %vm625, %v3143, 0
        %v3186 = vsel %vm625, %v3144, 0
        %v3189 = vsel %vm625, %v3145, 0
        %v3192 = vsel %vm625, %v3146, 0
        %v3195 = vsel %vm625, %v3147, 0
        %v3198 = vsel %vm625, %v3148, 0
        %v3201 = vsel %vm625, %v3149, 0
        %v3204 = vsel %vm625, %v3150, 0
        %v3207 = vsel %vm625, %v3151, 0
        %v3210 = vsel %vm625, %v3152, 0
        %v3213 = vsel %vm625, %v3153, 0
        %v3216 = vsel %vm625, %v3154, 0
        %v3219 = vsel %vm625, %v3155, 0
        %3221 = vmatprep.subr.bf16.mxu0 0
        %3222 = vmatpush1.bf16.msra.mxu0 %v3169
        %3223 = vmatprep.subr.bf16.mxu0 0
        %3224 = vmatpush1.bf16.msra.mxu0 %v3170
        %3225 = vmatprep.subr.bf16.mxu0 0
        %3226 = vmatpush1.bf16.msra.mxu0 0
        %3227 = vmatprep.subr.bf16.mxu0 0
        %3228 = vmatpush1.bf16.msra.mxu0 0
        %3229 = vmatprep.subr.bf16.mxu0 0
        %3230 = vmatpush1.bf16.msra.mxu0 0
        %3231 = vmatprep.subr.bf16.mxu0 0
        %3232 = vmatpush1.bf16.msra.mxu0 0
        %3233 = vmatprep.subr.bf16.mxu0 0
        %3234 = vmatpush1.bf16.msra.mxu0 0
        %3235 = vmatprep.subr.bf16.mxu0 0
        %3236 = vmatpush1.bf16.msra.mxu0 0
        %3237 = vmatprep.subr.bf16.mxu0 0
        %3238 = vmatpush1.bf16.msra.mxu0 0
        %3239 = vmatprep.subr.bf16.mxu0 0
        %3240 = vmatpush1.bf16.msra.mxu0 0
        %3241 = vmatprep.subr.bf16.mxu0 0
        %3242 = vmatpush1.bf16.msra.mxu0 0
        %3243 = vmatprep.subr.bf16.mxu0 0
        %3244 = vmatpush1.bf16.msra.mxu0 0
        %3245 = vmatprep.subr.bf16.mxu0 0
        %3246 = vmatpush1.bf16.msra.mxu0 0
        %3247 = vmatprep.subr.bf16.mxu0 0
        %3248 = vmatpush1.bf16.msra.mxu0 0
        %3249 = vmatprep.subr.bf16.mxu0 0
        %3250 = vmatpush1.bf16.msra.mxu0 0
        %3251 = vmatprep.subr.bf16.mxu0 0
        %3252 = vmatpush1.bf16.msra.mxu0 0
        %3253 = vmatprep.mubr.bf16.mxu0 0
        %3254 = vmatmul.mubr.bf16.gmra.mrb[0].mxu0 %v3174
        %v3255 = vpop.f32.mrb[0].mxu0
        %v3256 = vadd.f32 0.0, %v3255
        %v3257 = vpop.f32.mrb[0].mxu0
        %v3258 = vpop.f32.mrb[0].mxu0
        %v3259 = vadd.f32 0.0, %v3258
        %v3260 = vpop.f32.mrb[0].mxu0
        %3261 = vmatprep.mubr.bf16.mxu0 0
        %3262 = vmatmul.mubr.bf16.gmra.mrb[0].mxu0 %v3177
        %v3263 = vpop.f32.mrb[0].mxu0
        %v3264 = vadd.f32 0.0, %v3263
        %v3265 = vpop.f32.mrb[0].mxu0
        %v3266 = vpop.f32.mrb[0].mxu0
        %v3267 = vadd.f32 0.0, %v3266
        %v3268 = vpop.f32.mrb[0].mxu0
        %3269 = vmatprep.mubr.bf16.mxu0 0
        %3270 = vmatmul.mubr.bf16.gmra.mrb[0].mxu0 %v3180
        %v3271 = vpop.f32.mrb[0].mxu0
        %v3272 = vadd.f32 0.0, %v3271
        %v3273 = vpop.f32.mrb[0].mxu0
        %v3274 = vpop.f32.mrb[0].mxu0
        %v3275 = vadd.f32 0.0, %v3274
        %v3276 = vpop.f32.mrb[0].mxu0
        %3277 = vmatprep.mubr.bf16.mxu0 0
        %3278 = vmatmul.mubr.bf16.gmra.mrb[0].mxu0 %v3183
        %v3279 = vpop.f32.mrb[0].mxu0
        %v3280 = vadd.f32 0.0, %v3279
        %v3281 = vpop.f32.mrb[0].mxu0
        %v3282 = vpop.f32.mrb[0].mxu0
        %v3283 = vadd.f32 0.0, %v3282
        %v3284 = vpop.f32.mrb[0].mxu0
        %3285 = vmatprep.mubr.bf16.mxu0 0
        %3286 = vmatmul.mubr.bf16.gmra.mrb[0].mxu0 %v3186
        %v3287 = vpop.f32.mrb[0].mxu0
        %v3288 = vadd.f32 0.0, %v3287
        %v3289 = vpop.f32.mrb[0].mxu0
        %v3290 = vpop.f32.mrb[0].mxu0
        %v3291 = vadd.f32 0.0, %v3290
        %v3292 = vpop.f32.mrb[0].mxu0
        %3293 = vmatprep.mubr.bf16.mxu0 0
        %3294 = vmatmul.mubr.bf16.gmra.mrb[0].mxu0 %v3189
        %v3295 = vpop.f32.mrb[0].mxu0
        %v3296 = vadd.f32 0.0, %v3295
        %v3297 = vpop.f32.mrb[0].mxu0
        %v3298 = vpop.f32.mrb[0].mxu0
        %v3299 = vadd.f32 0.0, %v3298
        %v3300 = vpop.f32.mrb[0].mxu0
        %3301 = vmatprep.mubr.bf16.mxu0 0
        %3302 = vmatmul.mubr.bf16.gmra.mrb[0].mxu0 %v3192
        %v3303 = vpop.f32.mrb[0].mxu0
        %v3304 = vadd.f32 0.0, %v3303
        %v3305 = vpop.f32.mrb[0].mxu0
        %v3306 = vpop.f32.mrb[0].mxu0
        %v3307 = vadd.f32 0.0, %v3306
        %v3308 = vpop.f32.mrb[0].mxu0
        %3309 = vmatprep.mubr.bf16.mxu0 0
        %3310 = vmatmul.mubr.bf16.gmra.mrb[0].mxu0 %v3195
        %v3311 = vpop.f32.mrb[0].mxu0
        %v3312 = vadd.f32 0.0, %v3311
        %v3313 = vpop.f32.mrb[0].mxu0
        %v3314 = vpop.f32.mrb[0].mxu0
        %v3315 = vadd.f32 0.0, %v3314
        %v3316 = vpop.f32.mrb[0].mxu0
        %3317 = vmatprep.mubr.bf16.mxu0 0
        %3318 = vmatmul.mubr.bf16.gmra.mrb[0].mxu0 %v3198
        %v3319 = vpop.f32.mrb[0].mxu0
        %v3320 = vadd.f32 0.0, %v3319
        %v3321 = vpop.f32.mrb[0].mxu0
        %v3322 = vpop.f32.mrb[0].mxu0
        %v3323 = vadd.f32 0.0, %v3322
        %v3324 = vpop.f32.mrb[0].mxu0
        %3325 = vmatprep.mubr.bf16.mxu0 0
        %3326 = vmatmul.mubr.bf16.gmra.mrb[0].mxu0 %v3201
        %v3327 = vpop.f32.mrb[0].mxu0
        %v3328 = vadd.f32 0.0, %v3327
        %v3329 = vpop.f32.mrb[0].mxu0
        %v3330 = vpop.f32.mrb[0].mxu0
        %v3331 = vadd.f32 0.0, %v3330
        %v3332 = vpop.f32.mrb[0].mxu0
        %3333 = vmatprep.mubr.bf16.mxu0 0
        %3334 = vmatmul.mubr.bf16.gmra.mrb[0].mxu0 %v3204
        %v3335 = vpop.f32.mrb[0].mxu0
        %v3336 = vadd.f32 0.0, %v3335
        %v3337 = vpop.f32.mrb[0].mxu0
        %v3338 = vpop.f32.mrb[0].mxu0
        %v3339 = vadd.f32 0.0, %v3338
        %v3340 = vpop.f32.mrb[0].mxu0
        %3341 = vmatprep.mubr.bf16.mxu0 0
        %3342 = vmatmul.mubr.bf16.gmra.mrb[0].mxu0 %v3207
        %v3343 = vpop.f32.mrb[0].mxu0
        %v3344 = vadd.f32 0.0, %v3343
        %v3345 = vpop.f32.mrb[0].mxu0
        %v3346 = vpop.f32.mrb[0].mxu0
        %v3347 = vadd.f32 0.0, %v3346
        %v3348 = vpop.f32.mrb[0].mxu0
        %3349 = vmatprep.mubr.bf16.mxu0 0
        %3350 = vmatmul.mubr.bf16.gmra.mrb[0].mxu0 %v3210
        %v3351 = vpop.f32.mrb[0].mxu0
        %v3352 = vadd.f32 0.0, %v3351
        %v3353 = vpop.f32.mrb[0].mxu0
        %v3354 = vpop.f32.mrb[0].mxu0
        %v3355 = vadd.f32 0.0, %v3354
        %v3356 = vpop.f32.mrb[0].mxu0
        %3357 = vmatprep.mubr.bf16.mxu0 0
        %3358 = vmatmul.mubr.bf16.gmra.mrb[0].mxu0 %v3213
        %v3359 = vpop.f32.mrb[0].mxu0
        %v3360 = vadd.f32 0.0, %v3359
        %v3361 = vpop.f32.mrb[0].mxu0
        %v3362 = vpop.f32.mrb[0].mxu0
        %v3363 = vadd.f32 0.0, %v3362
        %v3364 = vpop.f32.mrb[0].mxu0
        %3365 = vmatprep.mubr.bf16.mxu0 0
        %3366 = vmatmul.mubr.bf16.gmra.mrb[0].mxu0 %v3216
        %v3367 = vpop.f32.mrb[0].mxu0
        %v3368 = vadd.f32 0.0, %v3367
        %v3369 = vpop.f32.mrb[0].mxu0
        %v3370 = vpop.f32.mrb[0].mxu0
        %v3371 = vadd.f32 0.0, %v3370
        %v3372 = vpop.f32.mrb[0].mxu0
        %3373 = vmatprep.mubr.bf16.mxu0 0
        %3374 = vmatmul.mubr.bf16.gmra.mrb[0].mxu0 %v3219
        %v3375 = vpop.f32.mrb[0].mxu0
        %v3376 = vadd.f32 0.0, %v3375
        %v3377 = vpop.f32.mrb[0].mxu0
        %v3378 = vpop.f32.mrb[0].mxu0
        %v3379 = vadd.f32 0.0, %v3378
        %v3380 = vpop.f32.mrb[0].mxu0
        %3381 = vdwg.mxu0
        %v3382 = vadd.f32 %v3044, %v3256
        %v3383 = vadd.f32 %v3045, %v3259
        %v3384 = vadd.f32 %v3046, %v3264
        %v3385 = vadd.f32 %v3047, %v3267
        %v3386 = vadd.f32 %v3048, %v3272
        %v3387 = vadd.f32 %v3049, %v3275
        %v3388 = vadd.f32 %v3050, %v3280
        %v3389 = vadd.f32 %v3051, %v3283
        %v3390 = vadd.f32 %v3052, %v3288
        %v3391 = vadd.f32 %v3053, %v3291
        %v3392 = vadd.f32 %v3054, %v3296
        %v3393 = vadd.f32 %v3055, %v3299
        %v3394 = vadd.f32 %v3056, %v3304
        %v3395 = vadd.f32 %v3057, %v3307
        %v3396 = vadd.f32 %v3058, %v3312
        %v3397 = vadd.f32 %v3059, %v3315
        %v3398 = vadd.f32 %v3060, %v3320
        %v3399 = vadd.f32 %v3061, %v3323
        %v3400 = vadd.f32 %v3062, %v3328
        %v3401 = vadd.f32 %v3063, %v3331
        %v3402 = vadd.f32 %v3064, %v3336
        %v3403 = vadd.f32 %v3065, %v3339
        %v3404 = vadd.f32 %v3066, %v3344
        %v3405 = vadd.f32 %v3067, %v3347
        %v3406 = vadd.f32 %v3068, %v3352
        %v3407 = vadd.f32 %v3069, %v3355
        %v3408 = vadd.f32 %v3070, %v3360
        %v3409 = vadd.f32 %v3071, %v3363
        %v3410 = vadd.f32 %v3072, %v3368
        %v3411 = vadd.f32 %v3073, %v3371
        %v3412 = vadd.f32 %v3074, %v3376
        %v3413 = vadd.f32 %v3075, %v3379
        %v3414 = vld [vmem:[#allocation2 + $0x28] sm:$0xff]
        %v3415 = vld [vmem:[#allocation2 + $0x30] sm:$0xff]
        %v3416 = vld [vmem:[#allocation2 + $0x38] sm:$0xff]
        %v3417 = vld [vmem:[#allocation2 + $0x40] sm:$0xff]
        %v3418 = vld [vmem:[#allocation2 + $0x48] sm:$0xff]
        %v3419 = vld [vmem:[#allocation2 + $0x50] sm:$0xff]
        %v3420 = vld [vmem:[#allocation2 + $0x58] sm:$0xff]
        %v3421 = vld [vmem:[#allocation2 + $0x60] sm:$0xff]
        %v3422 = vld [vmem:[#allocation2 + $0x68] sm:$0xff]
        %v3423 = vld [vmem:[#allocation2 + $0x70] sm:$0xff]
        %v3424 = vld [vmem:[#allocation2 + $0x78] sm:$0xff]
        %v3425 = vld [vmem:[#allocation2 + $0x80] sm:$0xff]
        %v3426 = vld [vmem:[#allocation2 + $0x88] sm:$0xff]
        %v3427 = vld [vmem:[#allocation2 + $0x90] sm:$0xff]
        %v3428 = vld [vmem:[#allocation2 + $0x98] sm:$0xff]
        %v3429 = vld [vmem:[#allocation2 + $0xa0] sm:$0xff]
        %v3430 = vld [vmem:[#allocation2 + $0xa8] sm:$0xff]
        %v3431 = vld [vmem:[#allocation2 + $0xb0] sm:$0xff]
        %v3432 = vld [vmem:[#allocation2 + $0xb8] sm:$0xff]
        %v3433 = vld [vmem:[#allocation2 + $0xc0] sm:$0xff]
        %v3434 = vld [vmem:[#allocation2 + $0xc8] sm:$0xff]
        %v3435 = vld [vmem:[#allocation2 + $0xd0] sm:$0xff]
        %v3436 = vld [vmem:[#allocation2 + $0xd8] sm:$0xff]
        %v3437 = vld [vmem:[#allocation2 + $0xe0] sm:$0xff]
        %v3438 = vld [vmem:[#allocation2 + $0xe8] sm:$0xff]
        %v3439 = vld [vmem:[#allocation2 + $0xf0] sm:$0xff]
        %v3440 = vld [vmem:[#allocation2 + $0xf8] sm:$0xff]
        %v3441 = vld [vmem:[#allocation2 + $0x100] sm:$0xff]
        %v3442 = vld [vmem:[#allocation2 + $0x108] sm:$0xff]
        %v3443 = vld [vmem:[#allocation2 + $0x110] sm:$0xff]
        %v3444 = vld [vmem:[#allocation2 + $0x118] sm:$0xff]
        %v3445 = vld [vmem:[#allocation2 + $0x120] sm:$0xff]
        %v3446 = vpack.c.bf16 %v3415, %v3414
        %v3447 = vpack.c.bf16 %v3417, %v3416
        %v3448 = vpack.c.bf16 %v3419, %v3418
        %v3449 = vpack.c.bf16 %v3421, %v3420
        %v3450 = vpack.c.bf16 %v3423, %v3422
        %v3451 = vpack.c.bf16 %v3425, %v3424
        %v3452 = vpack.c.bf16 %v3427, %v3426
        %v3453 = vpack.c.bf16 %v3429, %v3428
        %v3454 = vpack.c.bf16 %v3431, %v3430
        %v3455 = vpack.c.bf16 %v3433, %v3432
        %v3456 = vpack.c.bf16 %v3435, %v3434
        %v3457 = vpack.c.bf16 %v3437, %v3436
        %v3458 = vpack.c.bf16 %v3439, %v3438
        %v3459 = vpack.c.bf16 %v3441, %v3440
        %v3460 = vpack.c.bf16 %v3443, %v3442
        %v3461 = vpack.c.bf16 %v3445, %v3444
        %s3462 = scalar_lea.vmem [#allocation6], 112
        %v3463 = vld [vmem:[%s3462] sm:$0xf]
        %v3464 = vld [vmem:[%s3462 + $0x4] sm:$0xf]
        %v3465 = vld [vmem:[%s3462 + $0x8] sm:$0xf]
        %v3466 = vld [vmem:[%s3462 + $0xc] sm:$0xf]
        %v3471 = vunpack.c.l.b16 %v3463
        %v3472 = vunpack.c.l.b16 %v3464
        %v3473 = vunpack.c.l.b16 %v3465
        %v3474 = vunpack.c.l.b16 %v3466
        %v3475 = vpack.c.b16 %v3472, %v3471
        %v3476 = vpack.c.b16 %v3474, %v3473
        %v3480 = vsel %vm625, %v3446, 0
        %v3483 = vsel %vm625, %v3447, 0
        %v3486 = vsel %vm625, %v3448, 0
        %v3489 = vsel %vm625, %v3449, 0
        %v3492 = vsel %vm625, %v3450, 0
        %v3495 = vsel %vm625, %v3451, 0
        %v3498 = vsel %vm625, %v3452, 0
        %v3501 = vsel %vm625, %v3453, 0
        %v3504 = vsel %vm625, %v3454, 0
        %v3507 = vsel %vm625, %v3455, 0
        %v3510 = vsel %vm625, %v3456, 0
        %v3513 = vsel %vm625, %v3457, 0
        %v3516 = vsel %vm625, %v3458, 0
        %v3519 = vsel %vm625, %v3459, 0
        %v3522 = vsel %vm625, %v3460, 0
        %v3525 = vsel %vm625, %v3461, 0
        %3527 = vmatprep.subr.bf16.mxu0 0
        %3528 = vmatpush1.bf16.msra.mxu0 %v3475
        %3529 = vmatprep.subr.bf16.mxu0 0
        %3530 = vmatpush1.bf16.msra.mxu0 %v3476
        %3531 = vmatprep.subr.bf16.mxu0 0
        %3532 = vmatpush1.bf16.msra.mxu0 0
        %3533 = vmatprep.subr.bf16.mxu0 0
        %3534 = vmatpush1.bf16.msra.mxu0 0
        %3535 = vmatprep.subr.bf16.mxu0 0
        %3536 = vmatpush1.bf16.msra.mxu0 0
        %3537 = vmatprep.subr.bf16.mxu0 0
        %3538 = vmatpush1.bf16.msra.mxu0 0
        %3539 = vmatprep.subr.bf16.mxu0 0
        %3540 = vmatpush1.bf16.msra.mxu0 0
        %3541 = vmatprep.subr.bf16.mxu0 0
        %3542 = vmatpush1.bf16.msra.mxu0 0
        %3543 = vmatprep.subr.bf16.mxu0 0
        %3544 = vmatpush1.bf16.msra.mxu0 0
        %3545 = vmatprep.subr.bf16.mxu0 0
        %3546 = vmatpush1.bf16.msra.mxu0 0
        %3547 = vmatprep.subr.bf16.mxu0 0
        %3548 = vmatpush1.bf16.msra.mxu0 0
        %3549 = vmatprep.subr.bf16.mxu0 0
        %3550 = vmatpush1.bf16.msra.mxu0 0
        %3551 = vmatprep.subr.bf16.mxu0 0
        %3552 = vmatpush1.bf16.msra.mxu0 0
        %3553 = vmatprep.subr.bf16.mxu0 0
        %3554 = vmatpush1.bf16.msra.mxu0 0
        %3555 = vmatprep.subr.bf16.mxu0 0
        %3556 = vmatpush1.bf16.msra.mxu0 0
        %3557 = vmatprep.subr.bf16.mxu0 0
        %3558 = vmatpush1.bf16.msra.mxu0 0
        %3559 = vmatprep.mubr.bf16.mxu0 0
        %3560 = vmatmul.mubr.bf16.gmra.mrb[0].mxu0 %v3480
        %v3561 = vpop.f32.mrb[0].mxu0
        %v3562 = vadd.f32 0.0, %v3561
        %v3563 = vpop.f32.mrb[0].mxu0
        %v3564 = vpop.f32.mrb[0].mxu0
        %v3565 = vadd.f32 0.0, %v3564
        %v3566 = vpop.f32.mrb[0].mxu0
        %3567 = vmatprep.mubr.bf16.mxu0 0
        %3568 = vmatmul.mubr.bf16.gmra.mrb[0].mxu0 %v3483
        %v3569 = vpop.f32.mrb[0].mxu0
        %v3570 = vadd.f32 0.0, %v3569
        %v3571 = vpop.f32.mrb[0].mxu0
        %v3572 = vpop.f32.mrb[0].mxu0
        %v3573 = vadd.f32 0.0, %v3572
        %v3574 = vpop.f32.mrb[0].mxu0
        %3575 = vmatprep.mubr.bf16.mxu0 0
        %3576 = vmatmul.mubr.bf16.gmra.mrb[0].mxu0 %v3486
        %v3577 = vpop.f32.mrb[0].mxu0
        %v3578 = vadd.f32 0.0, %v3577
        %v3579 = vpop.f32.mrb[0].mxu0
        %v3580 = vpop.f32.mrb[0].mxu0
        %v3581 = vadd.f32 0.0, %v3580
        %v3582 = vpop.f32.mrb[0].mxu0
        %3583 = vmatprep.mubr.bf16.mxu0 0
        %3584 = vmatmul.mubr.bf16.gmra.mrb[0].mxu0 %v3489
        %v3585 = vpop.f32.mrb[0].mxu0
        %v3586 = vadd.f32 0.0, %v3585
        %v3587 = vpop.f32.mrb[0].mxu0
        %v3588 = vpop.f32.mrb[0].mxu0
        %v3589 = vadd.f32 0.0, %v3588
        %v3590 = vpop.f32.mrb[0].mxu0
        %3591 = vmatprep.mubr.bf16.mxu0 0
        %3592 = vmatmul.mubr.bf16.gmra.mrb[0].mxu0 %v3492
        %v3593 = vpop.f32.mrb[0].mxu0
        %v3594 = vadd.f32 0.0, %v3593
        %v3595 = vpop.f32.mrb[0].mxu0
        %v3596 = vpop.f32.mrb[0].mxu0
        %v3597 = vadd.f32 0.0, %v3596
        %v3598 = vpop.f32.mrb[0].mxu0
        %3599 = vmatprep.mubr.bf16.mxu0 0
        %3600 = vmatmul.mubr.bf16.gmra.mrb[0].mxu0 %v3495
        %v3601 = vpop.f32.mrb[0].mxu0
        %v3602 = vadd.f32 0.0, %v3601
        %v3603 = vpop.f32.mrb[0].mxu0
        %v3604 = vpop.f32.mrb[0].mxu0
        %v3605 = vadd.f32 0.0, %v3604
        %v3606 = vpop.f32.mrb[0].mxu0
        %3607 = vmatprep.mubr.bf16.mxu0 0
        %3608 = vmatmul.mubr.bf16.gmra.mrb[0].mxu0 %v3498
        %v3609 = vpop.f32.mrb[0].mxu0
        %v3610 = vadd.f32 0.0, %v3609
        %v3611 = vpop.f32.mrb[0].mxu0
        %v3612 = vpop.f32.mrb[0].mxu0
        %v3613 = vadd.f32 0.0, %v3612
        %v3614 = vpop.f32.mrb[0].mxu0
        %3615 = vmatprep.mubr.bf16.mxu0 0
        %3616 = vmatmul.mubr.bf16.gmra.mrb[0].mxu0 %v3501
        %v3617 = vpop.f32.mrb[0].mxu0
        %v3618 = vadd.f32 0.0, %v3617
        %v3619 = vpop.f32.mrb[0].mxu0
        %v3620 = vpop.f32.mrb[0].mxu0
        %v3621 = vadd.f32 0.0, %v3620
        %v3622 = vpop.f32.mrb[0].mxu0
        %3623 = vmatprep.mubr.bf16.mxu0 0
        %3624 = vmatmul.mubr.bf16.gmra.mrb[0].mxu0 %v3504
        %v3625 = vpop.f32.mrb[0].mxu0
        %v3626 = vadd.f32 0.0, %v3625
        %v3627 = vpop.f32.mrb[0].mxu0
        %v3628 = vpop.f32.mrb[0].mxu0
        %v3629 = vadd.f32 0.0, %v3628
        %v3630 = vpop.f32.mrb[0].mxu0
        %3631 = vmatprep.mubr.bf16.mxu0 0
        %3632 = vmatmul.mubr.bf16.gmra.mrb[0].mxu0 %v3507
        %v3633 = vpop.f32.mrb[0].mxu0
        %v3634 = vadd.f32 0.0, %v3633
        %v3635 = vpop.f32.mrb[0].mxu0
        %v3636 = vpop.f32.mrb[0].mxu0
        %v3637 = vadd.f32 0.0, %v3636
        %v3638 = vpop.f32.mrb[0].mxu0
        %3639 = vmatprep.mubr.bf16.mxu0 0
        %3640 = vmatmul.mubr.bf16.gmra.mrb[0].mxu0 %v3510
        %v3641 = vpop.f32.mrb[0].mxu0
        %v3642 = vadd.f32 0.0, %v3641
        %v3643 = vpop.f32.mrb[0].mxu0
        %v3644 = vpop.f32.mrb[0].mxu0
        %v3645 = vadd.f32 0.0, %v3644
        %v3646 = vpop.f32.mrb[0].mxu0
        %3647 = vmatprep.mubr.bf16.mxu0 0
        %3648 = vmatmul.mubr.bf16.gmra.mrb[0].mxu0 %v3513
        %v3649 = vpop.f32.mrb[0].mxu0
        %v3650 = vadd.f32 0.0, %v3649
        %v3651 = vpop.f32.mrb[0].mxu0
        %v3652 = vpop.f32.mrb[0].mxu0
        %v3653 = vadd.f32 0.0, %v3652
        %v3654 = vpop.f32.mrb[0].mxu0
        %3655 = vmatprep.mubr.bf16.mxu0 0
        %3656 = vmatmul.mubr.bf16.gmra.mrb[0].mxu0 %v3516
        %v3657 = vpop.f32.mrb[0].mxu0
        %v3658 = vadd.f32 0.0, %v3657
        %v3659 = vpop.f32.mrb[0].mxu0
        %v3660 = vpop.f32.mrb[0].mxu0
        %v3661 = vadd.f32 0.0, %v3660
        %v3662 = vpop.f32.mrb[0].mxu0
        %3663 = vmatprep.mubr.bf16.mxu0 0
        %3664 = vmatmul.mubr.bf16.gmra.mrb[0].mxu0 %v3519
        %v3665 = vpop.f32.mrb[0].mxu0
        %v3666 = vadd.f32 0.0, %v3665
        %v3667 = vpop.f32.mrb[0].mxu0
        %v3668 = vpop.f32.mrb[0].mxu0
        %v3669 = vadd.f32 0.0, %v3668
        %v3670 = vpop.f32.mrb[0].mxu0
        %3671 = vmatprep.mubr.bf16.mxu0 0
        %3672 = vmatmul.mubr.bf16.gmra.mrb[0].mxu0 %v3522
        %v3673 = vpop.f32.mrb[0].mxu0
        %v3674 = vadd.f32 0.0, %v3673
        %v3675 = vpop.f32.mrb[0].mxu0
        %v3676 = vpop.f32.mrb[0].mxu0
        %v3677 = vadd.f32 0.0, %v3676
        %v3678 = vpop.f32.mrb[0].mxu0
        %3679 = vmatprep.mubr.bf16.mxu0 0
        %3680 = vmatmul.mubr.bf16.gmra.mrb[0].mxu0 %v3525
        %v3681 = vpop.f32.mrb[0].mxu0
        %v3682 = vadd.f32 0.0, %v3681
        %v3683 = vpop.f32.mrb[0].mxu0
        %v3684 = vpop.f32.mrb[0].mxu0
        %v3685 = vadd.f32 0.0, %v3684
        %v3686 = vpop.f32.mrb[0].mxu0
        %3687 = vdwg.mxu0
        %v3688 = vadd.f32 %v3382, %v3562
        %v3689 = vadd.f32 %v3383, %v3565
        %v3690 = vadd.f32 %v3384, %v3570
        %v3691 = vadd.f32 %v3385, %v3573
        %v3692 = vadd.f32 %v3386, %v3578
        %v3693 = vadd.f32 %v3387, %v3581
        %v3694 = vadd.f32 %v3388, %v3586
        %v3695 = vadd.f32 %v3389, %v3589
        %v3696 = vadd.f32 %v3390, %v3594
        %v3697 = vadd.f32 %v3391, %v3597
        %v3698 = vadd.f32 %v3392, %v3602
        %v3699 = vadd.f32 %v3393, %v3605
        %v3700 = vadd.f32 %v3394, %v3610
        %v3701 = vadd.f32 %v3395, %v3613
        %v3702 = vadd.f32 %v3396, %v3618
        %v3703 = vadd.f32 %v3397, %v3621
        %v3704 = vadd.f32 %v3398, %v3626
        %v3705 = vadd.f32 %v3399, %v3629
        %v3706 = vadd.f32 %v3400, %v3634
        %v3707 = vadd.f32 %v3401, %v3637
        %v3708 = vadd.f32 %v3402, %v3642
        %v3709 = vadd.f32 %v3403, %v3645
        %v3710 = vadd.f32 %v3404, %v3650
        %v3711 = vadd.f32 %v3405, %v3653
        %v3712 = vadd.f32 %v3406, %v3658
        %v3713 = vadd.f32 %v3407, %v3661
        %v3714 = vadd.f32 %v3408, %v3666
        %v3715 = vadd.f32 %v3409, %v3669
        %v3716 = vadd.f32 %v3410, %v3674
        %v3717 = vadd.f32 %v3411, %v3677
        %v3718 = vadd.f32 %v3412, %v3682
        %v3719 = vadd.f32 %v3413, %v3685
        %v3720 = vld [vmem:[#allocation2 + $0x29] sm:$0xff]
        %v3721 = vld [vmem:[#allocation2 + $0x31] sm:$0xff]
        %v3722 = vld [vmem:[#allocation2 + $0x39] sm:$0xff]
        %v3723 = vld [vmem:[#allocation2 + $0x41] sm:$0xff]
        %v3724 = vld [vmem:[#allocation2 + $0x49] sm:$0xff]
        %v3725 = vld [vmem:[#allocation2 + $0x51] sm:$0xff]
        %v3726 = vld [vmem:[#allocation2 + $0x59] sm:$0xff]
        %v3727 = vld [vmem:[#allocation2 + $0x61] sm:$0xff]
        %v3728 = vld [vmem:[#allocation2 + $0x69] sm:$0xff]
        %v3729 = vld [vmem:[#allocation2 + $0x71] sm:$0xff]
        %v3730 = vld [vmem:[#allocation2 + $0x79] sm:$0xff]
        %v3731 = vld [vmem:[#allocation2 + $0x81] sm:$0xff]
        %v3732 = vld [vmem:[#allocation2 + $0x89] sm:$0xff]
        %v3733 = vld [vmem:[#allocation2 + $0x91] sm:$0xff]
        %v3734 = vld [vmem:[#allocation2 + $0x99] sm:$0xff]
        %v3735 = vld [vmem:[#allocation2 + $0xa1] sm:$0xff]
        %v3736 = vld [vmem:[#allocation2 + $0xa9] sm:$0xff]
        %v3737 = vld [vmem:[#allocation2 + $0xb1] sm:$0xff]
        %v3738 = vld [vmem:[#allocation2 + $0xb9] sm:$0xff]
        %v3739 = vld [vmem:[#allocation2 + $0xc1] sm:$0xff]
        %v3740 = vld [vmem:[#allocation2 + $0xc9] sm:$0xff]
        %v3741 = vld [vmem:[#allocation2 + $0xd1] sm:$0xff]
        %v3742 = vld [vmem:[#allocation2 + $0xd9] sm:$0xff]
        %v3743 = vld [vmem:[#allocation2 + $0xe1] sm:$0xff]
        %v3744 = vld [vmem:[#allocation2 + $0xe9] sm:$0xff]
        %v3745 = vld [vmem:[#allocation2 + $0xf1] sm:$0xff]
        %v3746 = vld [vmem:[#allocation2 + $0xf9] sm:$0xff]
        %v3747 = vld [vmem:[#allocation2 + $0x101] sm:$0xff]
        %v3748 = vld [vmem:[#allocation2 + $0x109] sm:$0xff]
        %v3749 = vld [vmem:[#allocation2 + $0x111] sm:$0xff]
        %v3750 = vld [vmem:[#allocation2 + $0x119] sm:$0xff]
        %v3751 = vld [vmem:[#allocation2 + $0x121] sm:$0xff]
        %v3752 = vsel %vm1145, %v3720, 0.0
        %v3753 = vsel %vm1146, %v3721, 0.0
        %v3754 = vsel %vm1147, %v3722, 0.0
        %v3755 = vsel %vm1148, %v3723, 0.0
        %v3756 = vsel %vm1149, %v3724, 0.0
        %v3757 = vsel %vm1150, %v3725, 0.0
        %v3758 = vsel %vm1151, %v3726, 0.0
        %v3759 = vsel %vm1152, %v3727, 0.0
        %v3760 = vsel %vm1153, %v3728, 0.0
        %v3761 = vsel %vm1154, %v3729, 0.0
        %v3762 = vsel %vm1155, %v3730, 0.0
        %v3763 = vsel %vm1156, %v3731, 0.0
        %v3764 = vsel %vm1157, %v3732, 0.0
        %v3765 = vsel %vm1158, %v3733, 0.0
        %v3766 = vsel %vm1159, %v3734, 0.0
        %v3767 = vsel %vm1160, %v3735, 0.0
        %v3768 = vsel %vm1161, %v3736, 0.0
        %v3769 = vsel %vm1162, %v3737, 0.0
        %v3770 = vsel %vm1163, %v3738, 0.0
        %v3771 = vsel %vm1164, %v3739, 0.0
        %v3772 = vsel %vm1165, %v3740, 0.0
        %v3773 = vsel %vm1166, %v3741, 0.0
        %v3774 = vsel %vm1167, %v3742, 0.0
        %v3775 = vsel %vm1168, %v3743, 0.0
        %v3776 = vsel %vm1169, %v3744, 0.0
        %v3777 = vsel %vm1170, %v3745, 0.0
        %v3778 = vsel %vm1171, %v3746, 0.0
        %v3779 = vsel %vm1172, %v3747, 0.0
        %v3780 = vsel %vm1173, %v3748, 0.0
        %v3781 = vsel %vm1174, %v3749, 0.0
        %v3782 = vsel %vm1175, %v3750, 0.0
        %v3783 = vsel %vm1176, %v3751, 0.0
        %v3784 = vpack.c.bf16 %v3753, %v3752
        %v3785 = vpack.c.bf16 %v3755, %v3754
        %v3786 = vpack.c.bf16 %v3757, %v3756
        %v3787 = vpack.c.bf16 %v3759, %v3758
        %v3788 = vpack.c.bf16 %v3761, %v3760
        %v3789 = vpack.c.bf16 %v3763, %v3762
        %v3790 = vpack.c.bf16 %v3765, %v3764
        %v3791 = vpack.c.bf16 %v3767, %v3766
        %v3792 = vpack.c.bf16 %v3769, %v3768
        %v3793 = vpack.c.bf16 %v3771, %v3770
        %v3794 = vpack.c.bf16 %v3773, %v3772
        %v3795 = vpack.c.bf16 %v3775, %v3774
        %v3796 = vpack.c.bf16 %v3777, %v3776
        %v3797 = vpack.c.bf16 %v3779, %v3778
        %v3798 = vpack.c.bf16 %v3781, %v3780
        %v3799 = vpack.c.bf16 %v3783, %v3782
        %s3800 = scalar_lea.vmem [#allocation6], 128
        %v3801 = vld [vmem:[%s3800] sm:$0xf]
        %v3802 = vld [vmem:[%s3800 + $0x4] sm:$0xf]
        %v3803 = vld [vmem:[%s3800 + $0x8] sm:$0xf]
        %v3804 = vld [vmem:[%s3800 + $0xc] sm:$0xf]
        %v3809 = vunpack.c.l.b16 %v3801
        %v3810 = vunpack.c.l.b16 %v3802
        %v3811 = vunpack.c.l.b16 %v3803
        %v3812 = vunpack.c.l.b16 %v3804
        %v3813 = vpack.c.b16 %v3810, %v3809
        %v3814 = vpack.c.b16 %v3812, %v3811
        %v3818 = vsel %vm625, %v3784, 0
        %v3821 = vsel %vm625, %v3785, 0
        %v3824 = vsel %vm625, %v3786, 0
        %v3827 = vsel %vm625, %v3787, 0
        %v3830 = vsel %vm625, %v3788, 0
        %v3833 = vsel %vm625, %v3789, 0
        %v3836 = vsel %vm625, %v3790, 0
        %v3839 = vsel %vm625, %v3791, 0
        %v3842 = vsel %vm625, %v3792, 0
        %v3845 = vsel %vm625, %v3793, 0
        %v3848 = vsel %vm625, %v3794, 0
        %v3851 = vsel %vm625, %v3795, 0
        %v3854 = vsel %vm625, %v3796, 0
        %v3857 = vsel %vm625, %v3797, 0
        %v3860 = vsel %vm625, %v3798, 0
        %v3863 = vsel %vm625, %v3799, 0
        %3865 = vmatprep.subr.bf16.mxu0 0
        %3866 = vmatpush1.bf16.msra.mxu0 %v3813
        %3867 = vmatprep.subr.bf16.mxu0 0
        %3868 = vmatpush1.bf16.msra.mxu0 %v3814
        %3869 = vmatprep.subr.bf16.mxu0 0
        %3870 = vmatpush1.bf16.msra.mxu0 0
        %3871 = vmatprep.subr.bf16.mxu0 0
        %3872 = vmatpush1.bf16.msra.mxu0 0
        %3873 = vmatprep.subr.bf16.mxu0 0
        %3874 = vmatpush1.bf16.msra.mxu0 0
        %3875 = vmatprep.subr.bf16.mxu0 0
        %3876 = vmatpush1.bf16.msra.mxu0 0
        %3877 = vmatprep.subr.bf16.mxu0 0
        %3878 = vmatpush1.bf16.msra.mxu0 0
        %3879 = vmatprep.subr.bf16.mxu0 0
        %3880 = vmatpush1.bf16.msra.mxu0 0
        %3881 = vmatprep.subr.bf16.mxu0 0
        %3882 = vmatpush1.bf16.msra.mxu0 0
        %3883 = vmatprep.subr.bf16.mxu0 0
        %3884 = vmatpush1.bf16.msra.mxu0 0
        %3885 = vmatprep.subr.bf16.mxu0 0
        %3886 = vmatpush1.bf16.msra.mxu0 0
        %3887 = vmatprep.subr.bf16.mxu0 0
        %3888 = vmatpush1.bf16.msra.mxu0 0
        %3889 = vmatprep.subr.bf16.mxu0 0
        %3890 = vmatpush1.bf16.msra.mxu0 0
        %3891 = vmatprep.subr.bf16.mxu0 0
        %3892 = vmatpush1.bf16.msra.mxu0 0
        %3893 = vmatprep.subr.bf16.mxu0 0
        %3894 = vmatpush1.bf16.msra.mxu0 0
        %3895 = vmatprep.subr.bf16.mxu0 0
        %3896 = vmatpush1.bf16.msra.mxu0 0
        %3897 = vmatprep.mubr.bf16.mxu0 0
        %3898 = vmatmul.mubr.bf16.gmra.mrb[0].mxu0 %v3818
        %v3899 = vpop.f32.mrb[0].mxu0
        %v3900 = vadd.f32 0.0, %v3899
        %v3901 = vpop.f32.mrb[0].mxu0
        %v3902 = vpop.f32.mrb[0].mxu0
        %v3903 = vadd.f32 0.0, %v3902
        %v3904 = vpop.f32.mrb[0].mxu0
        %3905 = vmatprep.mubr.bf16.mxu0 0
        %3906 = vmatmul.mubr.bf16.gmra.mrb[0].mxu0 %v3821
        %v3907 = vpop.f32.mrb[0].mxu0
        %v3908 = vadd.f32 0.0, %v3907
        %v3909 = vpop.f32.mrb[0].mxu0
        %v3910 = vpop.f32.mrb[0].mxu0
        %v3911 = vadd.f32 0.0, %v3910
        %v3912 = vpop.f32.mrb[0].mxu0
        %3913 = vmatprep.mubr.bf16.mxu0 0
        %3914 = vmatmul.mubr.bf16.gmra.mrb[0].mxu0 %v3824
        %v3915 = vpop.f32.mrb[0].mxu0
        %v3916 = vadd.f32 0.0, %v3915
        %v3917 = vpop.f32.mrb[0].mxu0
        %v3918 = vpop.f32.mrb[0].mxu0
        %v3919 = vadd.f32 0.0, %v3918
        %v3920 = vpop.f32.mrb[0].mxu0
        %3921 = vmatprep.mubr.bf16.mxu0 0
        %3922 = vmatmul.mubr.bf16.gmra.mrb[0].mxu0 %v3827
        %v3923 = vpop.f32.mrb[0].mxu0
        %v3924 = vadd.f32 0.0, %v3923
        %v3925 = vpop.f32.mrb[0].mxu0
        %v3926 = vpop.f32.mrb[0].mxu0
        %v3927 = vadd.f32 0.0, %v3926
        %v3928 = vpop.f32.mrb[0].mxu0
        %3929 = vmatprep.mubr.bf16.mxu0 0
        %3930 = vmatmul.mubr.bf16.gmra.mrb[0].mxu0 %v3830
        %v3931 = vpop.f32.mrb[0].mxu0
        %v3932 = vadd.f32 0.0, %v3931
        %v3933 = vpop.f32.mrb[0].mxu0
        %v3934 = vpop.f32.mrb[0].mxu0
        %v3935 = vadd.f32 0.0, %v3934
        %v3936 = vpop.f32.mrb[0].mxu0
        %3937 = vmatprep.mubr.bf16.mxu0 0
        %3938 = vmatmul.mubr.bf16.gmra.mrb[0].mxu0 %v3833
        %v3939 = vpop.f32.mrb[0].mxu0
        %v3940 = vadd.f32 0.0, %v3939
        %v3941 = vpop.f32.mrb[0].mxu0
        %v3942 = vpop.f32.mrb[0].mxu0
        %v3943 = vadd.f32 0.0, %v3942
        %v3944 = vpop.f32.mrb[0].mxu0
        %3945 = vmatprep.mubr.bf16.mxu0 0
        %3946 = vmatmul.mubr.bf16.gmra.mrb[0].mxu0 %v3836
        %v3947 = vpop.f32.mrb[0].mxu0
        %v3948 = vadd.f32 0.0, %v3947
        %v3949 = vpop.f32.mrb[0].mxu0
        %v3950 = vpop.f32.mrb[0].mxu0
        %v3951 = vadd.f32 0.0, %v3950
        %v3952 = vpop.f32.mrb[0].mxu0
        %3953 = vmatprep.mubr.bf16.mxu0 0
        %3954 = vmatmul.mubr.bf16.gmra.mrb[0].mxu0 %v3839
        %v3955 = vpop.f32.mrb[0].mxu0
        %v3956 = vadd.f32 0.0, %v3955
        %v3957 = vpop.f32.mrb[0].mxu0
        %v3958 = vpop.f32.mrb[0].mxu0
        %v3959 = vadd.f32 0.0, %v3958
        %v3960 = vpop.f32.mrb[0].mxu0
        %3961 = vmatprep.mubr.bf16.mxu0 0
        %3962 = vmatmul.mubr.bf16.gmra.mrb[0].mxu0 %v3842
        %v3963 = vpop.f32.mrb[0].mxu0
        %v3964 = vadd.f32 0.0, %v3963
        %v3965 = vpop.f32.mrb[0].mxu0
        %v3966 = vpop.f32.mrb[0].mxu0
        %v3967 = vadd.f32 0.0, %v3966
        %v3968 = vpop.f32.mrb[0].mxu0
        %3969 = vmatprep.mubr.bf16.mxu0 0
        %3970 = vmatmul.mubr.bf16.gmra.mrb[0].mxu0 %v3845
        %v3971 = vpop.f32.mrb[0].mxu0
        %v3972 = vadd.f32 0.0, %v3971
        %v3973 = vpop.f32.mrb[0].mxu0
        %v3974 = vpop.f32.mrb[0].mxu0
        %v3975 = vadd.f32 0.0, %v3974
        %v3976 = vpop.f32.mrb[0].mxu0
        %3977 = vmatprep.mubr.bf16.mxu0 0
        %3978 = vmatmul.mubr.bf16.gmra.mrb[0].mxu0 %v3848
        %v3979 = vpop.f32.mrb[0].mxu0
        %v3980 = vadd.f32 0.0, %v3979
        %v3981 = vpop.f32.mrb[0].mxu0
        %v3982 = vpop.f32.mrb[0].mxu0
        %v3983 = vadd.f32 0.0, %v3982
        %v3984 = vpop.f32.mrb[0].mxu0
        %3985 = vmatprep.mubr.bf16.mxu0 0
        %3986 = vmatmul.mubr.bf16.gmra.mrb[0].mxu0 %v3851
        %v3987 = vpop.f32.mrb[0].mxu0
        %v3988 = vadd.f32 0.0, %v3987
        %v3989 = vpop.f32.mrb[0].mxu0
        %v3990 = vpop.f32.mrb[0].mxu0
        %v3991 = vadd.f32 0.0, %v3990
        %v3992 = vpop.f32.mrb[0].mxu0
        %3993 = vmatprep.mubr.bf16.mxu0 0
        %3994 = vmatmul.mubr.bf16.gmra.mrb[0].mxu0 %v3854
        %v3995 = vpop.f32.mrb[0].mxu0
        %v3996 = vadd.f32 0.0, %v3995
        %v3997 = vpop.f32.mrb[0].mxu0
        %v3998 = vpop.f32.mrb[0].mxu0
        %v3999 = vadd.f32 0.0, %v3998
        %v4000 = vpop.f32.mrb[0].mxu0
        %4001 = vmatprep.mubr.bf16.mxu0 0
        %4002 = vmatmul.mubr.bf16.gmra.mrb[0].mxu0 %v3857
        %v4003 = vpop.f32.mrb[0].mxu0
        %v4004 = vadd.f32 0.0, %v4003
        %v4005 = vpop.f32.mrb[0].mxu0
        %v4006 = vpop.f32.mrb[0].mxu0
        %v4007 = vadd.f32 0.0, %v4006
        %v4008 = vpop.f32.mrb[0].mxu0
        %4009 = vmatprep.mubr.bf16.mxu0 0
        %4010 = vmatmul.mubr.bf16.gmra.mrb[0].mxu0 %v3860
        %v4011 = vpop.f32.mrb[0].mxu0
        %v4012 = vadd.f32 0.0, %v4011
        %v4013 = vpop.f32.mrb[0].mxu0
        %v4014 = vpop.f32.mrb[0].mxu0
        %v4015 = vadd.f32 0.0, %v4014
        %v4016 = vpop.f32.mrb[0].mxu0
        %4017 = vmatprep.mubr.bf16.mxu0 0
        %4018 = vmatmul.mubr.bf16.gmra.mrb[0].mxu0 %v3863
        %v4019 = vpop.f32.mrb[0].mxu0
        %v4020 = vadd.f32 0.0, %v4019
        %v4021 = vpop.f32.mrb[0].mxu0
        %v4022 = vpop.f32.mrb[0].mxu0
        %v4023 = vadd.f32 0.0, %v4022
        %v4024 = vpop.f32.mrb[0].mxu0
        %4025 = vdwg.mxu0
        %v4026 = vadd.f32 %v3688, %v3900
        %v4027 = vadd.f32 %v3689, %v3903
        %v4028 = vadd.f32 %v3690, %v3908
        %v4029 = vadd.f32 %v3691, %v3911
        %v4030 = vadd.f32 %v3692, %v3916
        %v4031 = vadd.f32 %v3693, %v3919
        %v4032 = vadd.f32 %v3694, %v3924
        %v4033 = vadd.f32 %v3695, %v3927
        %v4034 = vadd.f32 %v3696, %v3932
        %v4035 = vadd.f32 %v3697, %v3935
        %v4036 = vadd.f32 %v3698, %v3940
        %v4037 = vadd.f32 %v3699, %v3943
        %v4038 = vadd.f32 %v3700, %v3948
        %v4039 = vadd.f32 %v3701, %v3951
        %v4040 = vadd.f32 %v3702, %v3956
        %v4041 = vadd.f32 %v3703, %v3959
        %v4042 = vadd.f32 %v3704, %v3964
        %v4043 = vadd.f32 %v3705, %v3967
        %v4044 = vadd.f32 %v3706, %v3972
        %v4045 = vadd.f32 %v3707, %v3975
        %v4046 = vadd.f32 %v3708, %v3980
        %v4047 = vadd.f32 %v3709, %v3983
        %v4048 = vadd.f32 %v3710, %v3988
        %v4049 = vadd.f32 %v3711, %v3991
        %v4050 = vadd.f32 %v3712, %v3996
        %v4051 = vadd.f32 %v3713, %v3999
        %v4052 = vadd.f32 %v3714, %v4004
        %v4053 = vadd.f32 %v3715, %v4007
        %v4054 = vadd.f32 %v3716, %v4012
        %v4055 = vadd.f32 %v3717, %v4015
        %v4056 = vadd.f32 %v3718, %v4020
        %v4057 = vadd.f32 %v3719, %v4023
        %v4058 = vld [vmem:[%s4] sm:$0x1]
        %v4060 = vlaneseq
        %v4061 = vshrl.u32 %v4060, 7
        %v4062 = vsub.s32 0, %v4061
        %v4063 = vrot.slane %v4058, %v4062
        %v4065 = vadd.f32 %v4026, %v4063
        %v4066 = vadd.f32 %v4027, %v4063
        %v4067 = vadd.f32 %v4028, %v4063
        %v4068 = vadd.f32 %v4029, %v4063
        %v4069 = vadd.f32 %v4030, %v4063
        %v4070 = vadd.f32 %v4031, %v4063
        %v4071 = vadd.f32 %v4032, %v4063
        %v4072 = vadd.f32 %v4033, %v4063
        %v4073 = vadd.f32 %v4034, %v4063
        %v4074 = vadd.f32 %v4035, %v4063
        %v4075 = vadd.f32 %v4036, %v4063
        %v4076 = vadd.f32 %v4037, %v4063
        %v4077 = vadd.f32 %v4038, %v4063
        %v4078 = vadd.f32 %v4039, %v4063
        %v4079 = vadd.f32 %v4040, %v4063
        %v4080 = vadd.f32 %v4041, %v4063
        %v4081 = vadd.f32 %v4042, %v4063
        %v4082 = vadd.f32 %v4043, %v4063
        %v4083 = vadd.f32 %v4044, %v4063
        %v4084 = vadd.f32 %v4045, %v4063
        %v4085 = vadd.f32 %v4046, %v4063
        %v4086 = vadd.f32 %v4047, %v4063
        %v4087 = vadd.f32 %v4048, %v4063
        %v4088 = vadd.f32 %v4049, %v4063
        %v4089 = vadd.f32 %v4050, %v4063
        %v4090 = vadd.f32 %v4051, %v4063
        %v4091 = vadd.f32 %v4052, %v4063
        %v4092 = vadd.f32 %v4053, %v4063
        %v4093 = vadd.f32 %v4054, %v4063
        %v4094 = vadd.f32 %v4055, %v4063
        %v4095 = vadd.f32 %v4056, %v4063
        %v4096 = vadd.f32 %v4057, %v4063
        %v4097 = vmax.f32 %v4065, 0.0
        %v4098 = vmax.f32 %v4066, 0.0
        %v4099 = vmax.f32 %v4067, 0.0
        %v4100 = vmax.f32 %v4068, 0.0
        %v4101 = vmax.f32 %v4069, 0.0
        %v4102 = vmax.f32 %v4070, 0.0
        %v4103 = vmax.f32 %v4071, 0.0
        %v4104 = vmax.f32 %v4072, 0.0
        %v4105 = vmax.f32 %v4073, 0.0
        %v4106 = vmax.f32 %v4074, 0.0
        %v4107 = vmax.f32 %v4075, 0.0
        %v4108 = vmax.f32 %v4076, 0.0
        %v4109 = vmax.f32 %v4077, 0.0
        %v4110 = vmax.f32 %v4078, 0.0
        %v4111 = vmax.f32 %v4079, 0.0
        %v4112 = vmax.f32 %v4080, 0.0
        %v4113 = vmax.f32 %v4081, 0.0
        %v4114 = vmax.f32 %v4082, 0.0
        %v4115 = vmax.f32 %v4083, 0.0
        %v4116 = vmax.f32 %v4084, 0.0
        %v4117 = vmax.f32 %v4085, 0.0
        %v4118 = vmax.f32 %v4086, 0.0
        %v4119 = vmax.f32 %v4087, 0.0
        %v4120 = vmax.f32 %v4088, 0.0
        %v4121 = vmax.f32 %v4089, 0.0
        %v4122 = vmax.f32 %v4090, 0.0
        %v4123 = vmax.f32 %v4091, 0.0
        %v4124 = vmax.f32 %v4092, 0.0
        %v4125 = vmax.f32 %v4093, 0.0
        %v4126 = vmax.f32 %v4094, 0.0
        %v4127 = vmax.f32 %v4095, 0.0
        %v4128 = vmax.f32 %v4096, 0.0
        %v4129 = vpack.c.bf16 %v4098, %v4097
        %v4130 = vpack.c.bf16 %v4100, %v4099
        %v4131 = vpack.c.bf16 %v4102, %v4101
        %v4132 = vpack.c.bf16 %v4104, %v4103
        %v4133 = vpack.c.bf16 %v4106, %v4105
        %v4134 = vpack.c.bf16 %v4108, %v4107
        %v4135 = vpack.c.bf16 %v4110, %v4109
        %v4136 = vpack.c.bf16 %v4112, %v4111
        %v4137 = vpack.c.bf16 %v4114, %v4113
        %v4138 = vpack.c.bf16 %v4116, %v4115
        %v4139 = vpack.c.bf16 %v4118, %v4117
        %v4140 = vpack.c.bf16 %v4120, %v4119
        %v4141 = vpack.c.bf16 %v4122, %v4121
        %v4142 = vpack.c.bf16 %v4124, %v4123
        %v4143 = vpack.c.bf16 %v4126, %v4125
        %v4144 = vpack.c.bf16 %v4128, %v4127
        %v4145 = vld [vmem:[%s5] sm:$0xf]
        %v4146 = vld [vmem:[%s5 + $0x4] sm:$0xf]
        %v4147 = vld [vmem:[%s5 + $0x8] sm:$0xf]
        %v4148 = vld [vmem:[%s5 + $0xc] sm:$0xf]
        %v4149 = vld [vmem:[%s6] sm:$0x1]
        %v4151 = vlaneseq
        %v4152 = vshrl.u32 %v4151, 7
        %v4153 = vsub.s32 0, %v4152
        %v4154 = vrot.slane %v4149, %v4153
        %v4160 = vunpack.c.l.b16 %v4145
        %v4161 = vunpack.c.l.b16 %v4146
        %v4162 = vunpack.c.l.b16 %v4147
        %v4163 = vunpack.c.l.b16 %v4148
        %v4164 = vpack.c.b16 %v4161, %v4160
        %v4165 = vpack.c.b16 %v4163, %v4162
        %v4169 = vsel %vm625, %v4129, 0
        %v4172 = vsel %vm625, %v4130, 0
        %v4175 = vsel %vm625, %v4131, 0
        %v4178 = vsel %vm625, %v4132, 0
        %v4181 = vsel %vm625, %v4133, 0
        %v4184 = vsel %vm625, %v4134, 0
        %v4187 = vsel %vm625, %v4135, 0
        %v4190 = vsel %vm625, %v4136, 0
        %v4193 = vsel %vm625, %v4137, 0
        %v4196 = vsel %vm625, %v4138, 0
        %v4199 = vsel %vm625, %v4139, 0
        %v4202 = vsel %vm625, %v4140, 0
        %v4205 = vsel %vm625, %v4141, 0
        %v4208 = vsel %vm625, %v4142, 0
        %v4211 = vsel %vm625, %v4143, 0
        %v4214 = vsel %vm625, %v4144, 0
        %4216 = vmatprep.subr.bf16.mxu0 0
        %4217 = vmatpush1.bf16.msra.mxu0 %v4164
        %4218 = vmatprep.subr.bf16.mxu0 0
        %4219 = vmatpush1.bf16.msra.mxu0 %v4165
        %4220 = vmatprep.subr.bf16.mxu0 0
        %4221 = vmatpush1.bf16.msra.mxu0 0
        %4222 = vmatprep.subr.bf16.mxu0 0
        %4223 = vmatpush1.bf16.msra.mxu0 0
        %4224 = vmatprep.subr.bf16.mxu0 0
        %4225 = vmatpush1.bf16.msra.mxu0 0
        %4226 = vmatprep.subr.bf16.mxu0 0
        %4227 = vmatpush1.bf16.msra.mxu0 0
        %4228 = vmatprep.subr.bf16.mxu0 0
        %4229 = vmatpush1.bf16.msra.mxu0 0
        %4230 = vmatprep.subr.bf16.mxu0 0
        %4231 = vmatpush1.bf16.msra.mxu0 0
        %4232 = vmatprep.subr.bf16.mxu0 0
        %4233 = vmatpush1.bf16.msra.mxu0 0
        %4234 = vmatprep.subr.bf16.mxu0 0
        %4235 = vmatpush1.bf16.msra.mxu0 0
        %4236 = vmatprep.subr.bf16.mxu0 0
        %4237 = vmatpush1.bf16.msra.mxu0 0
        %4238 = vmatprep.subr.bf16.mxu0 0
        %4239 = vmatpush1.bf16.msra.mxu0 0
        %4240 = vmatprep.subr.bf16.mxu0 0
        %4241 = vmatpush1.bf16.msra.mxu0 0
        %4242 = vmatprep.subr.bf16.mxu0 0
        %4243 = vmatpush1.bf16.msra.mxu0 0
        %4244 = vmatprep.subr.bf16.mxu0 0
        %4245 = vmatpush1.bf16.msra.mxu0 0
        %4246 = vmatprep.subr.bf16.mxu0 0
        %4247 = vmatpush1.bf16.msra.mxu0 0
        %4248 = vmatprep.mubr.bf16.mxu0 0
        %4249 = vmatmul.mubr.bf16.gmra.mrb[0].mxu0 %v4169
        %v4250 = vpop.f32.mrb[0].mxu0
        %v4251 = vadd.f32 %v4154, %v4250
        %v4252 = vpop.f32.mrb[0].mxu0
        %v4253 = vpop.f32.mrb[0].mxu0
        %v4254 = vadd.f32 %v4154, %v4253
        %v4255 = vpop.f32.mrb[0].mxu0
        %4256 = vmatprep.mubr.bf16.mxu0 0
        %4257 = vmatmul.mubr.bf16.gmra.mrb[0].mxu0 %v4172
        %v4258 = vpop.f32.mrb[0].mxu0
        %v4259 = vadd.f32 %v4154, %v4258
        %v4260 = vpop.f32.mrb[0].mxu0
        %v4261 = vpop.f32.mrb[0].mxu0
        %v4262 = vadd.f32 %v4154, %v4261
        %v4263 = vpop.f32.mrb[0].mxu0
        %4264 = vmatprep.mubr.bf16.mxu0 0
        %4265 = vmatmul.mubr.bf16.gmra.mrb[0].mxu0 %v4175
        %v4266 = vpop.f32.mrb[0].mxu0
        %v4267 = vadd.f32 %v4154, %v4266
        %v4268 = vpop.f32.mrb[0].mxu0
        %v4269 = vpop.f32.mrb[0].mxu0
        %v4270 = vadd.f32 %v4154, %v4269
        %v4271 = vpop.f32.mrb[0].mxu0
        %4272 = vmatprep.mubr.bf16.mxu0 0
        %4273 = vmatmul.mubr.bf16.gmra.mrb[0].mxu0 %v4178
        %v4274 = vpop.f32.mrb[0].mxu0
        %v4275 = vadd.f32 %v4154, %v4274
        %v4276 = vpop.f32.mrb[0].mxu0
        %v4277 = vpop.f32.mrb[0].mxu0
        %v4278 = vadd.f32 %v4154, %v4277
        %v4279 = vpop.f32.mrb[0].mxu0
        %4280 = vmatprep.mubr.bf16.mxu0 0
        %4281 = vmatmul.mubr.bf16.gmra.mrb[0].mxu0 %v4181
        %v4282 = vpop.f32.mrb[0].mxu0
        %v4283 = vadd.f32 %v4154, %v4282
        %v4284 = vpop.f32.mrb[0].mxu0
        %v4285 = vpop.f32.mrb[0].mxu0
        %v4286 = vadd.f32 %v4154, %v4285
        %v4287 = vpop.f32.mrb[0].mxu0
        %4288 = vmatprep.mubr.bf16.mxu0 0
        %4289 = vmatmul.mubr.bf16.gmra.mrb[0].mxu0 %v4184
        %v4290 = vpop.f32.mrb[0].mxu0
        %v4291 = vadd.f32 %v4154, %v4290
        %v4292 = vpop.f32.mrb[0].mxu0
        %v4293 = vpop.f32.mrb[0].mxu0
        %v4294 = vadd.f32 %v4154, %v4293
        %v4295 = vpop.f32.mrb[0].mxu0
        %4296 = vmatprep.mubr.bf16.mxu0 0
        %4297 = vmatmul.mubr.bf16.gmra.mrb[0].mxu0 %v4187
        %v4298 = vpop.f32.mrb[0].mxu0
        %v4299 = vadd.f32 %v4154, %v4298
        %v4300 = vpop.f32.mrb[0].mxu0
        %v4301 = vpop.f32.mrb[0].mxu0
        %v4302 = vadd.f32 %v4154, %v4301
        %v4303 = vpop.f32.mrb[0].mxu0
        %4304 = vmatprep.mubr.bf16.mxu0 0
        %4305 = vmatmul.mubr.bf16.gmra.mrb[0].mxu0 %v4190
        %v4306 = vpop.f32.mrb[0].mxu0
        %v4307 = vadd.f32 %v4154, %v4306
        %v4308 = vpop.f32.mrb[0].mxu0
        %v4309 = vpop.f32.mrb[0].mxu0
        %v4310 = vadd.f32 %v4154, %v4309
        %v4311 = vpop.f32.mrb[0].mxu0
        %4312 = vmatprep.mubr.bf16.mxu0 0
        %4313 = vmatmul.mubr.bf16.gmra.mrb[0].mxu0 %v4193
        %v4314 = vpop.f32.mrb[0].mxu0
        %v4315 = vadd.f32 %v4154, %v4314
        %v4316 = vpop.f32.mrb[0].mxu0
        %v4317 = vpop.f32.mrb[0].mxu0
        %v4318 = vadd.f32 %v4154, %v4317
        %v4319 = vpop.f32.mrb[0].mxu0
        %4320 = vmatprep.mubr.bf16.mxu0 0
        %4321 = vmatmul.mubr.bf16.gmra.mrb[0].mxu0 %v4196
        %v4322 = vpop.f32.mrb[0].mxu0
        %v4323 = vadd.f32 %v4154, %v4322
        %v4324 = vpop.f32.mrb[0].mxu0
        %v4325 = vpop.f32.mrb[0].mxu0
        %v4326 = vadd.f32 %v4154, %v4325
        %v4327 = vpop.f32.mrb[0].mxu0
        %4328 = vmatprep.mubr.bf16.mxu0 0
        %4329 = vmatmul.mubr.bf16.gmra.mrb[0].mxu0 %v4199
        %v4330 = vpop.f32.mrb[0].mxu0
        %v4331 = vadd.f32 %v4154, %v4330
        %v4332 = vpop.f32.mrb[0].mxu0
        %v4333 = vpop.f32.mrb[0].mxu0
        %v4334 = vadd.f32 %v4154, %v4333
        %v4335 = vpop.f32.mrb[0].mxu0
        %4336 = vmatprep.mubr.bf16.mxu0 0
        %4337 = vmatmul.mubr.bf16.gmra.mrb[0].mxu0 %v4202
        %v4338 = vpop.f32.mrb[0].mxu0
        %v4339 = vadd.f32 %v4154, %v4338
        %v4340 = vpop.f32.mrb[0].mxu0
        %v4341 = vpop.f32.mrb[0].mxu0
        %v4342 = vadd.f32 %v4154, %v4341
        %v4343 = vpop.f32.mrb[0].mxu0
        %4344 = vmatprep.mubr.bf16.mxu0 0
        %4345 = vmatmul.mubr.bf16.gmra.mrb[0].mxu0 %v4205
        %v4346 = vpop.f32.mrb[0].mxu0
        %v4347 = vadd.f32 %v4154, %v4346
        %v4348 = vpop.f32.mrb[0].mxu0
        %v4349 = vpop.f32.mrb[0].mxu0
        %v4350 = vadd.f32 %v4154, %v4349
        %v4351 = vpop.f32.mrb[0].mxu0
        %4352 = vmatprep.mubr.bf16.mxu0 0
        %4353 = vmatmul.mubr.bf16.gmra.mrb[0].mxu0 %v4208
        %v4354 = vpop.f32.mrb[0].mxu0
        %v4355 = vadd.f32 %v4154, %v4354
        %v4356 = vpop.f32.mrb[0].mxu0
        %v4357 = vpop.f32.mrb[0].mxu0
        %v4358 = vadd.f32 %v4154, %v4357
        %v4359 = vpop.f32.mrb[0].mxu0
        %4360 = vmatprep.mubr.bf16.mxu0 0
        %4361 = vmatmul.mubr.bf16.gmra.mrb[0].mxu0 %v4211
        %v4362 = vpop.f32.mrb[0].mxu0
        %v4363 = vadd.f32 %v4154, %v4362
        %v4364 = vpop.f32.mrb[0].mxu0
        %v4365 = vpop.f32.mrb[0].mxu0
        %v4366 = vadd.f32 %v4154, %v4365
        %v4367 = vpop.f32.mrb[0].mxu0
        %4368 = vmatprep.mubr.bf16.mxu0 0
        %4369 = vmatmul.mubr.bf16.gmra.mrb[0].mxu0 %v4214
        %v4370 = vpop.f32.mrb[0].mxu0
        %v4371 = vadd.f32 %v4154, %v4370
        %v4372 = vpop.f32.mrb[0].mxu0
        %v4373 = vpop.f32.mrb[0].mxu0
        %v4374 = vadd.f32 %v4154, %v4373
        %v4375 = vpop.f32.mrb[0].mxu0
        %4376 = vdwg.mxu0
        %v4377 = vadd.f32 %v4251, %v313
        %v4378 = vadd.f32 %v4254, %v314
        %v4379 = vadd.f32 %v4259, %v315
        %v4380 = vadd.f32 %v4262, %v316
        %v4381 = vadd.f32 %v4267, %v317
        %v4382 = vadd.f32 %v4270, %v318
        %v4383 = vadd.f32 %v4275, %v319
        %v4384 = vadd.f32 %v4278, %v320
        %v4385 = vadd.f32 %v4283, %v321
        %v4386 = vadd.f32 %v4286, %v322
        %v4387 = vadd.f32 %v4291, %v323
        %v4388 = vadd.f32 %v4294, %v324
        %v4389 = vadd.f32 %v4299, %v325
        %v4390 = vadd.f32 %v4302, %v326
        %v4391 = vadd.f32 %v4307, %v327
        %v4392 = vadd.f32 %v4310, %v328
        %v4393 = vadd.f32 %v4315, %v329
        %v4394 = vadd.f32 %v4318, %v330
        %v4395 = vadd.f32 %v4323, %v331
        %v4396 = vadd.f32 %v4326, %v332
        %v4397 = vadd.f32 %v4331, %v333
        %v4398 = vadd.f32 %v4334, %v334
        %v4399 = vadd.f32 %v4339, %v335
        %v4400 = vadd.f32 %v4342, %v336
        %v4401 = vadd.f32 %v4347, %v337
        %v4402 = vadd.f32 %v4350, %v338
        %v4403 = vadd.f32 %v4355, %v339
        %v4404 = vadd.f32 %v4358, %v340
        %v4405 = vadd.f32 %v4363, %v341
        %v4406 = vadd.f32 %v4366, %v342
        %v4407 = vadd.f32 %v4371, %v343
        %v4408 = vadd.f32 %v4374, %v344
        %v4409 = vmax.f32 %v4377, 0.0
        %v4410 = vmax.f32 %v4378, 0.0
        %v4411 = vmax.f32 %v4379, 0.0
        %v4412 = vmax.f32 %v4380, 0.0
        %v4413 = vmax.f32 %v4381, 0.0
        %v4414 = vmax.f32 %v4382, 0.0
        %v4415 = vmax.f32 %v4383, 0.0
        %v4416 = vmax.f32 %v4384, 0.0
        %v4417 = vmax.f32 %v4385, 0.0
        %v4418 = vmax.f32 %v4386, 0.0
        %v4419 = vmax.f32 %v4387, 0.0
        %v4420 = vmax.f32 %v4388, 0.0
        %v4421 = vmax.f32 %v4389, 0.0
        %v4422 = vmax.f32 %v4390, 0.0
        %v4423 = vmax.f32 %v4391, 0.0
        %v4424 = vmax.f32 %v4392, 0.0
        %v4425 = vmax.f32 %v4393, 0.0
        %v4426 = vmax.f32 %v4394, 0.0
        %v4427 = vmax.f32 %v4395, 0.0
        %v4428 = vmax.f32 %v4396, 0.0
        %v4429 = vmax.f32 %v4397, 0.0
        %v4430 = vmax.f32 %v4398, 0.0
        %v4431 = vmax.f32 %v4399, 0.0
        %v4432 = vmax.f32 %v4400, 0.0
        %v4433 = vmax.f32 %v4401, 0.0
        %v4434 = vmax.f32 %v4402, 0.0
        %v4435 = vmax.f32 %v4403, 0.0
        %v4436 = vmax.f32 %v4404, 0.0
        %v4437 = vmax.f32 %v4405, 0.0
        %v4438 = vmax.f32 %v4406, 0.0
        %v4439 = vmax.f32 %v4407, 0.0
        %v4440 = vmax.f32 %v4408, 0.0
        %4441 = vst [vmem:[%s311] sm:$0xff] %v4409
        %4442 = vst [vmem:[%s311 + $0x8] sm:$0xff] %v4410
        %4443 = vst [vmem:[%s311 + $0x10] sm:$0xff] %v4411
        %4444 = vst [vmem:[%s311 + $0x18] sm:$0xff] %v4412
        %4445 = vst [vmem:[%s311 + $0x20] sm:$0xff] %v4413
        %4446 = vst [vmem:[%s311 + $0x28] sm:$0xff] %v4414
        %4447 = vst [vmem:[%s311 + $0x30] sm:$0xff] %v4415
        %4448 = vst [vmem:[%s311 + $0x38] sm:$0xff] %v4416
        %4449 = vst [vmem:[%s311 + $0x40] sm:$0xff] %v4417
        %4450 = vst [vmem:[%s311 + $0x48] sm:$0xff] %v4418
        %4451 = vst [vmem:[%s311 + $0x50] sm:$0xff] %v4419
        %4452 = vst [vmem:[%s311 + $0x58] sm:$0xff] %v4420
        %4453 = vst [vmem:[%s311 + $0x60] sm:$0xff] %v4421
        %4454 = vst [vmem:[%s311 + $0x68] sm:$0xff] %v4422
        %4455 = vst [vmem:[%s311 + $0x70] sm:$0xff] %v4423
        %4456 = vst [vmem:[%s311 + $0x78] sm:$0xff] %v4424
        %4457 = vst [vmem:[%s311 + $0x80] sm:$0xff] %v4425
        %4458 = vst [vmem:[%s311 + $0x88] sm:$0xff] %v4426
        %4459 = vst [vmem:[%s311 + $0x90] sm:$0xff] %v4427
        %4460 = vst [vmem:[%s311 + $0x98] sm:$0xff] %v4428
        %4461 = vst [vmem:[%s311 + $0xa0] sm:$0xff] %v4429
        %4462 = vst [vmem:[%s311 + $0xa8] sm:$0xff] %v4430
        %4463 = vst [vmem:[%s311 + $0xb0] sm:$0xff] %v4431
        %4464 = vst [vmem:[%s311 + $0xb8] sm:$0xff] %v4432
        %4465 = vst [vmem:[%s311 + $0xc0] sm:$0xff] %v4433
        %4466 = vst [vmem:[%s311 + $0xc8] sm:$0xff] %v4434
        %4467 = vst [vmem:[%s311 + $0xd0] sm:$0xff] %v4435
        %4468 = vst [vmem:[%s311 + $0xd8] sm:$0xff] %v4436
        %4469 = vst [vmem:[%s311 + $0xe0] sm:$0xff] %v4437
        %4470 = vst [vmem:[%s311 + $0xe8] sm:$0xff] %v4438
        %4471 = vst [vmem:[%s311 + $0xf0] sm:$0xff] %v4439
        %4472 = vst [vmem:[%s311 + $0xf8] sm:$0xff] %v4440
        %s4473 = sand.u32 %s185, 1
        %s4474 = scalar_lea.sflag [#allocation5], %s4473
        %s4475 = sand.u32 %s185, 1
        %s4476 = smul.addr %s4475, 256
        %s4477 = scalar_lea.vmem [#allocation8], %s4476
        // Predicated region
        $region57: #{bottleneck_forward.1} parent=47 // pred_check
          %p4478 = pneg %p195
        $region58: #{bottleneck_forward.1} parent=47 // pred_check_branch
          %4480 = sbr.rel (%p4478) target = $region60
        $region59: #{bottleneck_forward.1} parent=47 // pred_region
          %s4482 = ssub.s32 4096, 4096
          %4483 = vsyncadd %s4474, %s4482
          %s4484 = smul.addr %s25, 32
          %s4485 = smul.addr %s4484, 128
          %s4486 = scalar_lea.hbm %s7, %s4485
          %s4487 = sshll.u32 %s4477, 4
          %s4488 = int_to_ptr.vmem [resolvable:$true] %s4487
          %4493 = dma.vmem_to_hbm [thread:$0]  %s4488, 4096, %s4486, %s4474, 128, 128, 8
        $region60: #{bottleneck_forward.1} parent=47 // pred_fallthru
          _
      $region48: #{bottleneck_forward.1} parent=5 // pred_fallthru
        _
      %p4494 = scmp.le.s32.totalorder 2, %s20
      // Predicated region
      $region61: #{bottleneck_forward.1} parent=5 // pred_check
        %p4495 = pneg %p4494
      $region62: #{bottleneck_forward.1} parent=5 // pred_check_branch
        %4497 = sbr.rel (%p4495) target = $region64
      $region63: #{bottleneck_forward.1} parent=5 // pred_region
        %s4498 = ssub.s32 %s20, 2
        // Predicated region
        $region65: #{bottleneck_forward.1} parent=63 // pred_check
          %p4499 = pneg %p201
        $region66: #{bottleneck_forward.1} parent=63 // pred_check_branch
          %4501 = sbr.rel (%p4499) target = $region68
        $region67: #{bottleneck_forward.1} parent=63 // pred_region
          %s4502 = sand.u32 %s186, 1
          %s4503 = scalar_lea.sflag [#allocation5], %s4502
          %s4504 = sand.u32 %s186, 1
          %s4505 = smul.addr %s4504, 256
          %s4506 = scalar_lea.vmem [#allocation8], %s4505
          %4507 = dma.done %s4503, 4096
        $region68: #{bottleneck_forward.1} parent=63 // pred_fallthru
          _
      $region64: #{bottleneck_forward.1} parent=5 // pred_fallthru
        _
    $region6: #{bottleneck_forward.1} parent=1 // loop_footer
      %s24 = sadd.s32 1, %s20
    $region7: #{bottleneck_forward.1} parent=1 // loop_footer_branch
      %19 = sbr.rel target = $region3
    $region8: #{bottleneck_forward.1} parent=1 // loop_exit
      _
    %4508 = vsyncpa [#allocation4], 1
    %s4509 = scalar_lea.sflag [#allocation4], 1
    %4510 = vsyncpa %s4509, 1
    %4511 = vsyncpa [#allocation7], 1
    %4512 = vsyncpa [#allocation5], 1
    %s4513 = scalar_lea.sflag [#allocation5], 1
    %4514 = vsyncpa %s4513, 1

</llo_original>
